<compile_context>
chip_gen: v7x
topology: tpu7x:2x2x1
jax: 0.10.0
libtpu: 0.0.40
codegen_flags: <defaults>
</compile_context>

<pallas_src>
import functools
import math

import jax
import jax.numpy as jnp
from jax import lax
from jax.experimental import pallas as pl
from jax.experimental.pallas import tpu as pltpu


def _round_up(x, m):
    return ((x + m - 1) // m) * m


def _vmem_budget_bytes():
    """Generation-aware VMEM budget (~7/8 of physical capacity)."""
    cap = 64 * 1024 * 1024
    try:
        info = pltpu.get_tpu_info()
        cap = int(getattr(info, "vmem_capacity_bytes", cap))
    except Exception:
        pass
    return max(16 * 1024 * 1024, (cap // 8) * 7)


# ----------------------------------------------------------------------------
# Block-sparse schedule for the (padded) normalized adjacency.
#   nz_idx[i*KT + j] : j-th nonzero k-block index of row tile i
#                      (tail entries repeat the last valid index so the
#                       pipeline revisits -> no DMA for padding steps)
#   nz_cnt[i]        : number of nonzero k-blocks of row tile i
# ----------------------------------------------------------------------------
def _block_sparse_meta(adj_p, tm, tk):
    Np = adj_p.shape[0]
    RT, KT = Np // tm, Np // tk
    blocks = adj_p.reshape(RT, tm, KT, tk)
    mask = jnp.any(blocks != 0.0, axis=(1, 3))                       # (RT, KT)
    cols = jnp.arange(KT, dtype=jnp.int32)
    key = jnp.where(mask, cols[None, :], KT)                         # sentinel last
    order = jnp.sort(key, axis=1).astype(jnp.int32)
    counts = jnp.sum(mask, axis=1).astype(jnp.int32)                 # (RT,)
    last = jnp.take_along_axis(order, jnp.maximum(counts - 1, 0)[:, None], axis=1)
    last = jnp.where(counts[:, None] > 0, last, 0).astype(jnp.int32)
    nz_idx = jnp.where(cols[None, :] < counts[:, None], order, last)
    return nz_idx.reshape(-1).astype(jnp.int32), counts


# ----------------------------------------------------------------------------
# Kernel 1: one LightGCN propagation layer (block-sparse tiled matmul)
#   new_rep = A @ rep                (bf16 inputs, f32 accumulation)
#   acc_out = (acc_in + new_rep) * out_scale
# ----------------------------------------------------------------------------
def _layer_kernel(nzidx_ref, nzcnt_ref, adj_ref, rep_ref, accin_ref,
                  rep_out_ref, acc_out_ref, acc_sc, *, tk, kt, out_scale):
    i = pl.program_id(0)
    j = pl.program_id(1)

    @pl.when(j == 0)
    def _():
        acc_sc[...] = jnp.zeros_like(acc_sc)

    @pl.when(j < nzcnt_ref[i])
    def _():
        kblk = nzidx_ref[i * kt + j]
        start = pl.multiple_of(kblk * tk, tk)
        rep_slab = rep_ref[pl.ds(start, tk), :]          # resident rep, sliced
        acc_sc[...] += jnp.dot(adj_ref[...], rep_slab,
                               preferred_element_type=jnp.float32)

    @pl.when(j == pl.num_programs(1) - 1)
    def _():
        new_rep = acc_sc[...]
        rep_out_ref[...] = new_rep.astype(rep_out_ref.dtype)
        acc_out_ref[...] = (accin_ref[...] + new_rep) * out_scale


def _layer_vmem_bytes(tm, tk, n, d):
    b = 2 * tm * tk * 2      # adjacency tiles, double buffered, bf16
    b += 2 * n * d * 2       # resident rep slab, bf16
    b += 2 * tm * d * 4      # running layer-sum input, f32
    b += 2 * tm * d * 2      # new-rep output, bf16
    b += 2 * tm * d * 4      # updated layer-sum output, f32
    b += tm * d * 4          # accumulator scratch
    return b


def propagate_layer(nz_idx, nz_cnt, adj_b, rep_b, acc, out_scale, *, tm, tk):
    Np, D = acc.shape
    RT, KT = Np // tm, Np // tk

    need = _layer_vmem_bytes(tm, tk, Np, D)
    vmem_limit = min(_vmem_budget_bytes(), max(8 * 1024 * 1024, 2 * need))

    grid_spec = pltpu.PrefetchScalarGridSpec(
        num_scalar_prefetch=2,
        grid=(RT, KT),
        in_specs=[
            # adjacency: data-dependent k-block index (block-sparse stream)
            pl.BlockSpec((tm, tk), lambda i, j, nz, cnt: (i, nz[i * KT + j])),
            # rep slab: one full block, resident in VMEM across the grid
            pl.BlockSpec((Np, D), lambda i, j, nz, cnt: (0, 0)),
            # running layer sum
            pl.BlockSpec((tm, D), lambda i, j, nz, cnt: (i, 0)),
        ],
        out_specs=(
            pl.BlockSpec((tm, D), lambda i, j, nz, cnt: (i, 0)),
            pl.BlockSpec((tm, D), lambda i, j, nz, cnt: (i, 0)),
        ),
        scratch_shapes=[pltpu.VMEM((tm, D), jnp.float32)],
    )
    return pl.pallas_call(
        functools.partial(_layer_kernel, tk=tk, kt=KT, out_scale=out_scale),
        out_shape=(jax.ShapeDtypeStruct((Np, D), jnp.bfloat16),   # new rep
                   jax.ShapeDtypeStruct((Np, D), jnp.float32)),   # layer sum
        grid_spec=grid_spec,
        # acc (flat input 4, counting the two scalar-prefetch operands)
        # aliases the layer-sum output.  rep_b is NOT aliased (later row
        # tiles still read old rep rows).
        input_output_aliases={4: 1},
        compiler_params=pltpu.CompilerParams(
            dimension_semantics=("parallel", "arbitrary"),
            vmem_limit_bytes=vmem_limit),
    )(nz_idx, nz_cnt, adj_b, rep_b, acc)


def propagate(norm_adj, emb0, n_layers, *, tm=256, tk=512):
    """final_rep = mean(rep_0 .. rep_L), rep_{l+1} = A @ rep_l."""
    N, D = emb0.shape
    if n_layers == 0:
        return emb0

    unit = tm * tk // math.gcd(tm, tk)
    Np = _round_up(N, unit)
    pad = Np - N
    adj_p = jnp.pad(norm_adj, ((0, pad), (0, pad))) if pad else norm_adj
    emb_p = jnp.pad(emb0, ((0, pad), (0, 0))) if pad else emb0

    # adjacency is layer-invariant: sparsity schedule computed once
    nz_idx, nz_cnt = _block_sparse_meta(adj_p, tm, tk)
    adj_b = adj_p.astype(jnp.bfloat16)      # bf16 MXU stream, f32 accumulation
    rep_b = emb_p.astype(jnp.bfloat16)
    acc = emb_p                             # layer sum kept exact in f32

    for layer in range(n_layers):
        scale = 1.0 / float(n_layers + 1) if layer == n_layers - 1 else 1.0
        rep_b, acc = propagate_layer(nz_idx, nz_cnt, adj_b, rep_b, acc, scale,
                                     tm=tm, tk=tk)
    return acc[:N] if pad else acc          # scaled by 1/(L+1) on last layer


# ----------------------------------------------------------------------------
# Kernel 2 (fused): DMA row gather from final_rep (straight into the output
# block) + raw-embedding gather for the regularizer
#   reg = sum_k mean_b ||raw_k[b]||^2
# ----------------------------------------------------------------------------
def _gather_reg_kernel(idx_ref, rep_hbm, emb_hbm, gath_ref, reg_ref,
                       raw_buf, sem_rep, sem_raw):
    nrows = gath_ref.shape[0]          # 3 * batch (static)
    batch = nrows // 3

    def issue(r, carry):
        row = idx_ref[r]
        pltpu.make_async_copy(rep_hbm.at[pl.ds(row, 1), :],
                              gath_ref.at[pl.ds(r, 1), :], sem_rep).start()
        pltpu.make_async_copy(emb_hbm.at[pl.ds(row, 1), :],
                              raw_buf.at[pl.ds(r, 1), :], sem_raw).start()
        return carry

    lax.fori_loop(0, nrows, issue, 0)

    def drain(r, carry):
        # only the size of the descriptor matters for the wait amount
        pltpu.make_async_copy(rep_hbm.at[pl.ds(0, 1), :],
                              gath_ref.at[pl.ds(r, 1), :], sem_rep).wait()
        pltpu.make_async_copy(emb_hbm.at[pl.ds(0, 1), :],
                              raw_buf.at[pl.ds(r, 1), :], sem_raw).wait()
        return carry

    lax.fori_loop(0, nrows, drain, 0)

    raw = raw_buf[...]
    # user / pos / neg groups all have `batch` rows, so
    #   sum_k mean_b ||x_k[b]||^2  ==  sum(all rows squared) / batch
    reg = jnp.sum(raw * raw) * (1.0 / float(batch))
    reg_ref[...] = jnp.reshape(reg, (1, 1))


def gather_and_reg(idx, final_rep, emb0):
    nrows = idx.shape[0]               # 3 * batch
    N, D = final_rep.shape
    grid_spec = pltpu.PrefetchScalarGridSpec(
        num_scalar_prefetch=1,
        grid=(1,),
        in_specs=[
            pl.BlockSpec(memory_space=pl.ANY),   # final_rep stays in HBM
            pl.BlockSpec(memory_space=pl.ANY),   # emb0 (raw tables) in HBM
        ],
        out_specs=[
            pl.BlockSpec((nrows, D), lambda i, idx_ref: (0, 0)),
            pl.BlockSpec((1, 1), lambda i, idx_ref: (0, 0)),
        ],
        scratch_shapes=[
            pltpu.VMEM((nrows, D), jnp.float32),   # gathered raw rows
            pltpu.SemaphoreType.DMA,               # shared sem: rep rows
            pltpu.SemaphoreType.DMA,               # shared sem: raw rows
        ],
    )
    return pl.pallas_call(
        _gather_reg_kernel,
        out_shape=(jax.ShapeDtypeStruct((nrows, D), jnp.float32),
                   jax.ShapeDtypeStruct((1, 1), jnp.float32)),
        grid_spec=grid_spec,
        compiler_params=pltpu.CompilerParams(
            dimension_semantics=("arbitrary",)),
    )(idx, final_rep, emb0)


# ----------------------------------------------------------------------------
# LightGCN forward (glue in plain JAX)
# ----------------------------------------------------------------------------
def lightgcn_forward(norm_adj, user_tbl, item_tbl,
                     user_list, pos_items, neg_items, n_layers):
    n_users = user_tbl.shape[0]
    emb0 = jnp.concatenate([user_tbl, item_tbl], axis=0)        # (N, D) f32

    final_rep = propagate(norm_adj, emb0, n_layers)             # (N, D) f32

    # Offset item indices instead of slicing final_rep into user/item halves.
    # Indices must be in range (as with torch.nn.Embedding) — no silent clip.
    B = user_list.shape[0]
    idx = jnp.concatenate([
        user_list.astype(jnp.int32),
        pos_items.astype(jnp.int32) + n_users,
        neg_items.astype(jnp.int32) + n_users,
    ])

    gathered, reg = gather_and_reg(idx, final_rep, emb0)
    return gathered[:B], gathered[B:2 * B], gathered[2 * B:], reg[0, 0]


# pure-JAX reference (f32 throughout) for correctness checking
def lightgcn_reference(norm_adj, user_tbl, item_tbl,
                       user_list, pos_items, neg_items, n_layers):
    n_users = user_tbl.shape[0]
    rep = jnp.concatenate([user_tbl, item_tbl], axis=0)
    acc = rep
    for _ in range(n_layers):
        rep = norm_adj @ rep
        acc = acc + rep
    final_rep = acc / (n_layers + 1)
    user_r, item_r = final_rep[:n_users], final_rep[n_users:]
    msn = lambda x: jnp.mean(jnp.sum(x * x, axis=1))
    reg = (msn(user_tbl[user_list]) + msn(item_tbl[pos_items]) +
           msn(item_tbl[neg_items]))
    return (user_r[user_list], item_r[pos_items], item_r[neg_items], reg)


if __name__ == "__main__":
    # small, deterministic synthetic config.
    # D = 128 -> lane-dense outputs; N = 640 -> padded to 1024, so the run
    # exercises padding, block-sparse skips (counts 0/1/2) and the reduction
    # grid axis (KT = 2 with tk = 512).
    n_users, n_items, dim, n_layers, batch = 200, 440, 128, 3, 8
    N = n_users + n_items  # 640

    key = jax.random.PRNGKey(0)
    k_r, k_u, k_i, k_ul, k_pi, k_ni = jax.random.split(key, 6)

    # embedding tables, normal std=0.1 (as in normal_(..., std=0.1))
    user_tbl = 0.1 * jax.random.normal(k_u, (n_users, dim), dtype=jnp.float32)
    item_tbl = 0.1 * jax.random.normal(k_i, (n_items, dim), dtype=jnp.float32)

    # synthetic bipartite interaction graph -> symmetric-normalized adjacency
    R = (jax.random.uniform(k_r, (n_users, n_items)) < 0.1).astype(jnp.float32)
    A = jnp.zeros((N, N), jnp.float32)
    A = A.at[:n_users, n_users:].set(R)
    A = A.at[n_users:, :n_users].set(R.T)
    deg = jnp.maximum(1.0, jnp.sum(A, axis=1))
    d_inv = deg ** -0.5
    norm_adj = d_inv[:, None] * A * d_inv[None, :]

    user_list = jax.random.randint(k_ul, (batch,), 0, n_users, dtype=jnp.int32)
    pos_items = jax.random.randint(k_pi, (batch,), 0, n_items, dtype=jnp.int32)
    neg_items = jax.random.randint(k_ni, (batch,), 0, n_items, dtype=jnp.int32)

    fwd = jax.jit(functools.partial(lightgcn_forward, n_layers=n_layers))
    u_out, p_out, n_out, reg = fwd(norm_adj, user_tbl, item_tbl,
                                   user_list, pos_items, neg_items)
    jax.block_until_ready((u_out, p_out, n_out, reg))

    # correctness check against pure-f32 reference.
    # propagation streams adjacency/rep in bf16 (f32 MXU accumulation), so the
    # rep comparison uses a bf16-level tolerance; reg is exact f32.
    ru, rp, rn, rreg = lightgcn_reference(norm_adj, user_tbl, item_tbl,
                                          user_list, pos_items, neg_items,
                                          n_layers)
    assert jnp.allclose(u_out, ru, atol=5e-3), "user rep mismatch"
    assert jnp.allclose(p_out, rp, atol=5e-3), "pos item rep mismatch"
    assert jnp.allclose(n_out, rn, atol=5e-3), "neg item rep mismatch"
    assert jnp.allclose(reg, rreg, atol=1e-3), "reg mismatch"

    print("KERNEL_OK")
</pallas_src>

<mosaic_0001>
module attributes {stable_mosaic.version = 11 : i64} {
  func.func @_layer_kernel(%arg0: i32, %arg1: i32, %arg2: memref<8xi32, #tpu.memory_space<smem>>, %arg3: memref<4xi32, #tpu.memory_space<smem>>, %arg4: memref<256x512xbf16, #tpu.memory_space<vmem>>, %arg5: memref<1024x128xbf16, #tpu.memory_space<vmem>>, %arg6: memref<256x128xf32, #tpu.memory_space<vmem>>, %arg7: memref<256x128xbf16, #tpu.memory_space<vmem>>, %arg8: memref<256x128xf32, #tpu.memory_space<vmem>>, %arg9: memref<256x128xf32, #tpu.memory_space<vmem>>) attributes {dimension_semantics = [#tpu.dimension_semantics<parallel>, #tpu.dimension_semantics<arbitrary>], iteration_bounds = array<i64: 4, 2>, scalar_prefetch = 2 : i64, scratch_operands = 1 : i64, tpu.core_type = #tpu.core_type<tc>, window_params = [{transform_indices = @transform_0, window_bounds = array<i64: 256, 512>}, {pipeline_mode = #tpu.pipeline_mode<synchronous>, transform_indices = @transform_1, window_bounds = array<i64: 1024, 128>}, {transform_indices = @transform_2, window_bounds = array<i64: 256, 128>}, {transform_indices = @transform_3, window_bounds = array<i64: 256, 128>}, {transform_indices = @transform_4, window_bounds = array<i64: 256, 128>}]} {
    %c0_i32 = arith.constant 0 : i32
    %0 = arith.cmpi eq, %arg1, %c0_i32 : i32
    %1 = arith.extui %0 : i1 to i32
    %c0_i32_0 = arith.constant 0 : i32
    %2 = arith.cmpi ne, %1, %c0_i32_0 : i32
    scf.if %2 {
      %cst = arith.constant 0.000000e+00 : f32
      %11 = vector.broadcast %cst : f32 to vector<256x128xf32>
      %c0 = arith.constant 0 : index
      %c0_3 = arith.constant 0 : index
      %12 = vector.load %arg9[%c0, %c0_3] : memref<256x128xf32, #tpu.memory_space<vmem>>, vector<256x128xf32>
      tpu.vector_store %arg9[%c0, %c0_3], %11 {strides = array<i32>} : memref<256x128xf32, #tpu.memory_space<vmem>>, vector<256x128xf32>,
    } else {
    }
    %3 = arith.index_cast %arg0 : i32 to index
    %4 = memref.load %arg3[%3] : memref<4xi32, #tpu.memory_space<smem>>
    %5 = arith.cmpi slt, %arg1, %4 : i32
    %6 = arith.extui %5 : i1 to i32
    %c0_i32_1 = arith.constant 0 : i32
    %7 = arith.cmpi ne, %6, %c0_i32_1 : i32
    scf.if %7 {
      %c2_i32 = arith.constant 2 : i32
      %11 = arith.muli %arg0, %c2_i32 : i32
      %12 = arith.addi %11, %arg1 : i32
      %13 = arith.index_cast %12 : i32 to index
      %14 = memref.load %arg2[%13] : memref<8xi32, #tpu.memory_space<smem>>
      %c512_i32 = arith.constant 512 : i32
      %15 = arith.muli %14, %c512_i32 : i32
      %16 = tpu.assume_multiple %15, 512 : i32
      %17 = arith.index_cast %16 : i32 to index
      %c0 = arith.constant 0 : index
      %18 = vector.load %arg5[%17, %c0] : memref<1024x128xbf16, #tpu.memory_space<vmem>>, vector<512x128xbf16>
      %c0_3 = arith.constant 0 : index
      %c0_4 = arith.constant 0 : index
      %19 = vector.load %arg9[%c0_3, %c0_4] : memref<256x128xf32, #tpu.memory_space<vmem>>, vector<256x128xf32>
      %c0_5 = arith.constant 0 : index
      %c0_6 = arith.constant 0 : index
      %20 = vector.load %arg4[%c0_5, %c0_6] : memref<256x512xbf16, #tpu.memory_space<vmem>>, vector<256x512xbf16>
      %cst = arith.constant dense<0.000000e+00> : vector<256x128xf32>
      %21 = tpu.matmul %20, %18, %cst {dimension_numbers = #tpu.dot_dimension_numbers<[1], [0], [0], [1], [0, 0, 1, 1], [], []>} : vector<256x512xbf16>, vector<512x128xbf16>, vector<256x128xf32> -> vector<256x128xf32>
      %22 = arith.addf %19, %21 : vector<256x128xf32>
      %c0_7 = arith.constant 0 : index
      %c0_8 = arith.constant 0 : index
      %23 = vector.load %arg9[%c0_7, %c0_8] : memref<256x128xf32, #tpu.memory_space<vmem>>, vector<256x128xf32>
      tpu.vector_store %arg9[%c0_7, %c0_8], %22 {strides = array<i32>} : memref<256x128xf32, #tpu.memory_space<vmem>>, vector<256x128xf32>,
    } else {
    }
    %c1_i32 = arith.constant 1 : i32
    %8 = arith.cmpi eq, %arg1, %c1_i32 : i32
    %9 = arith.extui %8 : i1 to i32
    %c0_i32_2 = arith.constant 0 : i32
    %10 = arith.cmpi ne, %9, %c0_i32_2 : i32
    scf.if %10 {
      %c0 = arith.constant 0 : index
      %c0_3 = arith.constant 0 : index
      %11 = vector.load %arg9[%c0, %c0_3] : memref<256x128xf32, #tpu.memory_space<vmem>>, vector<256x128xf32>
      %12 = arith.truncf %11 : vector<256x128xf32> to vector<256x128xbf16>
      %c0_4 = arith.constant 0 : index
      %c0_5 = arith.constant 0 : index
      %13 = vector.load %arg7[%c0_4, %c0_5] : memref<256x128xbf16, #tpu.memory_space<vmem>>, vector<256x128xbf16>
      tpu.vector_store %arg7[%c0_4, %c0_5], %12 {strides = array<i32>} : memref<256x128xbf16, #tpu.memory_space<vmem>>, vector<256x128xbf16>,
      %c0_6 = arith.constant 0 : index
      %c0_7 = arith.constant 0 : index
      %14 = vector.load %arg6[%c0_6, %c0_7] : memref<256x128xf32, #tpu.memory_space<vmem>>, vector<256x128xf32>
      %15 = arith.addf %14, %11 : vector<256x128xf32>
      %cst = arith.constant 1.000000e+00 : f32
      %16 = vector.broadcast %cst : f32 to vector<256x128xf32>
      %17 = arith.mulf %15, %16 : vector<256x128xf32>
      %c0_8 = arith.constant 0 : index
      %c0_9 = arith.constant 0 : index
      %18 = vector.load %arg8[%c0_8, %c0_9] : memref<256x128xf32, #tpu.memory_space<vmem>>, vector<256x128xf32>
      tpu.vector_store %arg8[%c0_8, %c0_9], %17 {strides = array<i32>} : memref<256x128xf32, #tpu.memory_space<vmem>>, vector<256x128xf32>,
    } else {
    }
    return
  }
  func.func @transform_0(%arg0: i32, %arg1: i32, %arg2: memref<8xi32, #tpu.memory_space<smem>>, %arg3: memref<4xi32, #tpu.memory_space<smem>>) -> (i32, i32) {
    %c2_i32 = arith.constant 2 : i32
    %0 = arith.muli %arg0, %c2_i32 : i32
    %1 = arith.addi %0, %arg1 : i32
    %2 = arith.index_cast %1 : i32 to index
    %3 = memref.load %arg2[%2] : memref<8xi32, #tpu.memory_space<smem>>
    %c0_i32 = arith.constant 0 : i32
    return %arg0, %3 : i32, i32
  }
  func.func @transform_1(%arg0: i32, %arg1: i32, %arg2: memref<8xi32, #tpu.memory_space<smem>>, %arg3: memref<4xi32, #tpu.memory_space<smem>>) -> (i32, i32) {
    %c0_i32 = arith.constant 0 : i32
    %c0_i32_0 = arith.constant 0 : i32
    %c0_i32_1 = arith.constant 0 : i32
    return %c0_i32, %c0_i32_0 : i32, i32
  }
  func.func @transform_2(%arg0: i32, %arg1: i32, %arg2: memref<8xi32, #tpu.memory_space<smem>>, %arg3: memref<4xi32, #tpu.memory_space<smem>>) -> (i32, i32) {
    %c0_i32 = arith.constant 0 : i32
    %c0_i32_0 = arith.constant 0 : i32
    return %arg0, %c0_i32 : i32, i32
  }
  func.func @transform_3(%arg0: i32, %arg1: i32, %arg2: memref<8xi32, #tpu.memory_space<smem>>, %arg3: memref<4xi32, #tpu.memory_space<smem>>) -> (i32, i32) {
    %c0_i32 = arith.constant 0 : i32
    %c0_i32_0 = arith.constant 0 : i32
    return %arg0, %c0_i32 : i32, i32
  }
  func.func @transform_4(%arg0: i32, %arg1: i32, %arg2: memref<8xi32, #tpu.memory_space<smem>>, %arg3: memref<4xi32, #tpu.memory_space<smem>>) -> (i32, i32) {
    %c0_i32 = arith.constant 0 : i32
    %c0_i32_0 = arith.constant 0 : i32
    return %arg0, %c0_i32 : i32, i32
  }
}

module attributes {stable_mosaic.version = 11 : i64} {
  func.func @_layer_kernel(%arg0: i32, %arg1: i32, %arg2: memref<8xi32, #tpu.memory_space<smem>>, %arg3: memref<4xi32, #tpu.memory_space<smem>>, %arg4: memref<256x512xbf16, #tpu.memory_space<vmem>>, %arg5: memref<1024x128xbf16, #tpu.memory_space<vmem>>, %arg6: memref<256x128xf32, #tpu.memory_space<vmem>>, %arg7: memref<256x128xbf16, #tpu.memory_space<vmem>>, %arg8: memref<256x128xf32, #tpu.memory_space<vmem>>, %arg9: memref<256x128xf32, #tpu.memory_space<vmem>>) attributes {dimension_semantics = [#tpu.dimension_semantics<parallel>, #tpu.dimension_semantics<arbitrary>], iteration_bounds = array<i64: 4, 2>, scalar_prefetch = 2 : i64, scratch_operands = 1 : i64, tpu.core_type = #tpu.core_type<tc>, window_params = [{transform_indices = @transform_0, window_bounds = array<i64: 256, 512>}, {pipeline_mode = #tpu.pipeline_mode<synchronous>, transform_indices = @transform_1, window_bounds = array<i64: 1024, 128>}, {transform_indices = @transform_2, window_bounds = array<i64: 256, 128>}, {transform_indices = @transform_3, window_bounds = array<i64: 256, 128>}, {transform_indices = @transform_4, window_bounds = array<i64: 256, 128>}]} {
    %c0_i32 = arith.constant 0 : i32
    %0 = arith.cmpi eq, %arg1, %c0_i32 : i32
    %1 = arith.extui %0 : i1 to i32
    %c0_i32_0 = arith.constant 0 : i32
    %2 = arith.cmpi ne, %1, %c0_i32_0 : i32
    scf.if %2 {
      %cst = arith.constant 0.000000e+00 : f32
      %11 = vector.broadcast %cst : f32 to vector<256x128xf32>
      %c0 = arith.constant 0 : index
      %c0_3 = arith.constant 0 : index
      %12 = vector.load %arg9[%c0, %c0_3] : memref<256x128xf32, #tpu.memory_space<vmem>>, vector<256x128xf32>
      tpu.vector_store %arg9[%c0, %c0_3], %11 {strides = array<i32>} : memref<256x128xf32, #tpu.memory_space<vmem>>, vector<256x128xf32>,
    } else {
    }
    %3 = arith.index_cast %arg0 : i32 to index
    %4 = memref.load %arg3[%3] : memref<4xi32, #tpu.memory_space<smem>>
    %5 = arith.cmpi slt, %arg1, %4 : i32
    %6 = arith.extui %5 : i1 to i32
    %c0_i32_1 = arith.constant 0 : i32
    %7 = arith.cmpi ne, %6, %c0_i32_1 : i32
    scf.if %7 {
      %c2_i32 = arith.constant 2 : i32
      %11 = arith.muli %arg0, %c2_i32 : i32
      %12 = arith.addi %11, %arg1 : i32
      %13 = arith.index_cast %12 : i32 to index
      %14 = memref.load %arg2[%13] : memref<8xi32, #tpu.memory_space<smem>>
      %c512_i32 = arith.constant 512 : i32
      %15 = arith.muli %14, %c512_i32 : i32
      %16 = tpu.assume_multiple %15, 512 : i32
      %17 = arith.index_cast %16 : i32 to index
      %c0 = arith.constant 0 : index
      %18 = vector.load %arg5[%17, %c0] : memref<1024x128xbf16, #tpu.memory_space<vmem>>, vector<512x128xbf16>
      %c0_3 = arith.constant 0 : index
      %c0_4 = arith.constant 0 : index
      %19 = vector.load %arg9[%c0_3, %c0_4] : memref<256x128xf32, #tpu.memory_space<vmem>>, vector<256x128xf32>
      %c0_5 = arith.constant 0 : index
      %c0_6 = arith.constant 0 : index
      %20 = vector.load %arg4[%c0_5, %c0_6] : memref<256x512xbf16, #tpu.memory_space<vmem>>, vector<256x512xbf16>
      %cst = arith.constant dense<0.000000e+00> : vector<256x128xf32>
      %21 = tpu.matmul %20, %18, %cst {dimension_numbers = #tpu.dot_dimension_numbers<[1], [0], [0], [1], [0, 0, 1, 1], [], []>} : vector<256x512xbf16>, vector<512x128xbf16>, vector<256x128xf32> -> vector<256x128xf32>
      %22 = arith.addf %19, %21 : vector<256x128xf32>
      %c0_7 = arith.constant 0 : index
      %c0_8 = arith.constant 0 : index
      %23 = vector.load %arg9[%c0_7, %c0_8] : memref<256x128xf32, #tpu.memory_space<vmem>>, vector<256x128xf32>
      tpu.vector_store %arg9[%c0_7, %c0_8], %22 {strides = array<i32>} : memref<256x128xf32, #tpu.memory_space<vmem>>, vector<256x128xf32>,
    } else {
    }
    %c1_i32 = arith.constant 1 : i32
    %8 = arith.cmpi eq, %arg1, %c1_i32 : i32
    %9 = arith.extui %8 : i1 to i32
    %c0_i32_2 = arith.constant 0 : i32
    %10 = arith.cmpi ne, %9, %c0_i32_2 : i32
    scf.if %10 {
      %c0 = arith.constant 0 : index
      %c0_3 = arith.constant 0 : index
      %11 = vector.load %arg9[%c0, %c0_3] : memref<256x128xf32, #tpu.memory_space<vmem>>, vector<256x128xf32>
      %12 = arith.truncf %11 : vector<256x128xf32> to vector<256x128xbf16>
      %c0_4 = arith.constant 0 : index
      %c0_5 = arith.constant 0 : index
      %13 = vector.load %arg7[%c0_4, %c0_5] : memref<256x128xbf16, #tpu.memory_space<vmem>>, vector<256x128xbf16>
      tpu.vector_store %arg7[%c0_4, %c0_5], %12 {strides = array<i32>} : memref<256x128xbf16, #tpu.memory_space<vmem>>, vector<256x128xbf16>,
      %c0_6 = arith.constant 0 : index
      %c0_7 = arith.constant 0 : index
      %14 = vector.load %arg6[%c0_6, %c0_7] : memref<256x128xf32, #tpu.memory_space<vmem>>, vector<256x128xf32>
      %15 = arith.addf %14, %11 : vector<256x128xf32>
      %cst = arith.constant 2.500000e-01 : f32
      %16 = vector.broadcast %cst : f32 to vector<256x128xf32>
      %17 = arith.mulf %15, %16 : vector<256x128xf32>
      %c0_8 = arith.constant 0 : index
      %c0_9 = arith.constant 0 : index
      %18 = vector.load %arg8[%c0_8, %c0_9] : memref<256x128xf32, #tpu.memory_space<vmem>>, vector<256x128xf32>
      tpu.vector_store %arg8[%c0_8, %c0_9], %17 {strides = array<i32>} : memref<256x128xf32, #tpu.memory_space<vmem>>, vector<256x128xf32>,
    } else {
    }
    return
  }
  func.func @transform_0(%arg0: i32, %arg1: i32, %arg2: memref<8xi32, #tpu.memory_space<smem>>, %arg3: memref<4xi32, #tpu.memory_space<smem>>) -> (i32, i32) {
    %c2_i32 = arith.constant 2 : i32
    %0 = arith.muli %arg0, %c2_i32 : i32
    %1 = arith.addi %0, %arg1 : i32
    %2 = arith.index_cast %1 : i32 to index
    %3 = memref.load %arg2[%2] : memref<8xi32, #tpu.memory_space<smem>>
    %c0_i32 = arith.constant 0 : i32
    return %arg0, %3 : i32, i32
  }
  func.func @transform_1(%arg0: i32, %arg1: i32, %arg2: memref<8xi32, #tpu.memory_space<smem>>, %arg3: memref<4xi32, #tpu.memory_space<smem>>) -> (i32, i32) {
    %c0_i32 = arith.constant 0 : i32
    %c0_i32_0 = arith.constant 0 : i32
    %c0_i32_1 = arith.constant 0 : i32
    return %c0_i32, %c0_i32_0 : i32, i32
  }
  func.func @transform_2(%arg0: i32, %arg1: i32, %arg2: memref<8xi32, #tpu.memory_space<smem>>, %arg3: memref<4xi32, #tpu.memory_space<smem>>) -> (i32, i32) {
    %c0_i32 = arith.constant 0 : i32
    %c0_i32_0 = arith.constant 0 : i32
    return %arg0, %c0_i32 : i32, i32
  }
  func.func @transform_3(%arg0: i32, %arg1: i32, %arg2: memref<8xi32, #tpu.memory_space<smem>>, %arg3: memref<4xi32, #tpu.memory_space<smem>>) -> (i32, i32) {
    %c0_i32 = arith.constant 0 : i32
    %c0_i32_0 = arith.constant 0 : i32
    return %arg0, %c0_i32 : i32, i32
  }
  func.func @transform_4(%arg0: i32, %arg1: i32, %arg2: memref<8xi32, #tpu.memory_space<smem>>, %arg3: memref<4xi32, #tpu.memory_space<smem>>) -> (i32, i32) {
    %c0_i32 = arith.constant 0 : i32
    %c0_i32_0 = arith.constant 0 : i32
    return %arg0, %c0_i32 : i32, i32
  }
}

module attributes {stable_mosaic.version = 11 : i64} {
  func.func @_gather_reg_kernel(%arg0: i32, %arg1: memref<24xi32, #tpu.memory_space<smem>>, %arg2: memref<640x128xf32, #tpu.memory_space<any>>, %arg3: memref<640x128xf32, #tpu.memory_space<any>>, %arg4: memref<24x128xf32, #tpu.memory_space<vmem>>, %arg5: memref<1x1xf32, #tpu.memory_space<vmem>>, %arg6: memref<24x128xf32, #tpu.memory_space<vmem>>, %arg7: memref<!tpu.dma_semaphore, #tpu.memory_space<semaphore_mem>>, %arg8: memref<!tpu.dma_semaphore, #tpu.memory_space<semaphore_mem>>) attributes {dimension_semantics = [#tpu.dimension_semantics<arbitrary>], iteration_bounds = array<i64: 1>, scalar_prefetch = 1 : i64, scratch_operands = 3 : i64, tpu.core_type = #tpu.core_type<tc>, window_params = [{}, {}, {pipeline_mode = #tpu.pipeline_mode<synchronous>, transform_indices = @transform_2, window_bounds = array<i64: 24, 128>}, {pipeline_mode = #tpu.pipeline_mode<synchronous>, transform_indices = @transform_3, window_bounds = array<i64: 1, 1>}]} {
    %c0_i32 = arith.constant 0 : i32
    %c24_i32 = arith.constant 24 : i32
    %0 = arith.addi %c0_i32, %c24_i32 : i32
    %c1_i32 = arith.constant 1 : i32
    scf.for %arg9 = %c0_i32 to %0 step %c1_i32  : i32 {
      %11 = arith.index_cast %arg9 : i32 to index
      %12 = memref.load %arg1[%11] : memref<24xi32, #tpu.memory_space<smem>>
      %c0_i32_9 = arith.constant 0 : i32
      %13 = tpu.memref_slice %arg2[%12, %c0_i32_9] : memref<640x128xf32, #tpu.memory_space<any>> -> memref<1x128xf32, #tpu.memory_space<any>>
      %c0_i32_10 = arith.constant 0 : i32
      %14 = tpu.memref_slice %arg4[%arg9, %c0_i32_10] : memref<24x128xf32, #tpu.memory_space<vmem>> -> memref<1x128xf32, #tpu.memory_space<vmem>>
      tpu.enqueue_dma source(%13 : memref<1x128xf32, #tpu.memory_space<any>>) target(%14 : memref<1x128xf32, #tpu.memory_space<vmem>>) target_semaphore(%arg7 : memref<!tpu.dma_semaphore, #tpu.memory_space<semaphore_mem>>)
      %c0_i32_11 = arith.constant 0 : i32
      %15 = tpu.memref_slice %arg3[%12, %c0_i32_11] : memref<640x128xf32, #tpu.memory_space<any>> -> memref<1x128xf32, #tpu.memory_space<any>>
      %c0_i32_12 = arith.constant 0 : i32
      %16 = tpu.memref_slice %arg6[%arg9, %c0_i32_12] : memref<24x128xf32, #tpu.memory_space<vmem>> -> memref<1x128xf32, #tpu.memory_space<vmem>>
      tpu.enqueue_dma source(%15 : memref<1x128xf32, #tpu.memory_space<any>>) target(%16 : memref<1x128xf32, #tpu.memory_space<vmem>>) target_semaphore(%arg8 : memref<!tpu.dma_semaphore, #tpu.memory_space<semaphore_mem>>)
    }
    %c24_i32_0 = arith.constant 24 : i32
    %c0_i32_1 = arith.constant 0 : i32
    %c24_i32_2 = arith.constant 24 : i32
    %1 = arith.addi %c0_i32_1, %c24_i32_2 : i32
    %c1_i32_3 = arith.constant 1 : i32
    scf.for %arg9 = %c0_i32_1 to %1 step %c1_i32_3  : i32 {
      %c0_i32_9 = arith.constant 0 : i32
      %c0_i32_10 = arith.constant 0 : i32
      %11 = tpu.memref_slice %arg2[%c0_i32_9, %c0_i32_10] : memref<640x128xf32, #tpu.memory_space<any>> -> memref<1x128xf32, #tpu.memory_space<any>>
      %c0_i32_11 = arith.constant 0 : i32
      %12 = tpu.memref_slice %arg4[%arg9, %c0_i32_11] : memref<24x128xf32, #tpu.memory_space<vmem>> -> memref<1x128xf32, #tpu.memory_space<vmem>>
      tpu.wait_dma2 semaphore(%arg7 : memref<!tpu.dma_semaphore, #tpu.memory_space<semaphore_mem>>) src(%11 : memref<1x128xf32, #tpu.memory_space<any>>) dst(%12 : memref<1x128xf32, #tpu.memory_space<vmem>>)
      %c0_i32_12 = arith.constant 0 : i32
      %c0_i32_13 = arith.constant 0 : i32
      %13 = tpu.memref_slice %arg3[%c0_i32_12, %c0_i32_13] : memref<640x128xf32, #tpu.memory_space<any>> -> memref<1x128xf32, #tpu.memory_space<any>>
      %c0_i32_14 = arith.constant 0 : i32
      %14 = tpu.memref_slice %arg6[%arg9, %c0_i32_14] : memref<24x128xf32, #tpu.memory_space<vmem>> -> memref<1x128xf32, #tpu.memory_space<vmem>>
      tpu.wait_dma2 semaphore(%arg8 : memref<!tpu.dma_semaphore, #tpu.memory_space<semaphore_mem>>) src(%13 : memref<1x128xf32, #tpu.memory_space<any>>) dst(%14 : memref<1x128xf32, #tpu.memory_space<vmem>>)
    }
    %c24_i32_4 = arith.constant 24 : i32
    %c0 = arith.constant 0 : index
    %c0_5 = arith.constant 0 : index
    %2 = vector.load %arg6[%c0, %c0_5] : memref<24x128xf32, #tpu.memory_space<vmem>>, vector<24x128xf32>
    %3 = arith.mulf %2, %2 : vector<24x128xf32>
    %4 = vector.shape_cast %3 : vector<24x128xf32> to vector<1x24x128xf32>
    %cst = arith.constant dense<0.000000e+00> : vector<1xf32>
    %5 = vector.multi_reduction <add>, %4, %cst [1, 2] : vector<1x24x128xf32> to vector<1xf32>
    %6 = vector.shape_cast %5 : vector<1xf32> to vector<1x1x1xf32>
    %7 = vector.extract %6[0, 0, 0] : f32 from vector<1x1x1xf32>
    %cst_6 = arith.constant 1.250000e-01 : f32
    %8 = arith.mulf %7, %cst_6 : f32
    %9 = vector.broadcast %8 : f32 to vector<1x1xf32>
    %c0_7 = arith.constant 0 : index
    %c0_8 = arith.constant 0 : index
    %10 = vector.load %arg5[%c0_7, %c0_8] : memref<1x1xf32, #tpu.memory_space<vmem>>, vector<1x1xf32>
    tpu.vector_store %arg5[%c0_7, %c0_8], %9 {strides = array<i32>} : memref<1x1xf32, #tpu.memory_space<vmem>>, vector<1x1xf32>,
    return
  }
  func.func @transform_2(%arg0: i32, %arg1: memref<24xi32, #tpu.memory_space<smem>>) -> (i32, i32) {
    %c0_i32 = arith.constant 0 : i32
    %c0_i32_0 = arith.constant 0 : i32
    %c0_i32_1 = arith.constant 0 : i32
    return %c0_i32, %c0_i32_0 : i32, i32
  }
  func.func @transform_3(%arg0: i32, %arg1: memref<24xi32, #tpu.memory_space<smem>>) -> (i32, i32) {
    %c0_i32 = arith.constant 0 : i32
    %c0_i32_0 = arith.constant 0 : i32
    %c0_i32_1 = arith.constant 0 : i32
    return %c0_i32, %c0_i32_0 : i32, i32
  }
}

</mosaic_0001>

<llo_original>
// kernel: lightgcn_forward.7
$region0: #{lightgcn_forward.7}
  #allocation0 [shape = 'u32[]', space=smem, size = 0x4, offset = 0x4, fixed_abs, tag = 'smem constant byte address 0x4 - core index']
  #allocation1 [shape = 'u32[144,128]{1,0:T(1,128)}', space=vmem, size = 0x12000, scoped, tag = 'internal scratch']
  #allocation2 [shape = 'f32[24,128]{1,0:T(8,128)}', space=vmem, size = 0x3000, scoped, tag = 'scratch operand']
  #allocation3 [shape = 's32[1]{0}', space=sflag, size = 0x4, scoped, tag = 'scratch operand']
  #allocation4 [shape = 's32[1]{0}', space=sflag, size = 0x4, scoped, tag = 'scratch operand']
  #allocation5 [shape = 's32[1]{0}', space=sflag, size = 0x4, scoped, tag = 'scoped memory for lightgcn_forward.7']
  #allocation6 [shape = 'u8[512]{0}', space=smem, size = 0x200, scoped, tag = 'prefetched SMEM operand 0']
  #allocation9 [shape = 's32[]', space=sflag, size = 0x4, offset = 0, fixed_abs, tag = 'sflag constant byte address 0x0 - dummy sync flag']
  #allocation10 [shape = 's32[]', space=sflag, size = 0x4, offset = 0, fixed_abs, tag = 'sflag constant byte address 0x0 - dummy sync flag']
  %s0 = inlined_call_operand.vmem [shape: s32[24], index: 0, kind: input, shape index: {}]
  %s1 = inlined_call_operand.vmem [shape: f32[640,128], index: 1, kind: input, shape index: {}]
  %s2 = inlined_call_operand.vmem [shape: f32[640,128], index: 2, kind: input, shape index: {}]
  %s3 = inlined_call_operand.vmem [shape: f32[24,128], index: 3, kind: output, shape index: {0}]
  %s4 = inlined_call_operand.hbm [shape: f32[1,1], index: 4, kind: output, shape index: {1}]
  %5 = xla_tuple %s3, %s4
  %s6 = sld [smem:[#allocation0]]
  $region92: #{lightgcn_forward.7} parent=0
    _
  %s8 = ssub.s32 1, %s6
  %s9 = scalar_select 0, %s8, %s6
  %s10 = sshll.u32 %s0, 4
  %s11 = int_to_ptr.vmem [resolvable:$true] %s10
  %13 = dma.vmem_to_smem %s11, 16, [#allocation6], [#allocation5]
  %14 = dma.done [#allocation5], 16
  %15 = sfence
  $region1: #{lightgcn_forward.7} parent=0
    #allocation7 [shape = 'u8[512]{0}', space=vmem, size = 0x400, scoped, tag = 'output window, operand 1, single buffered']
    #allocation8 [shape = 's32[1]{0}', space=sflag, size = 0x4, scoped, tag = 'scoped memory for lightgcn_forward.7']
    %16 = vsyncpa [#allocation8], 0
    loop: start=0, step=1, limit=24
    $region2: #{lightgcn_forward.7} parent=1 // loop_pre_header
      _
    $region3: #{lightgcn_forward.7} parent=1 // loop_header
      %s18 = sphi 0, %s22
      %p19 = scmp.ge.s32.totalorder %s18, 24
    $region4: #{lightgcn_forward.7} parent=1 // loop_header_branch
      %21 = sbr.rel (%p19) target = $region8
    $region5: #{lightgcn_forward.7} parent=1 // loop_body
      %s23 = sld [smem:[#allocation6 + %s18]]
      %s24 = scalar_lea.vmem %s1, %s23
      %s25 = scalar_lea.vmem %s3, %s18
      %p27 = scmp.lt.u32.totalorder 1, 8
      %p28 = pneg %p27
      // Predicated region
      $region9: #{lightgcn_forward.7} parent=5 // pred_check
        _
      $region10: #{lightgcn_forward.7} parent=5 // pred_check_branch
        %30 = sbr.rel (%p27) target = $region12
      $region11: #{lightgcn_forward.7} parent=5 // pred_region
        %s45 = sand.u32 1, 7
        %p46 = scmp.eq.s32.totalorder %s45, 0
        %p47 = pneg %p46
        // Predicated region
        $region24: #{lightgcn_forward.7} parent=11 // pred_check
          _
        $region25: #{lightgcn_forward.7} parent=11 // pred_check_branch
          %49 = sbr.rel (%p46) target = $region27
        $region26: #{lightgcn_forward.7} parent=11 // pred_region
          %s50 = sand.u32 1, 7
          %s51 = ssub.s32 1, %s50
          %s52 = scalar_lea.vmem %s24, %s51
          %s53 = ssub.s32 1, %s50
          %s54 = scalar_lea.vmem %s25, %s53
          %s55 = sshllo.u32 0, %s50
          loop: start=0, step=1, limit=1
          $region28: #{lightgcn_forward.7} parent=26 // loop_pre_header
            _
          $region29: #{lightgcn_forward.7} parent=26 // loop_header
            %s57 = sphi 0, %s61
            %p58 = scmp.ge.s32.totalorder %s57, 1
            %s62 = sphi %s52, %s52
            %s63 = sphi %s54, %s54
          $region30: #{lightgcn_forward.7} parent=26 // loop_header_branch
            %60 = sbr.rel (%p58) target = $region34
          $region31: #{lightgcn_forward.7} parent=26 // loop_body
            %v64 = vld [vmem:[%s62] sm:%s55]
            %65 = vst [vmem:[%s63] sm:%s55] %v64
          $region32: #{lightgcn_forward.7} parent=26 // loop_footer
            %s61 = sadd.s32 1, %s57
          $region33: #{lightgcn_forward.7} parent=26 // loop_footer_branch
            %56 = sbr.rel target = $region29
          $region34: #{lightgcn_forward.7} parent=26 // loop_exit
            _
        $region27: #{lightgcn_forward.7} parent=11 // pred_fallthru
          _
      $region12: #{lightgcn_forward.7} parent=5 // pred_fallthru
        _
      // Predicated region
      $region13: #{lightgcn_forward.7} parent=5 // pred_check
        %p31 = pneg %p27
      $region14: #{lightgcn_forward.7} parent=5 // pred_check_branch
        %33 = sbr.rel (%p31) target = $region16
      $region15: #{lightgcn_forward.7} parent=5 // pred_region
        %s34 = sshllo.u32 0, 1
        loop: start=0, step=1, limit=1
        $region17: #{lightgcn_forward.7} parent=15 // loop_pre_header
          _
        $region18: #{lightgcn_forward.7} parent=15 // loop_header
          %s36 = sphi 0, %s40
          %p37 = scmp.ge.s32.totalorder %s36, 1
          %s41 = sphi %s24, %s24
          %s42 = sphi %s25, %s25
        $region19: #{lightgcn_forward.7} parent=15 // loop_header_branch
          %39 = sbr.rel (%p37) target = $region23
        $region20: #{lightgcn_forward.7} parent=15 // loop_body
          %v43 = vld [vmem:[%s41] sm:%s34]
          %44 = vst [vmem:[%s42] sm:%s34] %v43
        $region21: #{lightgcn_forward.7} parent=15 // loop_footer
          %s40 = sadd.s32 1, %s36
        $region22: #{lightgcn_forward.7} parent=15 // loop_footer_branch
          %35 = sbr.rel target = $region18
        $region23: #{lightgcn_forward.7} parent=15 // loop_exit
          _
      $region16: #{lightgcn_forward.7} parent=5 // pred_fallthru
        _
      // Predicated region
      $region35: #{lightgcn_forward.7} parent=5 // pred_check
        _
      $region36: #{lightgcn_forward.7} parent=5 // pred_check_branch
        %68 = sbr.rel (0) target = $region38
      $region37: #{lightgcn_forward.7} parent=5 // pred_region
        %69 = vsyncadd [#allocation3], 16
      $region38: #{lightgcn_forward.7} parent=5 // pred_fallthru
        _
      %s70 = scalar_lea.vmem %s2, %s23
      %s71 = scalar_lea.vmem [#allocation2], %s18
      %p73 = scmp.lt.u32.totalorder 1, 8
      %p74 = pneg %p73
      // Predicated region
      $region39: #{lightgcn_forward.7} parent=5 // pred_check
        _
      $region40: #{lightgcn_forward.7} parent=5 // pred_check_branch
        %76 = sbr.rel (%p73) target = $region42
      $region41: #{lightgcn_forward.7} parent=5 // pred_region
        %s91 = sand.u32 1, 7
        %p92 = scmp.eq.s32.totalorder %s91, 0
        %p93 = pneg %p92
        // Predicated region
        $region54: #{lightgcn_forward.7} parent=41 // pred_check
          _
        $region55: #{lightgcn_forward.7} parent=41 // pred_check_branch
          %95 = sbr.rel (%p92) target = $region57
        $region56: #{lightgcn_forward.7} parent=41 // pred_region
          %s96 = sand.u32 1, 7
          %s97 = ssub.s32 1, %s96
          %s98 = scalar_lea.vmem %s70, %s97
          %s99 = ssub.s32 1, %s96
          %s100 = scalar_lea.vmem %s71, %s99 [#allocation2]
          %s101 = sshllo.u32 0, %s96
          loop: start=0, step=1, limit=1
          $region58: #{lightgcn_forward.7} parent=56 // loop_pre_header
            _
          $region59: #{lightgcn_forward.7} parent=56 // loop_header
            %s103 = sphi 0, %s107
            %p104 = scmp.ge.s32.totalorder %s103, 1
            %s108 = sphi %s98, %s98
            %s109 = sphi %s100, %s100
          $region60: #{lightgcn_forward.7} parent=56 // loop_header_branch
            %106 = sbr.rel (%p104) target = $region64
          $region61: #{lightgcn_forward.7} parent=56 // loop_body
            %v110 = vld [vmem:[%s108] sm:%s101]
            %111 = vst [vmem:[%s109] sm:%s101] %v110
          $region62: #{lightgcn_forward.7} parent=56 // loop_footer
            %s107 = sadd.s32 1, %s103
          $region63: #{lightgcn_forward.7} parent=56 // loop_footer_branch
            %102 = sbr.rel target = $region59
          $region64: #{lightgcn_forward.7} parent=56 // loop_exit
            _
        $region57: #{lightgcn_forward.7} parent=41 // pred_fallthru
          _
      $region42: #{lightgcn_forward.7} parent=5 // pred_fallthru
        _
      // Predicated region
      $region43: #{lightgcn_forward.7} parent=5 // pred_check
        %p77 = pneg %p73
      $region44: #{lightgcn_forward.7} parent=5 // pred_check_branch
        %79 = sbr.rel (%p77) target = $region46
      $region45: #{lightgcn_forward.7} parent=5 // pred_region
        %s80 = sshllo.u32 0, 1
        loop: start=0, step=1, limit=1
        $region47: #{lightgcn_forward.7} parent=45 // loop_pre_header
          _
        $region48: #{lightgcn_forward.7} parent=45 // loop_header
          %s82 = sphi 0, %s86
          %p83 = scmp.ge.s32.totalorder %s82, 1
          %s87 = sphi %s70, %s70
          %s88 = sphi %s71, %s71
        $region49: #{lightgcn_forward.7} parent=45 // loop_header_branch
          %85 = sbr.rel (%p83) target = $region53
        $region50: #{lightgcn_forward.7} parent=45 // loop_body
          %v89 = vld [vmem:[%s87] sm:%s80]
          %90 = vst [vmem:[%s88] sm:%s80] %v89
        $region51: #{lightgcn_forward.7} parent=45 // loop_footer
          %s86 = sadd.s32 1, %s82
        $region52: #{lightgcn_forward.7} parent=45 // loop_footer_branch
          %81 = sbr.rel target = $region48
        $region53: #{lightgcn_forward.7} parent=45 // loop_exit
          _
      $region46: #{lightgcn_forward.7} parent=5 // pred_fallthru
        _
      // Predicated region
      $region65: #{lightgcn_forward.7} parent=5 // pred_check
        _
      $region66: #{lightgcn_forward.7} parent=5 // pred_check_branch
        %114 = sbr.rel (0) target = $region68
      $region67: #{lightgcn_forward.7} parent=5 // pred_region
        %115 = vsyncadd [#allocation4], 16
      $region68: #{lightgcn_forward.7} parent=5 // pred_fallthru
        _
    $region6: #{lightgcn_forward.7} parent=1 // loop_footer
      %s22 = sadd.s32 1, %s18
    $region7: #{lightgcn_forward.7} parent=1 // loop_footer_branch
      %17 = sbr.rel target = $region3
    $region8: #{lightgcn_forward.7} parent=1 // loop_exit
      _
    loop: start=0, step=1, limit=24
    $region69: #{lightgcn_forward.7} parent=1 // loop_pre_header
      _
    $region70: #{lightgcn_forward.7} parent=1 // loop_header
      %s117 = sphi 0, %s121
      %p118 = scmp.ge.s32.totalorder %s117, 24
    $region71: #{lightgcn_forward.7} parent=1 // loop_header_branch
      %120 = sbr.rel (%p118) target = $region75
    $region72: #{lightgcn_forward.7} parent=1 // loop_body
      %s122 = smul.u32 1, 1
      %s123 = sshll.u32 %s122, 4
      %124 = dma.done [#allocation3], %s123
      %s125 = sshll.u32 %s122, 4
      %126 = dma.done [#allocation4], %s125
    $region73: #{lightgcn_forward.7} parent=1 // loop_footer
      %s121 = sadd.s32 1, %s117
    $region74: #{lightgcn_forward.7} parent=1 // loop_footer_branch
      %116 = sbr.rel target = $region70
    $region75: #{lightgcn_forward.7} parent=1 // loop_exit
      _
    %v127 = vld [vmem:[#allocation2] sm:$0xff]
    %v128 = vld [vmem:[#allocation2 + $0x8] sm:$0xff]
    %v129 = vld [vmem:[#allocation2 + $0x10] sm:$0xff]
    %v130 = vmul.f32 %v127, %v127
    %v131 = vmul.f32 %v128, %v128
    %v132 = vmul.f32 %v129, %v129
    %v133 = vadd.f32 %v130, %v131
    %v134 = vadd.f32 %v133, %v132
    %135 = vadd.xlane.f32.xlu0 %v134
    %v136 = vpop.xlane.xlu0 %135
    %v137 = vrot.slane %v136, 4
    %v138 = vadd.f32 %v136, %v137
    %v139 = vrot.slane %v138, 2
    %v140 = vadd.f32 %v138, %v139
    %v141 = vrot.slane %v140, 1
    %v142 = vadd.f32 %v140, %v141
    %s143 = vtos %v142
    %s144 = smul.f32 %s143, 0.125
    %v145 = vstv %s144
    %vm146 = vcmask 0
    %147 = vst.msk [vmem:[#allocation7] sm:$0x1] %vm146, %v145
    // Predicated region
    $region76: #{lightgcn_forward.7} parent=1 // pred_check
      _
    $region77: #{lightgcn_forward.7} parent=1 // pred_check_branch
      %149 = sbr.rel (0) target = $region79
    $region78: #{lightgcn_forward.7} parent=1 // pred_region
      _
    $region79: #{lightgcn_forward.7} parent=1 // pred_fallthru
      _
    // Predicated region
    $region80: #{lightgcn_forward.7} parent=1 // pred_check
      _
    $region81: #{lightgcn_forward.7} parent=1 // pred_check_branch
      %151 = sbr.rel (0) target = $region83
    $region82: #{lightgcn_forward.7} parent=1 // pred_region
      %s153 = ssub.s32 16, 16
      %154 = vsyncadd [#allocation8], %s153
      %s156 = sshll.u32 [#allocation7], 4
      %s157 = int_to_ptr.vmem [resolvable:$true] %s156
      %159 = dma.vmem_to_hbm [thread:$0]  %s157, 16, %s4, [#allocation8]
    $region83: #{lightgcn_forward.7} parent=1 // pred_fallthru
      _
    // Predicated region
    $region84: #{lightgcn_forward.7} parent=1 // pred_check
      _
    $region85: #{lightgcn_forward.7} parent=1 // pred_check_branch
      %161 = sbr.rel (0) target = $region87
    $region86: #{lightgcn_forward.7} parent=1 // pred_region
      _
    $region87: #{lightgcn_forward.7} parent=1 // pred_fallthru
      _
    // Predicated region
    $region88: #{lightgcn_forward.7} parent=1 // pred_check
      _
    $region89: #{lightgcn_forward.7} parent=1 // pred_check_branch
      %163 = sbr.rel (0) target = $region91
    $region90: #{lightgcn_forward.7} parent=1 // pred_region
      %164 = dma.done [#allocation8], 16
    $region91: #{lightgcn_forward.7} parent=1 // pred_fallthru
      _
    %165 = vsyncpa [#allocation8], 1
  %166 = vsyncmov [#allocation3]
  %s167 = vpop.sfrf %166
  %p168 = scmp.eq.s32.totalorder %s167, 0
  %p169 = pneg %p168
  %171 = shalt.err (%p169)
  %172 = vsyncmov [#allocation4]
  %s173 = vpop.sfrf %172
  %p174 = scmp.eq.s32.totalorder %s173, 0
  %p175 = pneg %p174
  %177 = shalt.err (%p175)

// kernel: lightgcn_forward.4
$region0: #{lightgcn_forward.4}
  #allocation0 [shape = 'u32[]', space=smem, size = 0x4, offset = 0x4, fixed_abs, tag = 'smem constant byte address 0x4 - core index']
  #allocation1 [shape = 'u32[144,128]{1,0:T(1,128)}', space=vmem, size = 0x12000, scoped, tag = 'internal scratch']
  #allocation2 [shape = 'f32[256,128]{1,0:T(8,128)}', space=vmem, size = 0x20000, scoped, tag = 'scratch operand']
  #allocation3 [shape = 's32[1]{0}', space=sflag, size = 0x4, scoped, tag = 'scoped memory for lightgcn_forward.4']
  #allocation4 [shape = 'u8[512]{0}', space=smem, size = 0x200, scoped, tag = 'prefetched SMEM operand 0']
  #allocation5 [shape = 'u8[512]{0}', space=smem, size = 0x200, scoped, tag = 'prefetched SMEM operand 1']
  %s0 = inlined_call_operand.vmem [shape: s32[8], index: 0, kind: input, shape index: {}]
  %s1 = inlined_call_operand.vmem [shape: s32[4], index: 1, kind: input, shape index: {}]
  %s2 = inlined_call_operand.vmem [shape: bf16[1024,1024], index: 2, kind: input, shape index: {}]
  %s3 = inlined_call_operand.vmem [shape: bf16[1024,128], index: 3, kind: input, shape index: {}]
  %s4 = inlined_call_operand.vmem [shape: f32[1024,128], index: 4, kind: input, shape index: {}, may-alias: {4,6}]
  %s5 = inlined_call_operand.vmem [shape: bf16[1024,128], index: 5, kind: output, shape index: {0}]
  %s6 = inlined_call_operand.vmem [shape: f32[1024,128], index: 6, kind: output, shape index: {1}, may-alias: {4,6}]
  %7 = xla_tuple %s5, %s6
  %s8 = sld [smem:[#allocation0]]
  $region88: #{lightgcn_forward.4} parent=0
    _
  %s10 = ssub.s32 1, %s8
  %s11 = scalar_select 0, %s10, %s8
  %s12 = sshll.u32 %s0, 4
  %s13 = int_to_ptr.vmem [resolvable:$true] %s12
  %15 = dma.vmem_to_smem %s13, 16, [#allocation4], [#allocation3]
  %s16 = sshll.u32 %s1, 4
  %s17 = int_to_ptr.vmem [resolvable:$true] %s16
  %19 = dma.vmem_to_smem %s17, 16, [#allocation5], [#allocation3]
  %20 = dma.done [#allocation3], 32
  %21 = sfence
  $region1: #{lightgcn_forward.4} parent=0
    #allocation6 [shape = 'u8[524288]{0}', space=vmem, size = 0x80000, scoped, tag = 'input window, operand 2']
    loop: start=0, step=1, limit=10
    $region2: #{lightgcn_forward.4} parent=1 // loop_pre_header
      _
    $region3: #{lightgcn_forward.4} parent=1 // loop_header
      %s23 = sphi 0, %s27
      %p24 = scmp.ge.s32.totalorder %s23, 10
      %s30 = sphi 0, %s42
      %s31 = sphi 0, %s38
      %s32 = sphi 0, %s30
      %s33 = sphi 0, %s31
      %s34 = sphi 0, %s32
      %s35 = sphi 0, %s33
      %s53 = sphi 0, %s55
      %s56 = sphi 0, %s53
      %s57 = sphi 0, %s56
      %s73 = sphi 0, %s57
      %s77 = sphi 0, %s77
      %s79 = sphi 0, %s77
      %s80 = sphi 0, %s79
      %s94 = sphi 0, %s80
      %s100 = sphi 0, %s102
      %s103 = sphi 0, %s100
      %s104 = sphi 0, %s103
      %s120 = sphi 0, %s104
      %s126 = sphi 0, %s128
      %s129 = sphi 0, %s126
      %s130 = sphi 0, %s129
      %s146 = sphi 0, %s130
      %s152 = sphi 0, %s154
      %s155 = sphi 0, %s152
      %s156 = sphi 0, %s155
      %s172 = sphi 0, %s156
    $region4: #{lightgcn_forward.4} parent=1 // loop_header_branch
      %26 = sbr.rel (%p24) target = $region8
    $region5: #{lightgcn_forward.4} parent=1 // loop_body
      %s28 = ssub.s32 %s23, 1
      %s29 = ssub.s32 %s23, 2
      %s36 = sadd.s32 1, %s31
      %p37 = scmp.ge.s32.totalorder %s36, 2
      %s38 = scalar_select %p37, 0, %s36
      %s39 = sadd.s32 1, %s30
      %s40 = scalar_select %p37, %s39, %s30
      %p41 = scmp.ge.s32.totalorder %s40, 4
      %s42 = scalar_select %p41, 0, %s40
      %s43 = smul.u32 %s30, 2
      %s44 = sadd.s32 %s43, %s31
      %s45 = sld [smem:[#allocation4 + %s44]]
      %s46 = smul.u32 %s42, 2
      %s47 = sadd.s32 %s46, %s38
      %s48 = sld [smem:[#allocation4 + %s47]]
      %s49 = ssub.s32 %s30, %s42
      %s50 = ssub.s32 %s45, %s48
      %s51 = sor.u32 %s49, %s50
      %p52 = scmp.eq.s32.totalorder %s51, 0
      %s54 = sadd.s32 %s53, 1
      %s55 = scalar_select %p52, %s53, %s54
      %p58 = pneg %p52
      %p59 = scmp.eq.s32.totalorder %s23, 7
      %p60 = por %p58, %p59
      %p61 = scmp.ne.s32.totalorder %s53, %s56
      %p62 = scmp.eq.s32.totalorder %s23, 0
      %p63 = por %p61, %p62
      %p64 = scmp.ne.s32.totalorder %s53, %s56
      %p65 = scmp.eq.s32.totalorder %s28, 7
      %p66 = por %p64, %p65
      %p67 = scmp.ne.s32.totalorder %s56, %s57
      %p68 = scmp.eq.s32.totalorder %s28, 0
      %p69 = por %p67, %p68
      %p70 = scmp.ne.s32.totalorder %s56, %s57
      %p71 = scmp.eq.s32.totalorder %s29, 7
      %p72 = por %p70, %p71
      %p74 = scmp.ne.s32.totalorder %s57, %s73
      %p75 = scmp.eq.s32.totalorder %s29, 0
      %p76 = por %p74, %p75
      %s78 = sadd.s32 %s77, 1
      %p81 = scmp.eq.s32.totalorder %s23, 7
      %p82 = scmp.ne.s32.totalorder %s77, %s79
      %p83 = scmp.eq.s32.totalorder %s23, 0
      %p84 = por %p82, %p83
      %p85 = scmp.ne.s32.totalorder %s77, %s79
      %p86 = scmp.eq.s32.totalorder %s28, 7
      %p87 = por %p85, %p86
      %p88 = scmp.ne.s32.totalorder %s79, %s80
      %p89 = scmp.eq.s32.totalorder %s28, 0
      %p90 = por %p88, %p89
      %p91 = scmp.ne.s32.totalorder %s79, %s80
      %p92 = scmp.eq.s32.totalorder %s29, 7
      %p93 = por %p91, %p92
      %p95 = scmp.ne.s32.totalorder %s80, %s94
      %p96 = scmp.eq.s32.totalorder %s29, 0
      %p97 = por %p95, %p96
      %s98 = ssub.s32 %s30, %s42
      %p99 = scmp.eq.s32.totalorder %s98, 0
      %s101 = sadd.s32 %s100, 1
      %s102 = scalar_select %p99, %s100, %s101
      %p105 = pneg %p99
      %p106 = scmp.eq.s32.totalorder %s23, 7
      %p107 = por %p105, %p106
      %p108 = scmp.ne.s32.totalorder %s100, %s103
      %p109 = scmp.eq.s32.totalorder %s23, 0
      %p110 = por %p108, %p109
      %p111 = scmp.ne.s32.totalorder %s100, %s103
      %p112 = scmp.eq.s32.totalorder %s28, 7
      %p113 = por %p111, %p112
      %p114 = scmp.ne.s32.totalorder %s103, %s104
      %p115 = scmp.eq.s32.totalorder %s28, 0
      %p116 = por %p114, %p115
      %p117 = scmp.ne.s32.totalorder %s103, %s104
      %p118 = scmp.eq.s32.totalorder %s29, 7
      %p119 = por %p117, %p118
      %p121 = scmp.ne.s32.totalorder %s104, %s120
      %p122 = scmp.eq.s32.totalorder %s29, 0
      %p123 = por %p121, %p122
      %s124 = ssub.s32 %s30, %s42
      %p125 = scmp.eq.s32.totalorder %s124, 0
      %s127 = sadd.s32 %s126, 1
      %s128 = scalar_select %p125, %s126, %s127
      %p131 = pneg %p125
      %p132 = scmp.eq.s32.totalorder %s23, 7
      %p133 = por %p131, %p132
      %p134 = scmp.ne.s32.totalorder %s126, %s129
      %p135 = scmp.eq.s32.totalorder %s23, 0
      %p136 = por %p134, %p135
      %p137 = scmp.ne.s32.totalorder %s126, %s129
      %p138 = scmp.eq.s32.totalorder %s28, 7
      %p139 = por %p137, %p138
      %p140 = scmp.ne.s32.totalorder %s129, %s130
      %p141 = scmp.eq.s32.totalorder %s28, 0
      %p142 = por %p140, %p141
      %p143 = scmp.ne.s32.totalorder %s129, %s130
      %p144 = scmp.eq.s32.totalorder %s29, 7
      %p145 = por %p143, %p144
      %p147 = scmp.ne.s32.totalorder %s130, %s146
      %p148 = scmp.eq.s32.totalorder %s29, 0
      %p149 = por %p147, %p148
      %s150 = ssub.s32 %s30, %s42
      %p151 = scmp.eq.s32.totalorder %s150, 0
      %s153 = sadd.s32 %s152, 1
      %s154 = scalar_select %p151, %s152, %s153
      %p157 = pneg %p151
      %p158 = scmp.eq.s32.totalorder %s23, 7
      %p159 = por %p157, %p158
      %p160 = scmp.ne.s32.totalorder %s152, %s155
      %p161 = scmp.eq.s32.totalorder %s23, 0
      %p162 = por %p160, %p161
      %p163 = scmp.ne.s32.totalorder %s152, %s155
      %p164 = scmp.eq.s32.totalorder %s28, 7
      %p165 = por %p163, %p164
      %p166 = scmp.ne.s32.totalorder %s155, %s156
      %p167 = scmp.eq.s32.totalorder %s28, 0
      %p168 = por %p166, %p167
      %p169 = scmp.ne.s32.totalorder %s155, %s156
      %p170 = scmp.eq.s32.totalorder %s29, 7
      %p171 = por %p169, %p170
      %p173 = scmp.ne.s32.totalorder %s156, %s172
      %p174 = scmp.eq.s32.totalorder %s29, 0
      %p175 = por %p173, %p174
      %p176 = scmp.le.s32.totalorder 1, %s23
      %p177 = scmp.lt.s32.totalorder %s23, 9
      %p178 = pnand %p176, %p177
      %p179 = pneg %p178
      // Predicated region
      $region9: #{lightgcn_forward.4} parent=5 // pred_check
        _
      $region10: #{lightgcn_forward.4} parent=5 // pred_check_branch
        %181 = sbr.rel (%p178) target = $region12
      $region11: #{lightgcn_forward.4} parent=5 // pred_region
        %s182 = ssub.s32 %s23, 1
        // Predicated region
        $region13: #{lightgcn_forward.4} parent=11 // pred_check
          %p183 = pneg %p90
        $region14: #{lightgcn_forward.4} parent=11 // pred_check_branch
          %185 = sbr.rel (%p183) target = $region16
        $region15: #{lightgcn_forward.4} parent=11 // pred_region
          _
        $region16: #{lightgcn_forward.4} parent=11 // pred_fallthru
          _
      $region12: #{lightgcn_forward.4} parent=5 // pred_fallthru
        _
      %p186 = scmp.lt.s32.totalorder %s23, 8
      // Predicated region
      $region17: #{lightgcn_forward.4} parent=5 // pred_check
        %p187 = pneg %p186
      $region18: #{lightgcn_forward.4} parent=5 // pred_check_branch
        %189 = sbr.rel (%p187) target = $region20
      $region19: #{lightgcn_forward.4} parent=5 // pred_region
        // Predicated region
        $region21: #{lightgcn_forward.4} parent=19 // pred_check
          %p190 = pneg %p63
        $region22: #{lightgcn_forward.4} parent=19 // pred_check_branch
          %192 = sbr.rel (%p190) target = $region24
        $region23: #{lightgcn_forward.4} parent=19 // pred_region
          %s193 = sand.u32 %s53, 1
          %s194 = sand.u32 %s53, 1
          %s195 = smul.addr %s194, 512
          %s196 = scalar_lea.vmem [#allocation6], %s195
          %s197 = smul.u32 %s30, 2
          %s198 = sadd.s32 %s197, %s31
          %s199 = sld [smem:[#allocation4 + %s198]]
          %s200 = smul.u32 32, %s30
          %s201 = smul.u32 4, %s199
          %s202 = smul.addr %s200, 8
          %s203 = sadd.s32 %s201, %s202
          %s204 = smul.addr %s203, 4
          %s205 = scalar_lea.vmem %s2, %s204
          // Predicated region
          $region25: #{lightgcn_forward.4} parent=23 // pred_check
            _
          $region26: #{lightgcn_forward.4} parent=23 // pred_check_branch
            %207 = sbr.rel (0) target = $region28
          $region27: #{lightgcn_forward.4} parent=23 // pred_region
            // Predicated region
            $region29: #{lightgcn_forward.4} parent=27 // pred_check
              _
            $region30: #{lightgcn_forward.4} parent=27 // pred_check_branch
              %209 = sbr.rel (0) target = $region32
            $region31: #{lightgcn_forward.4} parent=27 // pred_region
              loop: start=0, step=1, limit=1
              $region33: #{lightgcn_forward.4} parent=31 // loop_pre_header
                _
              $region34: #{lightgcn_forward.4} parent=31 // loop_header
                %s211 = sphi 0, %s215
                %p212 = scmp.ge.s32.totalorder %s211, 1
                %s216 = sphi %s205, %s205
                %s217 = sphi %s196, %s196
              $region35: #{lightgcn_forward.4} parent=31 // loop_header_branch
                %214 = sbr.rel (%p212) target = $region39
              $region36: #{lightgcn_forward.4} parent=31 // loop_body
                %v218 = vld [vmem:[%s216] sm:$0xff]
                %219 = vst [vmem:[%s217] sm:$0xff] %v218
                %v220 = vld [vmem:[%s216 + $0x8] sm:$0xff]
                %221 = vst [vmem:[%s217 + $0x8] sm:$0xff] %v220
                %v222 = vld [vmem:[%s216 + $0x20] sm:$0xff]
                %223 = vst [vmem:[%s217 + $0x10] sm:$0xff] %v222
                %v224 = vld [vmem:[%s216 + $0x28] sm:$0xff]
                %225 = vst [vmem:[%s217 + $0x18] sm:$0xff] %v224
                %v226 = vld [vmem:[%s216 + $0x40] sm:$0xff]
                %227 = vst [vmem:[%s217 + $0x20] sm:$0xff] %v226
                %v228 = vld [vmem:[%s216 + $0x48] sm:$0xff]
                %229 = vst [vmem:[%s217 + $0x28] sm:$0xff] %v228
                %v230 = vld [vmem:[%s216 + $0x60] sm:$0xff]
                %231 = vst [vmem:[%s217 + $0x30] sm:$0xff] %v230
                %v232 = vld [vmem:[%s216 + $0x68] sm:$0xff]
                %233 = vst [vmem:[%s217 + $0x38] sm:$0xff] %v232
                %v234 = vld [vmem:[%s216 + $0x80] sm:$0xff]
                %235 = vst [vmem:[%s217 + $0x40] sm:$0xff] %v234
                %v236 = vld [vmem:[%s216 + $0x88] sm:$0xff]
                %237 = vst [vmem:[%s217 + $0x48] sm:$0xff] %v236
                %v238 = vld [vmem:[%s216 + $0xa0] sm:$0xff]
                %239 = vst [vmem:[%s217 + $0x50] sm:$0xff] %v238
                %v240 = vld [vmem:[%s216 + $0xa8] sm:$0xff]
                %241 = vst [vmem:[%s217 + $0x58] sm:$0xff] %v240
                %v242 = vld [vmem:[%s216 + $0xc0] sm:$0xff]
                %243 = vst [vmem:[%s217 + $0x60] sm:$0xff] %v242
                %v244 = vld [vmem:[%s216 + $0xc8] sm:$0xff]
                %245 = vst [vmem:[%s217 + $0x68] sm:$0xff] %v244
                %v246 = vld [vmem:[%s216 + $0xe0] sm:$0xff]
                %247 = vst [vmem:[%s217 + $0x70] sm:$0xff] %v246
                %v248 = vld [vmem:[%s216 + $0xe8] sm:$0xff]
                %249 = vst [vmem:[%s217 + $0x78] sm:$0xff] %v248
                %v250 = vld [vmem:[%s216 + $0x100] sm:$0xff]
                %251 = vst [vmem:[%s217 + $0x80] sm:$0xff] %v250
                %v252 = vld [vmem:[%s216 + $0x108] sm:$0xff]
                %253 = vst [vmem:[%s217 + $0x88] sm:$0xff] %v252
                %v254 = vld [vmem:[%s216 + $0x120] sm:$0xff]
                %255 = vst [vmem:[%s217 + $0x90] sm:$0xff] %v254
                %v256 = vld [vmem:[%s216 + $0x128] sm:$0xff]
                %257 = vst [vmem:[%s217 + $0x98] sm:$0xff] %v256
                %v258 = vld [vmem:[%s216 + $0x140] sm:$0xff]
                %259 = vst [vmem:[%s217 + $0xa0] sm:$0xff] %v258
                %v260 = vld [vmem:[%s216 + $0x148] sm:$0xff]
                %261 = vst [vmem:[%s217 + $0xa8] sm:$0xff] %v260
                %v262 = vld [vmem:[%s216 + $0x160] sm:$0xff]
                %263 = vst [vmem:[%s217 + $0xb0] sm:$0xff] %v262
                %v264 = vld [vmem:[%s216 + $0x168] sm:$0xff]
                %265 = vst [vmem:[%s217 + $0xb8] sm:$0xff] %v264
                %v266 = vld [vmem:[%s216 + $0x180] sm:$0xff]
                %267 = vst [vmem:[%s217 + $0xc0] sm:$0xff] %v266
                %v268 = vld [vmem:[%s216 + $0x188] sm:$0xff]
                %269 = vst [vmem:[%s217 + $0xc8] sm:$0xff] %v268
                %v270 = vld [vmem:[%s216 + $0x1a0] sm:$0xff]
                %271 = vst [vmem:[%s217 + $0xd0] sm:$0xff] %v270
                %v272 = vld [vmem:[%s216 + $0x1a8] sm:$0xff]
                %273 = vst [vmem:[%s217 + $0xd8] sm:$0xff] %v272
                %v274 = vld [vmem:[%s216 + $0x1c0] sm:$0xff]
                %275 = vst [vmem:[%s217 + $0xe0] sm:$0xff] %v274
                %v276 = vld [vmem:[%s216 + $0x1c8] sm:$0xff]
                %277 = vst [vmem:[%s217 + $0xe8] sm:$0xff] %v276
                %v278 = vld [vmem:[%s216 + $0x1e0] sm:$0xff]
                %279 = vst [vmem:[%s217 + $0xf0] sm:$0xff] %v278
                %v280 = vld [vmem:[%s216 + $0x1e8] sm:$0xff]
                %281 = vst [vmem:[%s217 + $0xf8] sm:$0xff] %v280
                %v282 = vld [vmem:[%s216 + $0x200] sm:$0xff]
                %283 = vst [vmem:[%s217 + $0x100] sm:$0xff] %v282
                %v284 = vld [vmem:[%s216 + $0x208] sm:$0xff]
                %285 = vst [vmem:[%s217 + $0x108] sm:$0xff] %v284
                %v286 = vld [vmem:[%s216 + $0x220] sm:$0xff]
                %287 = vst [vmem:[%s217 + $0x110] sm:$0xff] %v286
                %v288 = vld [vmem:[%s216 + $0x228] sm:$0xff]
                %289 = vst [vmem:[%s217 + $0x118] sm:$0xff] %v288
                %v290 = vld [vmem:[%s216 + $0x240] sm:$0xff]
                %291 = vst [vmem:[%s217 + $0x120] sm:$0xff] %v290
                %v292 = vld [vmem:[%s216 + $0x248] sm:$0xff]
                %293 = vst [vmem:[%s217 + $0x128] sm:$0xff] %v292
                %v294 = vld [vmem:[%s216 + $0x260] sm:$0xff]
                %295 = vst [vmem:[%s217 + $0x130] sm:$0xff] %v294
                %v296 = vld [vmem:[%s216 + $0x268] sm:$0xff]
                %297 = vst [vmem:[%s217 + $0x138] sm:$0xff] %v296
                %v298 = vld [vmem:[%s216 + $0x280] sm:$0xff]
                %299 = vst [vmem:[%s217 + $0x140] sm:$0xff] %v298
                %v300 = vld [vmem:[%s216 + $0x288] sm:$0xff]
                %301 = vst [vmem:[%s217 + $0x148] sm:$0xff] %v300
                %v302 = vld [vmem:[%s216 + $0x2a0] sm:$0xff]
                %303 = vst [vmem:[%s217 + $0x150] sm:$0xff] %v302
                %v304 = vld [vmem:[%s216 + $0x2a8] sm:$0xff]
                %305 = vst [vmem:[%s217 + $0x158] sm:$0xff] %v304
                %v306 = vld [vmem:[%s216 + $0x2c0] sm:$0xff]
                %307 = vst [vmem:[%s217 + $0x160] sm:$0xff] %v306
                %v308 = vld [vmem:[%s216 + $0x2c8] sm:$0xff]
                %309 = vst [vmem:[%s217 + $0x168] sm:$0xff] %v308
                %v310 = vld [vmem:[%s216 + $0x2e0] sm:$0xff]
                %311 = vst [vmem:[%s217 + $0x170] sm:$0xff] %v310
                %v312 = vld [vmem:[%s216 + $0x2e8] sm:$0xff]
                %313 = vst [vmem:[%s217 + $0x178] sm:$0xff] %v312
                %v314 = vld [vmem:[%s216 + $0x300] sm:$0xff]
                %315 = vst [vmem:[%s217 + $0x180] sm:$0xff] %v314
                %v316 = vld [vmem:[%s216 + $0x308] sm:$0xff]
                %317 = vst [vmem:[%s217 + $0x188] sm:$0xff] %v316
                %v318 = vld [vmem:[%s216 + $0x320] sm:$0xff]
                %319 = vst [vmem:[%s217 + $0x190] sm:$0xff] %v318
                %v320 = vld [vmem:[%s216 + $0x328] sm:$0xff]
                %321 = vst [vmem:[%s217 + $0x198] sm:$0xff] %v320
                %v322 = vld [vmem:[%s216 + $0x340] sm:$0xff]
                %323 = vst [vmem:[%s217 + $0x1a0] sm:$0xff] %v322
                %v324 = vld [vmem:[%s216 + $0x348] sm:$0xff]
                %325 = vst [vmem:[%s217 + $0x1a8] sm:$0xff] %v324
                %v326 = vld [vmem:[%s216 + $0x360] sm:$0xff]
                %327 = vst [vmem:[%s217 + $0x1b0] sm:$0xff] %v326
                %v328 = vld [vmem:[%s216 + $0x368] sm:$0xff]
                %329 = vst [vmem:[%s217 + $0x1b8] sm:$0xff] %v328
                %v330 = vld [vmem:[%s216 + $0x380] sm:$0xff]
                %331 = vst [vmem:[%s217 + $0x1c0] sm:$0xff] %v330
                %v332 = vld [vmem:[%s216 + $0x388] sm:$0xff]
                %333 = vst [vmem:[%s217 + $0x1c8] sm:$0xff] %v332
                %v334 = vld [vmem:[%s216 + $0x3a0] sm:$0xff]
                %335 = vst [vmem:[%s217 + $0x1d0] sm:$0xff] %v334
                %v336 = vld [vmem:[%s216 + $0x3a8] sm:$0xff]
                %337 = vst [vmem:[%s217 + $0x1d8] sm:$0xff] %v336
                %v338 = vld [vmem:[%s216 + $0x3c0] sm:$0xff]
                %339 = vst [vmem:[%s217 + $0x1e0] sm:$0xff] %v338
                %v340 = vld [vmem:[%s216 + $0x3c8] sm:$0xff]
                %341 = vst [vmem:[%s217 + $0x1e8] sm:$0xff] %v340
                %v342 = vld [vmem:[%s216 + $0x3e0] sm:$0xff]
                %343 = vst [vmem:[%s217 + $0x1f0] sm:$0xff] %v342
                %v344 = vld [vmem:[%s216 + $0x3e8] sm:$0xff]
                %345 = vst [vmem:[%s217 + $0x1f8] sm:$0xff] %v344
              $region37: #{lightgcn_forward.4} parent=31 // loop_footer
                %s215 = sadd.s32 1, %s211
              $region38: #{lightgcn_forward.4} parent=31 // loop_footer_branch
                %210 = sbr.rel target = $region34
              $region39: #{lightgcn_forward.4} parent=31 // loop_exit
                _
            $region32: #{lightgcn_forward.4} parent=27 // pred_fallthru
              _
            // Predicated region
            $region40: #{lightgcn_forward.4} parent=27 // pred_check
              _
            $region41: #{lightgcn_forward.4} parent=27 // pred_check_branch
              %347 = sbr.rel target = $region43
            $region42: #{lightgcn_forward.4} parent=27 // pred_region
              _
            $region43: #{lightgcn_forward.4} parent=27 // pred_fallthru
              _
          $region28: #{lightgcn_forward.4} parent=23 // pred_fallthru
            _
          %348 = vnop
        $region24: #{lightgcn_forward.4} parent=19 // pred_fallthru
          _
        // Predicated region
        $region44: #{lightgcn_forward.4} parent=19 // pred_check
          %p349 = pneg %p110
        $region45: #{lightgcn_forward.4} parent=19 // pred_check_branch
          %351 = sbr.rel (%p349) target = $region47
        $region46: #{lightgcn_forward.4} parent=19 // pred_region
          %s352 = smul.u32 32, %s30
          %p353 = scmp.lt.s32.totalorder %s352, 127
          %s354 = scalar_select %p353, %s352, 127
          %s355 = smul.addr %s354, 8
          %s356 = scalar_lea.vmem %s4, %s355
          %s357 = smul.u32 32, %s30
        $region47: #{lightgcn_forward.4} parent=19 // pred_fallthru
          _
      $region20: #{lightgcn_forward.4} parent=5 // pred_fallthru
        _
      %p358 = scmp.le.s32.totalorder 1, %s23
      %p359 = scmp.lt.s32.totalorder %s23, 9
      %p360 = pnand %p358, %p359
      %p361 = pneg %p360
      // Predicated region
      $region48: #{lightgcn_forward.4} parent=5 // pred_check
        _
      $region49: #{lightgcn_forward.4} parent=5 // pred_check_branch
        %363 = sbr.rel (%p360) target = $region51
      $region50: #{lightgcn_forward.4} parent=5 // pred_region
        %s364 = ssub.s32 %s23, 1
        %s365 = sand.u32 %s56, 1
        %s366 = sand.u32 %s56, 1
        %s367 = smul.addr %s366, 512
        %s368 = scalar_lea.vmem [#allocation6], %s367
        // Predicated region
        $region52: #{lightgcn_forward.4} parent=50 // pred_check
          %p369 = pneg %p69
        $region53: #{lightgcn_forward.4} parent=50 // pred_check_branch
          %371 = sbr.rel (%p369) target = $region55
        $region54: #{lightgcn_forward.4} parent=50 // pred_region
          _
        $region55: #{lightgcn_forward.4} parent=50 // pred_fallthru
          _
        %s372 = sand.u32 %s56, 1
        %s373 = sand.u32 %s56, 1
        %s374 = smul.addr %s373, 512
        %s375 = scalar_lea.vmem [#allocation6], %s374
        %p376 = pneg %p69
        %p377 = pneg %p66
        %p378 = pneg %p90
        %p379 = pneg %p87
        %s380 = smul.u32 32, %s32
        %p381 = scmp.lt.s32.totalorder %s380, 127
        %s382 = scalar_select %p381, %s380, 127
        %s383 = smul.addr %s382, 8
        %s384 = scalar_lea.vmem %s4, %s383
        %p385 = pneg %p116
        %p386 = pneg %p113
        %p387 = pneg %p142
        %p388 = pneg %p139
        %s389 = smul.u32 32, %s32
        %p390 = scmp.lt.s32.totalorder %s389, 127
        %s391 = scalar_select %p390, %s389, 127
        %s392 = smul.addr %s391, 4
        %s393 = scalar_lea.vmem %s5, %s392
        %p394 = pneg %p168
        %p395 = pneg %p165
        %s396 = smul.u32 32, %s32
        %p397 = scmp.lt.s32.totalorder %s396, 127
        %s398 = scalar_select %p397, %s396, 127
        %s399 = smul.addr %s398, 8
        %s400 = scalar_lea.vmem %s6, %s399
        %s401 = smul.u32 %s32, 2
        %s402 = sadd.s32 %s401, %s33
        %s403 = sld [smem:[#allocation4 + %s402]]
        %s404 = smul.u32 32, %s32
        %s405 = smul.u32 4, %s403
        %s406 = smul.u32 32, %s32
        %p407 = scmp.lt.s32.totalorder %s406, 127
        %s408 = scalar_select %p407, %s406, 127
        %s409 = smul.addr %s408, 8
        %s410 = scalar_lea.vmem %s4, %s409
        %s411 = smul.u32 32, %s32
        %s412 = smul.u32 32, %s32
        %p413 = scmp.lt.s32.totalorder %s412, 127
        %s414 = scalar_select %p413, %s412, 127
        %s415 = smul.addr %s414, 4
        %s416 = scalar_lea.vmem %s5, %s415
        %s417 = smul.u32 32, %s32
        %s418 = smul.u32 32, %s32
        %p419 = scmp.lt.s32.totalorder %s418, 127
        %s420 = scalar_select %p419, %s418, 127
        %s421 = smul.addr %s420, 8
        %s422 = scalar_lea.vmem %s6, %s421
        %s423 = smul.u32 32, %s32
        %p425 = scmp.eq.s32.totalorder %s33, 0
        // Predicated region
        $region56: #{lightgcn_forward.4} parent=50 // pred_check
          %p426 = pneg %p425
        $region57: #{lightgcn_forward.4} parent=50 // pred_check_branch
          %428 = sbr.rel (%p426) target = $region59
        $region58: #{lightgcn_forward.4} parent=50 // pred_region
          %429 = vst [vmem:[#allocation2] sm:$0xff] 0.0
          %430 = vst [vmem:[#allocation2 + $0x8] sm:$0xff] 0.0
          %431 = vst [vmem:[#allocation2 + $0x10] sm:$0xff] 0.0
          %432 = vst [vmem:[#allocation2 + $0x18] sm:$0xff] 0.0
          %433 = vst [vmem:[#allocation2 + $0x20] sm:$0xff] 0.0
          %434 = vst [vmem:[#allocation2 + $0x28] sm:$0xff] 0.0
          %435 = vst [vmem:[#allocation2 + $0x30] sm:$0xff] 0.0
          %436 = vst [vmem:[#allocation2 + $0x38] sm:$0xff] 0.0
          %437 = vst [vmem:[#allocation2 + $0x40] sm:$0xff] 0.0
          %438 = vst [vmem:[#allocation2 + $0x48] sm:$0xff] 0.0
          %439 = vst [vmem:[#allocation2 + $0x50] sm:$0xff] 0.0
          %440 = vst [vmem:[#allocation2 + $0x58] sm:$0xff] 0.0
          %441 = vst [vmem:[#allocation2 + $0x60] sm:$0xff] 0.0
          %442 = vst [vmem:[#allocation2 + $0x68] sm:$0xff] 0.0
          %443 = vst [vmem:[#allocation2 + $0x70] sm:$0xff] 0.0
          %444 = vst [vmem:[#allocation2 + $0x78] sm:$0xff] 0.0
          %445 = vst [vmem:[#allocation2 + $0x80] sm:$0xff] 0.0
          %446 = vst [vmem:[#allocation2 + $0x88] sm:$0xff] 0.0
          %447 = vst [vmem:[#allocation2 + $0x90] sm:$0xff] 0.0
          %448 = vst [vmem:[#allocation2 + $0x98] sm:$0xff] 0.0
          %449 = vst [vmem:[#allocation2 + $0xa0] sm:$0xff] 0.0
          %450 = vst [vmem:[#allocation2 + $0xa8] sm:$0xff] 0.0
          %451 = vst [vmem:[#allocation2 + $0xb0] sm:$0xff] 0.0
          %452 = vst [vmem:[#allocation2 + $0xb8] sm:$0xff] 0.0
          %453 = vst [vmem:[#allocation2 + $0xc0] sm:$0xff] 0.0
          %454 = vst [vmem:[#allocation2 + $0xc8] sm:$0xff] 0.0
          %455 = vst [vmem:[#allocation2 + $0xd0] sm:$0xff] 0.0
          %456 = vst [vmem:[#allocation2 + $0xd8] sm:$0xff] 0.0
          %457 = vst [vmem:[#allocation2 + $0xe0] sm:$0xff] 0.0
          %458 = vst [vmem:[#allocation2 + $0xe8] sm:$0xff] 0.0
          %459 = vst [vmem:[#allocation2 + $0xf0] sm:$0xff] 0.0
          %460 = vst [vmem:[#allocation2 + $0xf8] sm:$0xff] 0.0
        $region59: #{lightgcn_forward.4} parent=50 // pred_fallthru
          _
        %s461 = sld [smem:[#allocation5 + %s32]]
        %p462 = scmp.lt.s32.totalorder %s33, %s461
        // Predicated region
        $region60: #{lightgcn_forward.4} parent=50 // pred_check
          %p463 = pneg %p462
        $region61: #{lightgcn_forward.4} parent=50 // pred_check_branch
          %465 = sbr.rel (%p463) target = $region63
        $region62: #{lightgcn_forward.4} parent=50 // pred_region
          %s466 = smul.u32 %s32, 2
          %s467 = sadd.s32 %s466, %s33
          %s468 = sld [smem:[#allocation4 + %s467]]
          %s469 = smul.u32 %s468, 512
          %s470 = sshra.s32 %s469, 3
          %s471 = sand.u32 %s469, 7
          %s472 = smul.addr %s470, 4
          %s473 = scalar_lea.vmem %s3, %s472
          %v474 = vld [vmem:[%s473] sm:$0xf]
          %v475 = vld [vmem:[%s473 + $0x4] sm:$0xf]
          %v476 = vld [vmem:[%s473 + $0x8] sm:$0xf]
          %v477 = vld [vmem:[%s473 + $0xc] sm:$0xf]
          %v478 = vld [vmem:[%s473 + $0x10] sm:$0xf]
          %v479 = vld [vmem:[%s473 + $0x14] sm:$0xf]
          %v480 = vld [vmem:[%s473 + $0x18] sm:$0xf]
          %v481 = vld [vmem:[%s473 + $0x1c] sm:$0xf]
          %v482 = vld [vmem:[%s473 + $0x20] sm:$0xf]
          %v483 = vld [vmem:[%s473 + $0x24] sm:$0xf]
          %v484 = vld [vmem:[%s473 + $0x28] sm:$0xf]
          %v485 = vld [vmem:[%s473 + $0x2c] sm:$0xf]
          %v486 = vld [vmem:[%s473 + $0x30] sm:$0xf]
          %v487 = vld [vmem:[%s473 + $0x34] sm:$0xf]
          %v488 = vld [vmem:[%s473 + $0x38] sm:$0xf]
          %v489 = vld [vmem:[%s473 + $0x3c] sm:$0xf]
          %v490 = vld [vmem:[%s473 + $0x40] sm:$0xf]
          %v491 = vld [vmem:[%s473 + $0x44] sm:$0xf]
          %v492 = vld [vmem:[%s473 + $0x48] sm:$0xf]
          %v493 = vld [vmem:[%s473 + $0x4c] sm:$0xf]
          %v494 = vld [vmem:[%s473 + $0x50] sm:$0xf]
          %v495 = vld [vmem:[%s473 + $0x54] sm:$0xf]
          %v496 = vld [vmem:[%s473 + $0x58] sm:$0xf]
          %v497 = vld [vmem:[%s473 + $0x5c] sm:$0xf]
          %v498 = vld [vmem:[%s473 + $0x60] sm:$0xf]
          %v499 = vld [vmem:[%s473 + $0x64] sm:$0xf]
          %v500 = vld [vmem:[%s473 + $0x68] sm:$0xf]
          %v501 = vld [vmem:[%s473 + $0x6c] sm:$0xf]
          %v502 = vld [vmem:[%s473 + $0x70] sm:$0xf]
          %v503 = vld [vmem:[%s473 + $0x74] sm:$0xf]
          %v504 = vld [vmem:[%s473 + $0x78] sm:$0xf]
          %v505 = vld [vmem:[%s473 + $0x7c] sm:$0xf]
          %v506 = vld [vmem:[%s473 + $0x80] sm:$0xf]
          %v507 = vld [vmem:[%s473 + $0x84] sm:$0xf]
          %v508 = vld [vmem:[%s473 + $0x88] sm:$0xf]
          %v509 = vld [vmem:[%s473 + $0x8c] sm:$0xf]
          %v510 = vld [vmem:[%s473 + $0x90] sm:$0xf]
          %v511 = vld [vmem:[%s473 + $0x94] sm:$0xf]
          %v512 = vld [vmem:[%s473 + $0x98] sm:$0xf]
          %v513 = vld [vmem:[%s473 + $0x9c] sm:$0xf]
          %v514 = vld [vmem:[%s473 + $0xa0] sm:$0xf]
          %v515 = vld [vmem:[%s473 + $0xa4] sm:$0xf]
          %v516 = vld [vmem:[%s473 + $0xa8] sm:$0xf]
          %v517 = vld [vmem:[%s473 + $0xac] sm:$0xf]
          %v518 = vld [vmem:[%s473 + $0xb0] sm:$0xf]
          %v519 = vld [vmem:[%s473 + $0xb4] sm:$0xf]
          %v520 = vld [vmem:[%s473 + $0xb8] sm:$0xf]
          %v521 = vld [vmem:[%s473 + $0xbc] sm:$0xf]
          %v522 = vld [vmem:[%s473 + $0xc0] sm:$0xf]
          %v523 = vld [vmem:[%s473 + $0xc4] sm:$0xf]
          %v524 = vld [vmem:[%s473 + $0xc8] sm:$0xf]
          %v525 = vld [vmem:[%s473 + $0xcc] sm:$0xf]
          %v526 = vld [vmem:[%s473 + $0xd0] sm:$0xf]
          %v527 = vld [vmem:[%s473 + $0xd4] sm:$0xf]
          %v528 = vld [vmem:[%s473 + $0xd8] sm:$0xf]
          %v529 = vld [vmem:[%s473 + $0xdc] sm:$0xf]
          %v530 = vld [vmem:[%s473 + $0xe0] sm:$0xf]
          %v531 = vld [vmem:[%s473 + $0xe4] sm:$0xf]
          %v532 = vld [vmem:[%s473 + $0xe8] sm:$0xf]
          %v533 = vld [vmem:[%s473 + $0xec] sm:$0xf]
          %v534 = vld [vmem:[%s473 + $0xf0] sm:$0xf]
          %v535 = vld [vmem:[%s473 + $0xf4] sm:$0xf]
          %v536 = vld [vmem:[%s473 + $0xf8] sm:$0xf]
          %v537 = vld [vmem:[%s473 + $0xfc] sm:$0xf]
          %v538 = vld [vmem:[#allocation2] sm:$0xff]
          %v539 = vld [vmem:[#allocation2 + $0x8] sm:$0xff]
          %v540 = vld [vmem:[#allocation2 + $0x10] sm:$0xff]
          %v541 = vld [vmem:[#allocation2 + $0x18] sm:$0xff]
          %v542 = vld [vmem:[#allocation2 + $0x20] sm:$0xff]
          %v543 = vld [vmem:[#allocation2 + $0x28] sm:$0xff]
          %v544 = vld [vmem:[#allocation2 + $0x30] sm:$0xff]
          %v545 = vld [vmem:[#allocation2 + $0x38] sm:$0xff]
          %v546 = vld [vmem:[#allocation2 + $0x40] sm:$0xff]
          %v547 = vld [vmem:[#allocation2 + $0x48] sm:$0xff]
          %v548 = vld [vmem:[#allocation2 + $0x50] sm:$0xff]
          %v549 = vld [vmem:[#allocation2 + $0x58] sm:$0xff]
          %v550 = vld [vmem:[#allocation2 + $0x60] sm:$0xff]
          %v551 = vld [vmem:[#allocation2 + $0x68] sm:$0xff]
          %v552 = vld [vmem:[#allocation2 + $0x70] sm:$0xff]
          %v553 = vld [vmem:[#allocation2 + $0x78] sm:$0xff]
          %v554 = vld [vmem:[#allocation2 + $0x80] sm:$0xff]
          %v555 = vld [vmem:[#allocation2 + $0x88] sm:$0xff]
          %v556 = vld [vmem:[#allocation2 + $0x90] sm:$0xff]
          %v557 = vld [vmem:[#allocation2 + $0x98] sm:$0xff]
          %v558 = vld [vmem:[#allocation2 + $0xa0] sm:$0xff]
          %v559 = vld [vmem:[#allocation2 + $0xa8] sm:$0xff]
          %v560 = vld [vmem:[#allocation2 + $0xb0] sm:$0xff]
          %v561 = vld [vmem:[#allocation2 + $0xb8] sm:$0xff]
          %v562 = vld [vmem:[#allocation2 + $0xc0] sm:$0xff]
          %v563 = vld [vmem:[#allocation2 + $0xc8] sm:$0xff]
          %v564 = vld [vmem:[#allocation2 + $0xd0] sm:$0xff]
          %v565 = vld [vmem:[#allocation2 + $0xd8] sm:$0xff]
          %v566 = vld [vmem:[#allocation2 + $0xe0] sm:$0xff]
          %v567 = vld [vmem:[#allocation2 + $0xe8] sm:$0xff]
          %v568 = vld [vmem:[#allocation2 + $0xf0] sm:$0xff]
          %v569 = vld [vmem:[#allocation2 + $0xf8] sm:$0xff]
          %v570 = vld [vmem:[%s368] sm:$0xff]
          %v571 = vld [vmem:[%s368 + $0x8] sm:$0xff]
          %v572 = vld [vmem:[%s368 + $0x10] sm:$0xff]
          %v573 = vld [vmem:[%s368 + $0x18] sm:$0xff]
          %v574 = vld [vmem:[%s368 + $0x20] sm:$0xff]
          %v575 = vld [vmem:[%s368 + $0x28] sm:$0xff]
          %v576 = vld [vmem:[%s368 + $0x30] sm:$0xff]
          %v577 = vld [vmem:[%s368 + $0x38] sm:$0xff]
          %v578 = vld [vmem:[%s368 + $0x40] sm:$0xff]
          %v579 = vld [vmem:[%s368 + $0x48] sm:$0xff]
          %v580 = vld [vmem:[%s368 + $0x50] sm:$0xff]
          %v581 = vld [vmem:[%s368 + $0x58] sm:$0xff]
          %v582 = vld [vmem:[%s368 + $0x60] sm:$0xff]
          %v583 = vld [vmem:[%s368 + $0x68] sm:$0xff]
          %v584 = vld [vmem:[%s368 + $0x70] sm:$0xff]
          %v585 = vld [vmem:[%s368 + $0x78] sm:$0xff]
          %v586 = vld [vmem:[%s368 + $0x80] sm:$0xff]
          %v587 = vld [vmem:[%s368 + $0x88] sm:$0xff]
          %v588 = vld [vmem:[%s368 + $0x90] sm:$0xff]
          %v589 = vld [vmem:[%s368 + $0x98] sm:$0xff]
          %v590 = vld [vmem:[%s368 + $0xa0] sm:$0xff]
          %v591 = vld [vmem:[%s368 + $0xa8] sm:$0xff]
          %v592 = vld [vmem:[%s368 + $0xb0] sm:$0xff]
          %v593 = vld [vmem:[%s368 + $0xb8] sm:$0xff]
          %v594 = vld [vmem:[%s368 + $0xc0] sm:$0xff]
          %v595 = vld [vmem:[%s368 + $0xc8] sm:$0xff]
          %v596 = vld [vmem:[%s368 + $0xd0] sm:$0xff]
          %v597 = vld [vmem:[%s368 + $0xd8] sm:$0xff]
          %v598 = vld [vmem:[%s368 + $0xe0] sm:$0xff]
          %v599 = vld [vmem:[%s368 + $0xe8] sm:$0xff]
          %v600 = vld [vmem:[%s368 + $0xf0] sm:$0xff]
          %v601 = vld [vmem:[%s368 + $0xf8] sm:$0xff]
          %v602 = vld [vmem:[%s368 + $0x100] sm:$0xff]
          %v603 = vld [vmem:[%s368 + $0x108] sm:$0xff]
          %v604 = vld [vmem:[%s368 + $0x110] sm:$0xff]
          %v605 = vld [vmem:[%s368 + $0x118] sm:$0xff]
          %v606 = vld [vmem:[%s368 + $0x120] sm:$0xff]
          %v607 = vld [vmem:[%s368 + $0x128] sm:$0xff]
          %v608 = vld [vmem:[%s368 + $0x130] sm:$0xff]
          %v609 = vld [vmem:[%s368 + $0x138] sm:$0xff]
          %v610 = vld [vmem:[%s368 + $0x140] sm:$0xff]
          %v611 = vld [vmem:[%s368 + $0x148] sm:$0xff]
          %v612 = vld [vmem:[%s368 + $0x150] sm:$0xff]
          %v613 = vld [vmem:[%s368 + $0x158] sm:$0xff]
          %v614 = vld [vmem:[%s368 + $0x160] sm:$0xff]
          %v615 = vld [vmem:[%s368 + $0x168] sm:$0xff]
          %v616 = vld [vmem:[%s368 + $0x170] sm:$0xff]
          %v617 = vld [vmem:[%s368 + $0x178] sm:$0xff]
          %v618 = vld [vmem:[%s368 + $0x180] sm:$0xff]
          %v619 = vld [vmem:[%s368 + $0x188] sm:$0xff]
          %v620 = vld [vmem:[%s368 + $0x190] sm:$0xff]
          %v621 = vld [vmem:[%s368 + $0x198] sm:$0xff]
          %v622 = vld [vmem:[%s368 + $0x1a0] sm:$0xff]
          %v623 = vld [vmem:[%s368 + $0x1a8] sm:$0xff]
          %v624 = vld [vmem:[%s368 + $0x1b0] sm:$0xff]
          %v625 = vld [vmem:[%s368 + $0x1b8] sm:$0xff]
          %v626 = vld [vmem:[%s368 + $0x1c0] sm:$0xff]
          %v627 = vld [vmem:[%s368 + $0x1c8] sm:$0xff]
          %v628 = vld [vmem:[%s368 + $0x1d0] sm:$0xff]
          %v629 = vld [vmem:[%s368 + $0x1d8] sm:$0xff]
          %v630 = vld [vmem:[%s368 + $0x1e0] sm:$0xff]
          %v631 = vld [vmem:[%s368 + $0x1e8] sm:$0xff]
          %v632 = vld [vmem:[%s368 + $0x1f0] sm:$0xff]
          %v633 = vld [vmem:[%s368 + $0x1f8] sm:$0xff]
          %v698 = vunpack.c.l.b16 %v570
          %v699 = vunpack.c.h.b16 %v570
          %v700 = vunpack.c.l.b16 %v571
          %v701 = vunpack.c.h.b16 %v571
          %v702 = vunpack.c.l.b16 %v572
          %v703 = vunpack.c.h.b16 %v572
          %v704 = vunpack.c.l.b16 %v573
          %v705 = vunpack.c.h.b16 %v573
          %v706 = vunpack.c.l.b16 %v574
          %v707 = vunpack.c.h.b16 %v574
          %v708 = vunpack.c.l.b16 %v575
          %v709 = vunpack.c.h.b16 %v575
          %v710 = vunpack.c.l.b16 %v576
          %v711 = vunpack.c.h.b16 %v576
          %v712 = vunpack.c.l.b16 %v577
          %v713 = vunpack.c.h.b16 %v577
          %v714 = vunpack.c.l.b16 %v578
          %v715 = vunpack.c.h.b16 %v578
          %v716 = vunpack.c.l.b16 %v579
          %v717 = vunpack.c.h.b16 %v579
          %v718 = vunpack.c.l.b16 %v580
          %v719 = vunpack.c.h.b16 %v580
          %v720 = vunpack.c.l.b16 %v581
          %v721 = vunpack.c.h.b16 %v581
          %v722 = vunpack.c.l.b16 %v582
          %v723 = vunpack.c.h.b16 %v582
          %v724 = vunpack.c.l.b16 %v583
          %v725 = vunpack.c.h.b16 %v583
          %v726 = vunpack.c.l.b16 %v584
          %v727 = vunpack.c.h.b16 %v584
          %v728 = vunpack.c.l.b16 %v585
          %v729 = vunpack.c.h.b16 %v585
          %v730 = vunpack.c.l.b16 %v586
          %v731 = vunpack.c.h.b16 %v586
          %v732 = vunpack.c.l.b16 %v587
          %v733 = vunpack.c.h.b16 %v587
          %v734 = vunpack.c.l.b16 %v588
          %v735 = vunpack.c.h.b16 %v588
          %v736 = vunpack.c.l.b16 %v589
          %v737 = vunpack.c.h.b16 %v589
          %v738 = vunpack.c.l.b16 %v590
          %v739 = vunpack.c.h.b16 %v590
          %v740 = vunpack.c.l.b16 %v591
          %v741 = vunpack.c.h.b16 %v591
          %v742 = vunpack.c.l.b16 %v592
          %v743 = vunpack.c.h.b16 %v592
          %v744 = vunpack.c.l.b16 %v593
          %v745 = vunpack.c.h.b16 %v593
          %v746 = vunpack.c.l.b16 %v594
          %v747 = vunpack.c.h.b16 %v594
          %v748 = vunpack.c.l.b16 %v595
          %v749 = vunpack.c.h.b16 %v595
          %v750 = vunpack.c.l.b16 %v596
          %v751 = vunpack.c.h.b16 %v596
          %v752 = vunpack.c.l.b16 %v597
          %v753 = vunpack.c.h.b16 %v597
          %v754 = vunpack.c.l.b16 %v598
          %v755 = vunpack.c.h.b16 %v598
          %v756 = vunpack.c.l.b16 %v599
          %v757 = vunpack.c.h.b16 %v599
          %v758 = vunpack.c.l.b16 %v600
          %v759 = vunpack.c.h.b16 %v600
          %v760 = vunpack.c.l.b16 %v601
          %v761 = vunpack.c.h.b16 %v601
          %v762 = vunpack.c.l.b16 %v602
          %v763 = vunpack.c.h.b16 %v602
          %v764 = vunpack.c.l.b16 %v603
          %v765 = vunpack.c.h.b16 %v603
          %v766 = vunpack.c.l.b16 %v604
          %v767 = vunpack.c.h.b16 %v604
          %v768 = vunpack.c.l.b16 %v605
          %v769 = vunpack.c.h.b16 %v605
          %v770 = vunpack.c.l.b16 %v606
          %v771 = vunpack.c.h.b16 %v606
          %v772 = vunpack.c.l.b16 %v607
          %v773 = vunpack.c.h.b16 %v607
          %v774 = vunpack.c.l.b16 %v608
          %v775 = vunpack.c.h.b16 %v608
          %v776 = vunpack.c.l.b16 %v609
          %v777 = vunpack.c.h.b16 %v609
          %v778 = vunpack.c.l.b16 %v610
          %v779 = vunpack.c.h.b16 %v610
          %v780 = vunpack.c.l.b16 %v611
          %v781 = vunpack.c.h.b16 %v611
          %v782 = vunpack.c.l.b16 %v612
          %v783 = vunpack.c.h.b16 %v612
          %v784 = vunpack.c.l.b16 %v613
          %v785 = vunpack.c.h.b16 %v613
          %v786 = vunpack.c.l.b16 %v614
          %v787 = vunpack.c.h.b16 %v614
          %v788 = vunpack.c.l.b16 %v615
          %v789 = vunpack.c.h.b16 %v615
          %v790 = vunpack.c.l.b16 %v616
          %v791 = vunpack.c.h.b16 %v616
          %v792 = vunpack.c.l.b16 %v617
          %v793 = vunpack.c.h.b16 %v617
          %v794 = vunpack.c.l.b16 %v618
          %v795 = vunpack.c.h.b16 %v618
          %v796 = vunpack.c.l.b16 %v619
          %v797 = vunpack.c.h.b16 %v619
          %v798 = vunpack.c.l.b16 %v620
          %v799 = vunpack.c.h.b16 %v620
          %v800 = vunpack.c.l.b16 %v621
          %v801 = vunpack.c.h.b16 %v621
          %v802 = vunpack.c.l.b16 %v622
          %v803 = vunpack.c.h.b16 %v622
          %v804 = vunpack.c.l.b16 %v623
          %v805 = vunpack.c.h.b16 %v623
          %v806 = vunpack.c.l.b16 %v624
          %v807 = vunpack.c.h.b16 %v624
          %v808 = vunpack.c.l.b16 %v625
          %v809 = vunpack.c.h.b16 %v625
          %v810 = vunpack.c.l.b16 %v626
          %v811 = vunpack.c.h.b16 %v626
          %v812 = vunpack.c.l.b16 %v627
          %v813 = vunpack.c.h.b16 %v627
          %v814 = vunpack.c.l.b16 %v628
          %v815 = vunpack.c.h.b16 %v628
          %v816 = vunpack.c.l.b16 %v629
          %v817 = vunpack.c.h.b16 %v629
          %v818 = vunpack.c.l.b16 %v630
          %v819 = vunpack.c.h.b16 %v630
          %v820 = vunpack.c.l.b16 %v631
          %v821 = vunpack.c.h.b16 %v631
          %v822 = vunpack.c.l.b16 %v632
          %v823 = vunpack.c.h.b16 %v632
          %v824 = vunpack.c.l.b16 %v633
          %v825 = vunpack.c.h.b16 %v633
          %v826 = vpack.c.b16 %v702, %v698
          %v827 = vpack.c.b16 %v703, %v699
          %v828 = vpack.c.b16 %v704, %v700
          %v829 = vpack.c.b16 %v705, %v701
          %v830 = vpack.c.b16 %v710, %v706
          %v831 = vpack.c.b16 %v711, %v707
          %v832 = vpack.c.b16 %v712, %v708
          %v833 = vpack.c.b16 %v713, %v709
          %v834 = vpack.c.b16 %v718, %v714
          %v835 = vpack.c.b16 %v719, %v715
          %v836 = vpack.c.b16 %v720, %v716
          %v837 = vpack.c.b16 %v721, %v717
          %v838 = vpack.c.b16 %v726, %v722
          %v839 = vpack.c.b16 %v727, %v723
          %v840 = vpack.c.b16 %v728, %v724
          %v841 = vpack.c.b16 %v729, %v725
          %v842 = vpack.c.b16 %v734, %v730
          %v843 = vpack.c.b16 %v735, %v731
          %v844 = vpack.c.b16 %v736, %v732
          %v845 = vpack.c.b16 %v737, %v733
          %v846 = vpack.c.b16 %v742, %v738
          %v847 = vpack.c.b16 %v743, %v739
          %v848 = vpack.c.b16 %v744, %v740
          %v849 = vpack.c.b16 %v745, %v741
          %v850 = vpack.c.b16 %v750, %v746
          %v851 = vpack.c.b16 %v751, %v747
          %v852 = vpack.c.b16 %v752, %v748
          %v853 = vpack.c.b16 %v753, %v749
          %v854 = vpack.c.b16 %v758, %v754
          %v855 = vpack.c.b16 %v759, %v755
          %v856 = vpack.c.b16 %v760, %v756
          %v857 = vpack.c.b16 %v761, %v757
          %v858 = vpack.c.b16 %v766, %v762
          %v859 = vpack.c.b16 %v767, %v763
          %v860 = vpack.c.b16 %v768, %v764
          %v861 = vpack.c.b16 %v769, %v765
          %v862 = vpack.c.b16 %v774, %v770
          %v863 = vpack.c.b16 %v775, %v771
          %v864 = vpack.c.b16 %v776, %v772
          %v865 = vpack.c.b16 %v777, %v773
          %v866 = vpack.c.b16 %v782, %v778
          %v867 = vpack.c.b16 %v783, %v779
          %v868 = vpack.c.b16 %v784, %v780
          %v869 = vpack.c.b16 %v785, %v781
          %v870 = vpack.c.b16 %v790, %v786
          %v871 = vpack.c.b16 %v791, %v787
          %v872 = vpack.c.b16 %v792, %v788
          %v873 = vpack.c.b16 %v793, %v789
          %v874 = vpack.c.b16 %v798, %v794
          %v875 = vpack.c.b16 %v799, %v795
          %v876 = vpack.c.b16 %v800, %v796
          %v877 = vpack.c.b16 %v801, %v797
          %v878 = vpack.c.b16 %v806, %v802
          %v879 = vpack.c.b16 %v807, %v803
          %v880 = vpack.c.b16 %v808, %v804
          %v881 = vpack.c.b16 %v809, %v805
          %v882 = vpack.c.b16 %v814, %v810
          %v883 = vpack.c.b16 %v815, %v811
          %v884 = vpack.c.b16 %v816, %v812
          %v885 = vpack.c.b16 %v817, %v813
          %v886 = vpack.c.b16 %v822, %v818
          %v887 = vpack.c.b16 %v823, %v819
          %v888 = vpack.c.b16 %v824, %v820
          %v889 = vpack.c.b16 %v825, %v821
          %v1018 = vunpack.c.l.b16 %v474
          %v1019 = vunpack.c.l.b16 %v475
          %v1020 = vunpack.c.l.b16 %v476
          %v1021 = vunpack.c.l.b16 %v477
          %v1022 = vunpack.c.l.b16 %v478
          %v1023 = vunpack.c.l.b16 %v479
          %v1024 = vunpack.c.l.b16 %v480
          %v1025 = vunpack.c.l.b16 %v481
          %v1026 = vunpack.c.l.b16 %v482
          %v1027 = vunpack.c.l.b16 %v483
          %v1028 = vunpack.c.l.b16 %v484
          %v1029 = vunpack.c.l.b16 %v485
          %v1030 = vunpack.c.l.b16 %v486
          %v1031 = vunpack.c.l.b16 %v487
          %v1032 = vunpack.c.l.b16 %v488
          %v1033 = vunpack.c.l.b16 %v489
          %v1034 = vunpack.c.l.b16 %v490
          %v1035 = vunpack.c.l.b16 %v491
          %v1036 = vunpack.c.l.b16 %v492
          %v1037 = vunpack.c.l.b16 %v493
          %v1038 = vunpack.c.l.b16 %v494
          %v1039 = vunpack.c.l.b16 %v495
          %v1040 = vunpack.c.l.b16 %v496
          %v1041 = vunpack.c.l.b16 %v497
          %v1042 = vunpack.c.l.b16 %v498
          %v1043 = vunpack.c.l.b16 %v499
          %v1044 = vunpack.c.l.b16 %v500
          %v1045 = vunpack.c.l.b16 %v501
          %v1046 = vunpack.c.l.b16 %v502
          %v1047 = vunpack.c.l.b16 %v503
          %v1048 = vunpack.c.l.b16 %v504
          %v1049 = vunpack.c.l.b16 %v505
          %v1050 = vunpack.c.l.b16 %v506
          %v1051 = vunpack.c.l.b16 %v507
          %v1052 = vunpack.c.l.b16 %v508
          %v1053 = vunpack.c.l.b16 %v509
          %v1054 = vunpack.c.l.b16 %v510
          %v1055 = vunpack.c.l.b16 %v511
          %v1056 = vunpack.c.l.b16 %v512
          %v1057 = vunpack.c.l.b16 %v513
          %v1058 = vunpack.c.l.b16 %v514
          %v1059 = vunpack.c.l.b16 %v515
          %v1060 = vunpack.c.l.b16 %v516
          %v1061 = vunpack.c.l.b16 %v517
          %v1062 = vunpack.c.l.b16 %v518
          %v1063 = vunpack.c.l.b16 %v519
          %v1064 = vunpack.c.l.b16 %v520
          %v1065 = vunpack.c.l.b16 %v521
          %v1066 = vunpack.c.l.b16 %v522
          %v1067 = vunpack.c.l.b16 %v523
          %v1068 = vunpack.c.l.b16 %v524
          %v1069 = vunpack.c.l.b16 %v525
          %v1070 = vunpack.c.l.b16 %v526
          %v1071 = vunpack.c.l.b16 %v527
          %v1072 = vunpack.c.l.b16 %v528
          %v1073 = vunpack.c.l.b16 %v529
          %v1074 = vunpack.c.l.b16 %v530
          %v1075 = vunpack.c.l.b16 %v531
          %v1076 = vunpack.c.l.b16 %v532
          %v1077 = vunpack.c.l.b16 %v533
          %v1078 = vunpack.c.l.b16 %v534
          %v1079 = vunpack.c.l.b16 %v535
          %v1080 = vunpack.c.l.b16 %v536
          %v1081 = vunpack.c.l.b16 %v537
          %v1082 = vpack.c.b16 %v1019, %v1018
          %v1083 = vpack.c.b16 %v1021, %v1020
          %v1084 = vpack.c.b16 %v1023, %v1022
          %v1085 = vpack.c.b16 %v1025, %v1024
          %v1086 = vpack.c.b16 %v1027, %v1026
          %v1087 = vpack.c.b16 %v1029, %v1028
          %v1088 = vpack.c.b16 %v1031, %v1030
          %v1089 = vpack.c.b16 %v1033, %v1032
          %v1090 = vpack.c.b16 %v1035, %v1034
          %v1091 = vpack.c.b16 %v1037, %v1036
          %v1092 = vpack.c.b16 %v1039, %v1038
          %v1093 = vpack.c.b16 %v1041, %v1040
          %v1094 = vpack.c.b16 %v1043, %v1042
          %v1095 = vpack.c.b16 %v1045, %v1044
          %v1096 = vpack.c.b16 %v1047, %v1046
          %v1097 = vpack.c.b16 %v1049, %v1048
          %v1098 = vpack.c.b16 %v1051, %v1050
          %v1099 = vpack.c.b16 %v1053, %v1052
          %v1100 = vpack.c.b16 %v1055, %v1054
          %v1101 = vpack.c.b16 %v1057, %v1056
          %v1102 = vpack.c.b16 %v1059, %v1058
          %v1103 = vpack.c.b16 %v1061, %v1060
          %v1104 = vpack.c.b16 %v1063, %v1062
          %v1105 = vpack.c.b16 %v1065, %v1064
          %v1106 = vpack.c.b16 %v1067, %v1066
          %v1107 = vpack.c.b16 %v1069, %v1068
          %v1108 = vpack.c.b16 %v1071, %v1070
          %v1109 = vpack.c.b16 %v1073, %v1072
          %v1110 = vpack.c.b16 %v1075, %v1074
          %v1111 = vpack.c.b16 %v1077, %v1076
          %v1112 = vpack.c.b16 %v1079, %v1078
          %v1113 = vpack.c.b16 %v1081, %v1080
          %1146 = vmatprep.subr.bf16.mxu0 0
          %1147 = vmatpush1.bf16.msra.mxu0 %v1082
          %1148 = vmatprep.subr.bf16.mxu0 0
          %1149 = vmatpush1.bf16.msra.mxu0 %v1083
          %1150 = vmatprep.subr.bf16.mxu0 0
          %1151 = vmatpush1.bf16.msra.mxu0 %v1084
          %1152 = vmatprep.subr.bf16.mxu0 0
          %1153 = vmatpush1.bf16.msra.mxu0 %v1085
          %1154 = vmatprep.subr.bf16.mxu0 0
          %1155 = vmatpush1.bf16.msra.mxu0 %v1086
          %1156 = vmatprep.subr.bf16.mxu0 0
          %1157 = vmatpush1.bf16.msra.mxu0 %v1087
          %1158 = vmatprep.subr.bf16.mxu0 0
          %1159 = vmatpush1.bf16.msra.mxu0 %v1088
          %1160 = vmatprep.subr.bf16.mxu0 0
          %1161 = vmatpush1.bf16.msra.mxu0 %v1089
          %1162 = vmatprep.subr.bf16.mxu0 0
          %1163 = vmatpush1.bf16.msra.mxu0 %v1090
          %1164 = vmatprep.subr.bf16.mxu0 0
          %1165 = vmatpush1.bf16.msra.mxu0 %v1091
          %1166 = vmatprep.subr.bf16.mxu0 0
          %1167 = vmatpush1.bf16.msra.mxu0 %v1092
          %1168 = vmatprep.subr.bf16.mxu0 0
          %1169 = vmatpush1.bf16.msra.mxu0 %v1093
          %1170 = vmatprep.subr.bf16.mxu0 0
          %1171 = vmatpush1.bf16.msra.mxu0 %v1094
          %1172 = vmatprep.subr.bf16.mxu0 0
          %1173 = vmatpush1.bf16.msra.mxu0 %v1095
          %1174 = vmatprep.subr.bf16.mxu0 0
          %1175 = vmatpush1.bf16.msra.mxu0 %v1096
          %1176 = vmatprep.subr.bf16.mxu0 0
          %1177 = vmatpush1.bf16.msra.mxu0 %v1097
          %1178 = vmatprep.mubr.bf16.mxu0 %v827
          %1179 = vmatmul.mubr.bf16.gmra.mrb[0].mxu0 %v826
          %v1180 = vpop.f32.mrb[0].mxu0
          %v1181 = vadd.f32 0.0, %v1180
          %v1182 = vpop.f32.mrb[0].mxu0
          %v1183 = vpop.f32.mrb[0].mxu0
          %v1184 = vadd.f32 0.0, %v1183
          %v1185 = vpop.f32.mrb[0].mxu0
          %1186 = vmatprep.mubr.bf16.mxu0 %v831
          %1187 = vmatmul.mubr.bf16.gmra.mrb[0].mxu0 %v830
          %v1188 = vpop.f32.mrb[0].mxu0
          %v1189 = vadd.f32 0.0, %v1188
          %v1190 = vpop.f32.mrb[0].mxu0
          %v1191 = vpop.f32.mrb[0].mxu0
          %v1192 = vadd.f32 0.0, %v1191
          %v1193 = vpop.f32.mrb[0].mxu0
          %1194 = vmatprep.mubr.bf16.mxu0 %v835
          %1195 = vmatmul.mubr.bf16.gmra.mrb[0].mxu0 %v834
          %v1196 = vpop.f32.mrb[0].mxu0
          %v1197 = vadd.f32 0.0, %v1196
          %v1198 = vpop.f32.mrb[0].mxu0
          %v1199 = vpop.f32.mrb[0].mxu0
          %v1200 = vadd.f32 0.0, %v1199
          %v1201 = vpop.f32.mrb[0].mxu0
          %1202 = vmatprep.mubr.bf16.mxu0 %v839
          %1203 = vmatmul.mubr.bf16.gmra.mrb[0].mxu0 %v838
          %v1204 = vpop.f32.mrb[0].mxu0
          %v1205 = vadd.f32 0.0, %v1204
          %v1206 = vpop.f32.mrb[0].mxu0
          %v1207 = vpop.f32.mrb[0].mxu0
          %v1208 = vadd.f32 0.0, %v1207
          %v1209 = vpop.f32.mrb[0].mxu0
          %1210 = vmatprep.mubr.bf16.mxu0 %v843
          %1211 = vmatmul.mubr.bf16.gmra.mrb[0].mxu0 %v842
          %v1212 = vpop.f32.mrb[0].mxu0
          %v1213 = vadd.f32 0.0, %v1212
          %v1214 = vpop.f32.mrb[0].mxu0
          %v1215 = vpop.f32.mrb[0].mxu0
          %v1216 = vadd.f32 0.0, %v1215
          %v1217 = vpop.f32.mrb[0].mxu0
          %1218 = vmatprep.mubr.bf16.mxu0 %v847
          %1219 = vmatmul.mubr.bf16.gmra.mrb[0].mxu0 %v846
          %v1220 = vpop.f32.mrb[0].mxu0
          %v1221 = vadd.f32 0.0, %v1220
          %v1222 = vpop.f32.mrb[0].mxu0
          %v1223 = vpop.f32.mrb[0].mxu0
          %v1224 = vadd.f32 0.0, %v1223
          %v1225 = vpop.f32.mrb[0].mxu0
          %1226 = vmatprep.mubr.bf16.mxu0 %v851
          %1227 = vmatmul.mubr.bf16.gmra.mrb[0].mxu0 %v850
          %v1228 = vpop.f32.mrb[0].mxu0
          %v1229 = vadd.f32 0.0, %v1228
          %v1230 = vpop.f32.mrb[0].mxu0
          %v1231 = vpop.f32.mrb[0].mxu0
          %v1232 = vadd.f32 0.0, %v1231
          %v1233 = vpop.f32.mrb[0].mxu0
          %1234 = vmatprep.mubr.bf16.mxu0 %v855
          %1235 = vmatmul.mubr.bf16.gmra.mrb[0].mxu0 %v854
          %v1236 = vpop.f32.mrb[0].mxu0
          %v1237 = vadd.f32 0.0, %v1236
          %v1238 = vpop.f32.mrb[0].mxu0
          %v1239 = vpop.f32.mrb[0].mxu0
          %v1240 = vadd.f32 0.0, %v1239
          %v1241 = vpop.f32.mrb[0].mxu0
          %1242 = vmatprep.mubr.bf16.mxu0 %v859
          %1243 = vmatmul.mubr.bf16.gmra.mrb[0].mxu0 %v858
          %v1244 = vpop.f32.mrb[0].mxu0
          %v1245 = vadd.f32 0.0, %v1244
          %v1246 = vpop.f32.mrb[0].mxu0
          %v1247 = vpop.f32.mrb[0].mxu0
          %v1248 = vadd.f32 0.0, %v1247
          %v1249 = vpop.f32.mrb[0].mxu0
          %1250 = vmatprep.mubr.bf16.mxu0 %v863
          %1251 = vmatmul.mubr.bf16.gmra.mrb[0].mxu0 %v862
          %v1252 = vpop.f32.mrb[0].mxu0
          %v1253 = vadd.f32 0.0, %v1252
          %v1254 = vpop.f32.mrb[0].mxu0
          %v1255 = vpop.f32.mrb[0].mxu0
          %v1256 = vadd.f32 0.0, %v1255
          %v1257 = vpop.f32.mrb[0].mxu0
          %1258 = vmatprep.mubr.bf16.mxu0 %v867
          %1259 = vmatmul.mubr.bf16.gmra.mrb[0].mxu0 %v866
          %v1260 = vpop.f32.mrb[0].mxu0
          %v1261 = vadd.f32 0.0, %v1260
          %v1262 = vpop.f32.mrb[0].mxu0
          %v1263 = vpop.f32.mrb[0].mxu0
          %v1264 = vadd.f32 0.0, %v1263
          %v1265 = vpop.f32.mrb[0].mxu0
          %1266 = vmatprep.mubr.bf16.mxu0 %v871
          %1267 = vmatmul.mubr.bf16.gmra.mrb[0].mxu0 %v870
          %v1268 = vpop.f32.mrb[0].mxu0
          %v1269 = vadd.f32 0.0, %v1268
          %v1270 = vpop.f32.mrb[0].mxu0
          %v1271 = vpop.f32.mrb[0].mxu0
          %v1272 = vadd.f32 0.0, %v1271
          %v1273 = vpop.f32.mrb[0].mxu0
          %1274 = vmatprep.mubr.bf16.mxu0 %v875
          %1275 = vmatmul.mubr.bf16.gmra.mrb[0].mxu0 %v874
          %v1276 = vpop.f32.mrb[0].mxu0
          %v1277 = vadd.f32 0.0, %v1276
          %v1278 = vpop.f32.mrb[0].mxu0
          %v1279 = vpop.f32.mrb[0].mxu0
          %v1280 = vadd.f32 0.0, %v1279
          %v1281 = vpop.f32.mrb[0].mxu0
          %1282 = vmatprep.mubr.bf16.mxu0 %v879
          %1283 = vmatmul.mubr.bf16.gmra.mrb[0].mxu0 %v878
          %v1284 = vpop.f32.mrb[0].mxu0
          %v1285 = vadd.f32 0.0, %v1284
          %v1286 = vpop.f32.mrb[0].mxu0
          %v1287 = vpop.f32.mrb[0].mxu0
          %v1288 = vadd.f32 0.0, %v1287
          %v1289 = vpop.f32.mrb[0].mxu0
          %1290 = vmatprep.mubr.bf16.mxu0 %v883
          %1291 = vmatmul.mubr.bf16.gmra.mrb[0].mxu0 %v882
          %v1292 = vpop.f32.mrb[0].mxu0
          %v1293 = vadd.f32 0.0, %v1292
          %v1294 = vpop.f32.mrb[0].mxu0
          %v1295 = vpop.f32.mrb[0].mxu0
          %v1296 = vadd.f32 0.0, %v1295
          %v1297 = vpop.f32.mrb[0].mxu0
          %1298 = vmatprep.mubr.bf16.mxu0 %v887
          %1299 = vmatmul.mubr.bf16.gmra.mrb[0].mxu0 %v886
          %v1300 = vpop.f32.mrb[0].mxu0
          %v1301 = vadd.f32 0.0, %v1300
          %v1302 = vpop.f32.mrb[0].mxu0
          %v1303 = vpop.f32.mrb[0].mxu0
          %v1304 = vadd.f32 0.0, %v1303
          %v1305 = vpop.f32.mrb[0].mxu0
          %1306 = vdwg.mxu0
          %1307 = vmatprep.subr.bf16.mxu0 0
          %1308 = vmatpush1.bf16.msra.mxu0 %v1098
          %1309 = vmatprep.subr.bf16.mxu0 0
          %1310 = vmatpush1.bf16.msra.mxu0 %v1099
          %1311 = vmatprep.subr.bf16.mxu0 0
          %1312 = vmatpush1.bf16.msra.mxu0 %v1100
          %1313 = vmatprep.subr.bf16.mxu0 0
          %1314 = vmatpush1.bf16.msra.mxu0 %v1101
          %1315 = vmatprep.subr.bf16.mxu0 0
          %1316 = vmatpush1.bf16.msra.mxu0 %v1102
          %1317 = vmatprep.subr.bf16.mxu0 0
          %1318 = vmatpush1.bf16.msra.mxu0 %v1103
          %1319 = vmatprep.subr.bf16.mxu0 0
          %1320 = vmatpush1.bf16.msra.mxu0 %v1104
          %1321 = vmatprep.subr.bf16.mxu0 0
          %1322 = vmatpush1.bf16.msra.mxu0 %v1105
          %1323 = vmatprep.subr.bf16.mxu0 0
          %1324 = vmatpush1.bf16.msra.mxu0 %v1106
          %1325 = vmatprep.subr.bf16.mxu0 0
          %1326 = vmatpush1.bf16.msra.mxu0 %v1107
          %1327 = vmatprep.subr.bf16.mxu0 0
          %1328 = vmatpush1.bf16.msra.mxu0 %v1108
          %1329 = vmatprep.subr.bf16.mxu0 0
          %1330 = vmatpush1.bf16.msra.mxu0 %v1109
          %1331 = vmatprep.subr.bf16.mxu0 0
          %1332 = vmatpush1.bf16.msra.mxu0 %v1110
          %1333 = vmatprep.subr.bf16.mxu0 0
          %1334 = vmatpush1.bf16.msra.mxu0 %v1111
          %1335 = vmatprep.subr.bf16.mxu0 0
          %1336 = vmatpush1.bf16.msra.mxu0 %v1112
          %1337 = vmatprep.subr.bf16.mxu0 0
          %1338 = vmatpush1.bf16.msra.mxu0 %v1113
          %1339 = vmatprep.mubr.bf16.mxu0 %v829
          %1340 = vmatmul.mubr.bf16.gmra.mrb[0].mxu0 %v828
          %v1341 = vpop.f32.mrb[0].mxu0
          %v1342 = vadd.f32 %v1181, %v1341
          %v1343 = vpop.f32.mrb[0].mxu0
          %v1344 = vpop.f32.mrb[0].mxu0
          %v1345 = vadd.f32 %v1184, %v1344
          %v1346 = vpop.f32.mrb[0].mxu0
          %1347 = vmatprep.mubr.bf16.mxu0 %v833
          %1348 = vmatmul.mubr.bf16.gmra.mrb[0].mxu0 %v832
          %v1349 = vpop.f32.mrb[0].mxu0
          %v1350 = vadd.f32 %v1189, %v1349
          %v1351 = vpop.f32.mrb[0].mxu0
          %v1352 = vpop.f32.mrb[0].mxu0
          %v1353 = vadd.f32 %v1192, %v1352
          %v1354 = vpop.f32.mrb[0].mxu0
          %1355 = vmatprep.mubr.bf16.mxu0 %v837
          %1356 = vmatmul.mubr.bf16.gmra.mrb[0].mxu0 %v836
          %v1357 = vpop.f32.mrb[0].mxu0
          %v1358 = vadd.f32 %v1197, %v1357
          %v1359 = vpop.f32.mrb[0].mxu0
          %v1360 = vpop.f32.mrb[0].mxu0
          %v1361 = vadd.f32 %v1200, %v1360
          %v1362 = vpop.f32.mrb[0].mxu0
          %1363 = vmatprep.mubr.bf16.mxu0 %v841
          %1364 = vmatmul.mubr.bf16.gmra.mrb[0].mxu0 %v840
          %v1365 = vpop.f32.mrb[0].mxu0
          %v1366 = vadd.f32 %v1205, %v1365
          %v1367 = vpop.f32.mrb[0].mxu0
          %v1368 = vpop.f32.mrb[0].mxu0
          %v1369 = vadd.f32 %v1208, %v1368
          %v1370 = vpop.f32.mrb[0].mxu0
          %1371 = vmatprep.mubr.bf16.mxu0 %v845
          %1372 = vmatmul.mubr.bf16.gmra.mrb[0].mxu0 %v844
          %v1373 = vpop.f32.mrb[0].mxu0
          %v1374 = vadd.f32 %v1213, %v1373
          %v1375 = vpop.f32.mrb[0].mxu0
          %v1376 = vpop.f32.mrb[0].mxu0
          %v1377 = vadd.f32 %v1216, %v1376
          %v1378 = vpop.f32.mrb[0].mxu0
          %1379 = vmatprep.mubr.bf16.mxu0 %v849
          %1380 = vmatmul.mubr.bf16.gmra.mrb[0].mxu0 %v848
          %v1381 = vpop.f32.mrb[0].mxu0
          %v1382 = vadd.f32 %v1221, %v1381
          %v1383 = vpop.f32.mrb[0].mxu0
          %v1384 = vpop.f32.mrb[0].mxu0
          %v1385 = vadd.f32 %v1224, %v1384
          %v1386 = vpop.f32.mrb[0].mxu0
          %1387 = vmatprep.mubr.bf16.mxu0 %v853
          %1388 = vmatmul.mubr.bf16.gmra.mrb[0].mxu0 %v852
          %v1389 = vpop.f32.mrb[0].mxu0
          %v1390 = vadd.f32 %v1229, %v1389
          %v1391 = vpop.f32.mrb[0].mxu0
          %v1392 = vpop.f32.mrb[0].mxu0
          %v1393 = vadd.f32 %v1232, %v1392
          %v1394 = vpop.f32.mrb[0].mxu0
          %1395 = vmatprep.mubr.bf16.mxu0 %v857
          %1396 = vmatmul.mubr.bf16.gmra.mrb[0].mxu0 %v856
          %v1397 = vpop.f32.mrb[0].mxu0
          %v1398 = vadd.f32 %v1237, %v1397
          %v1399 = vpop.f32.mrb[0].mxu0
          %v1400 = vpop.f32.mrb[0].mxu0
          %v1401 = vadd.f32 %v1240, %v1400
          %v1402 = vpop.f32.mrb[0].mxu0
          %1403 = vmatprep.mubr.bf16.mxu0 %v861
          %1404 = vmatmul.mubr.bf16.gmra.mrb[0].mxu0 %v860
          %v1405 = vpop.f32.mrb[0].mxu0
          %v1406 = vadd.f32 %v1245, %v1405
          %v1407 = vpop.f32.mrb[0].mxu0
          %v1408 = vpop.f32.mrb[0].mxu0
          %v1409 = vadd.f32 %v1248, %v1408
          %v1410 = vpop.f32.mrb[0].mxu0
          %1411 = vmatprep.mubr.bf16.mxu0 %v865
          %1412 = vmatmul.mubr.bf16.gmra.mrb[0].mxu0 %v864
          %v1413 = vpop.f32.mrb[0].mxu0
          %v1414 = vadd.f32 %v1253, %v1413
          %v1415 = vpop.f32.mrb[0].mxu0
          %v1416 = vpop.f32.mrb[0].mxu0
          %v1417 = vadd.f32 %v1256, %v1416
          %v1418 = vpop.f32.mrb[0].mxu0
          %1419 = vmatprep.mubr.bf16.mxu0 %v869
          %1420 = vmatmul.mubr.bf16.gmra.mrb[0].mxu0 %v868
          %v1421 = vpop.f32.mrb[0].mxu0
          %v1422 = vadd.f32 %v1261, %v1421
          %v1423 = vpop.f32.mrb[0].mxu0
          %v1424 = vpop.f32.mrb[0].mxu0
          %v1425 = vadd.f32 %v1264, %v1424
          %v1426 = vpop.f32.mrb[0].mxu0
          %1427 = vmatprep.mubr.bf16.mxu0 %v873
          %1428 = vmatmul.mubr.bf16.gmra.mrb[0].mxu0 %v872
          %v1429 = vpop.f32.mrb[0].mxu0
          %v1430 = vadd.f32 %v1269, %v1429
          %v1431 = vpop.f32.mrb[0].mxu0
          %v1432 = vpop.f32.mrb[0].mxu0
          %v1433 = vadd.f32 %v1272, %v1432
          %v1434 = vpop.f32.mrb[0].mxu0
          %1435 = vmatprep.mubr.bf16.mxu0 %v877
          %1436 = vmatmul.mubr.bf16.gmra.mrb[0].mxu0 %v876
          %v1437 = vpop.f32.mrb[0].mxu0
          %v1438 = vadd.f32 %v1277, %v1437
          %v1439 = vpop.f32.mrb[0].mxu0
          %v1440 = vpop.f32.mrb[0].mxu0
          %v1441 = vadd.f32 %v1280, %v1440
          %v1442 = vpop.f32.mrb[0].mxu0
          %1443 = vmatprep.mubr.bf16.mxu0 %v881
          %1444 = vmatmul.mubr.bf16.gmra.mrb[0].mxu0 %v880
          %v1445 = vpop.f32.mrb[0].mxu0
          %v1446 = vadd.f32 %v1285, %v1445
          %v1447 = vpop.f32.mrb[0].mxu0
          %v1448 = vpop.f32.mrb[0].mxu0
          %v1449 = vadd.f32 %v1288, %v1448
          %v1450 = vpop.f32.mrb[0].mxu0
          %1451 = vmatprep.mubr.bf16.mxu0 %v885
          %1452 = vmatmul.mubr.bf16.gmra.mrb[0].mxu0 %v884
          %v1453 = vpop.f32.mrb[0].mxu0
          %v1454 = vadd.f32 %v1293, %v1453
          %v1455 = vpop.f32.mrb[0].mxu0
          %v1456 = vpop.f32.mrb[0].mxu0
          %v1457 = vadd.f32 %v1296, %v1456
          %v1458 = vpop.f32.mrb[0].mxu0
          %1459 = vmatprep.mubr.bf16.mxu0 %v889
          %1460 = vmatmul.mubr.bf16.gmra.mrb[0].mxu0 %v888
          %v1461 = vpop.f32.mrb[0].mxu0
          %v1462 = vadd.f32 %v1301, %v1461
          %v1463 = vpop.f32.mrb[0].mxu0
          %v1464 = vpop.f32.mrb[0].mxu0
          %v1465 = vadd.f32 %v1304, %v1464
          %v1466 = vpop.f32.mrb[0].mxu0
          %1467 = vdwg.mxu0
          %v1468 = vadd.f32 %v538, %v1342
          %v1469 = vadd.f32 %v539, %v1345
          %v1470 = vadd.f32 %v540, %v1350
          %v1471 = vadd.f32 %v541, %v1353
          %v1472 = vadd.f32 %v542, %v1358
          %v1473 = vadd.f32 %v543, %v1361
          %v1474 = vadd.f32 %v544, %v1366
          %v1475 = vadd.f32 %v545, %v1369
          %v1476 = vadd.f32 %v546, %v1374
          %v1477 = vadd.f32 %v547, %v1377
          %v1478 = vadd.f32 %v548, %v1382
          %v1479 = vadd.f32 %v549, %v1385
          %v1480 = vadd.f32 %v550, %v1390
          %v1481 = vadd.f32 %v551, %v1393
          %v1482 = vadd.f32 %v552, %v1398
          %v1483 = vadd.f32 %v553, %v1401
          %v1484 = vadd.f32 %v554, %v1406
          %v1485 = vadd.f32 %v555, %v1409
          %v1486 = vadd.f32 %v556, %v1414
          %v1487 = vadd.f32 %v557, %v1417
          %v1488 = vadd.f32 %v558, %v1422
          %v1489 = vadd.f32 %v559, %v1425
          %v1490 = vadd.f32 %v560, %v1430
          %v1491 = vadd.f32 %v561, %v1433
          %v1492 = vadd.f32 %v562, %v1438
          %v1493 = vadd.f32 %v563, %v1441
          %v1494 = vadd.f32 %v564, %v1446
          %v1495 = vadd.f32 %v565, %v1449
          %v1496 = vadd.f32 %v566, %v1454
          %v1497 = vadd.f32 %v567, %v1457
          %v1498 = vadd.f32 %v568, %v1462
          %v1499 = vadd.f32 %v569, %v1465
          %1500 = vst [vmem:[#allocation2] sm:$0xff] %v1468
          %1501 = vst [vmem:[#allocation2 + $0x8] sm:$0xff] %v1469
          %1502 = vst [vmem:[#allocation2 + $0x10] sm:$0xff] %v1470
          %1503 = vst [vmem:[#allocation2 + $0x18] sm:$0xff] %v1471
          %1504 = vst [vmem:[#allocation2 + $0x20] sm:$0xff] %v1472
          %1505 = vst [vmem:[#allocation2 + $0x28] sm:$0xff] %v1473
          %1506 = vst [vmem:[#allocation2 + $0x30] sm:$0xff] %v1474
          %1507 = vst [vmem:[#allocation2 + $0x38] sm:$0xff] %v1475
          %1508 = vst [vmem:[#allocation2 + $0x40] sm:$0xff] %v1476
          %1509 = vst [vmem:[#allocation2 + $0x48] sm:$0xff] %v1477
          %1510 = vst [vmem:[#allocation2 + $0x50] sm:$0xff] %v1478
          %1511 = vst [vmem:[#allocation2 + $0x58] sm:$0xff] %v1479
          %1512 = vst [vmem:[#allocation2 + $0x60] sm:$0xff] %v1480
          %1513 = vst [vmem:[#allocation2 + $0x68] sm:$0xff] %v1481
          %1514 = vst [vmem:[#allocation2 + $0x70] sm:$0xff] %v1482
          %1515 = vst [vmem:[#allocation2 + $0x78] sm:$0xff] %v1483
          %1516 = vst [vmem:[#allocation2 + $0x80] sm:$0xff] %v1484
          %1517 = vst [vmem:[#allocation2 + $0x88] sm:$0xff] %v1485
          %1518 = vst [vmem:[#allocation2 + $0x90] sm:$0xff] %v1486
          %1519 = vst [vmem:[#allocation2 + $0x98] sm:$0xff] %v1487
          %1520 = vst [vmem:[#allocation2 + $0xa0] sm:$0xff] %v1488
          %1521 = vst [vmem:[#allocation2 + $0xa8] sm:$0xff] %v1489
          %1522 = vst [vmem:[#allocation2 + $0xb0] sm:$0xff] %v1490
          %1523 = vst [vmem:[#allocation2 + $0xb8] sm:$0xff] %v1491
          %1524 = vst [vmem:[#allocation2 + $0xc0] sm:$0xff] %v1492
          %1525 = vst [vmem:[#allocation2 + $0xc8] sm:$0xff] %v1493
          %1526 = vst [vmem:[#allocation2 + $0xd0] sm:$0xff] %v1494
          %1527 = vst [vmem:[#allocation2 + $0xd8] sm:$0xff] %v1495
          %1528 = vst [vmem:[#allocation2 + $0xe0] sm:$0xff] %v1496
          %1529 = vst [vmem:[#allocation2 + $0xe8] sm:$0xff] %v1497
          %1530 = vst [vmem:[#allocation2 + $0xf0] sm:$0xff] %v1498
          %1531 = vst [vmem:[#allocation2 + $0xf8] sm:$0xff] %v1499
        $region63: #{lightgcn_forward.4} parent=50 // pred_fallthru
          _
        %p1532 = scmp.eq.s32.totalorder %s33, 1
        // Predicated region
        $region64: #{lightgcn_forward.4} parent=50 // pred_check
          %p1533 = pneg %p1532
        $region65: #{lightgcn_forward.4} parent=50 // pred_check_branch
          %1535 = sbr.rel (%p1533) target = $region67
        $region66: #{lightgcn_forward.4} parent=50 // pred_region
          %v1536 = vld [vmem:[#allocation2] sm:$0xff]
          %v1537 = vld [vmem:[#allocation2 + $0x8] sm:$0xff]
          %v1538 = vld [vmem:[#allocation2 + $0x10] sm:$0xff]
          %v1539 = vld [vmem:[#allocation2 + $0x18] sm:$0xff]
          %v1540 = vld [vmem:[#allocation2 + $0x20] sm:$0xff]
          %v1541 = vld [vmem:[#allocation2 + $0x28] sm:$0xff]
          %v1542 = vld [vmem:[#allocation2 + $0x30] sm:$0xff]
          %v1543 = vld [vmem:[#allocation2 + $0x38] sm:$0xff]
          %v1544 = vld [vmem:[#allocation2 + $0x40] sm:$0xff]
          %v1545 = vld [vmem:[#allocation2 + $0x48] sm:$0xff]
          %v1546 = vld [vmem:[#allocation2 + $0x50] sm:$0xff]
          %v1547 = vld [vmem:[#allocation2 + $0x58] sm:$0xff]
          %v1548 = vld [vmem:[#allocation2 + $0x60] sm:$0xff]
          %v1549 = vld [vmem:[#allocation2 + $0x68] sm:$0xff]
          %v1550 = vld [vmem:[#allocation2 + $0x70] sm:$0xff]
          %v1551 = vld [vmem:[#allocation2 + $0x78] sm:$0xff]
          %v1552 = vld [vmem:[#allocation2 + $0x80] sm:$0xff]
          %v1553 = vld [vmem:[#allocation2 + $0x88] sm:$0xff]
          %v1554 = vld [vmem:[#allocation2 + $0x90] sm:$0xff]
          %v1555 = vld [vmem:[#allocation2 + $0x98] sm:$0xff]
          %v1556 = vld [vmem:[#allocation2 + $0xa0] sm:$0xff]
          %v1557 = vld [vmem:[#allocation2 + $0xa8] sm:$0xff]
          %v1558 = vld [vmem:[#allocation2 + $0xb0] sm:$0xff]
          %v1559 = vld [vmem:[#allocation2 + $0xb8] sm:$0xff]
          %v1560 = vld [vmem:[#allocation2 + $0xc0] sm:$0xff]
          %v1561 = vld [vmem:[#allocation2 + $0xc8] sm:$0xff]
          %v1562 = vld [vmem:[#allocation2 + $0xd0] sm:$0xff]
          %v1563 = vld [vmem:[#allocation2 + $0xd8] sm:$0xff]
          %v1564 = vld [vmem:[#allocation2 + $0xe0] sm:$0xff]
          %v1565 = vld [vmem:[#allocation2 + $0xe8] sm:$0xff]
          %v1566 = vld [vmem:[#allocation2 + $0xf0] sm:$0xff]
          %v1567 = vld [vmem:[#allocation2 + $0xf8] sm:$0xff]
          %v1568 = vpack.c.bf16 %v1537, %v1536
          %v1569 = vpack.c.bf16 %v1539, %v1538
          %v1570 = vpack.c.bf16 %v1541, %v1540
          %v1571 = vpack.c.bf16 %v1543, %v1542
          %v1572 = vpack.c.bf16 %v1545, %v1544
          %v1573 = vpack.c.bf16 %v1547, %v1546
          %v1574 = vpack.c.bf16 %v1549, %v1548
          %v1575 = vpack.c.bf16 %v1551, %v1550
          %v1576 = vpack.c.bf16 %v1553, %v1552
          %v1577 = vpack.c.bf16 %v1555, %v1554
          %v1578 = vpack.c.bf16 %v1557, %v1556
          %v1579 = vpack.c.bf16 %v1559, %v1558
          %v1580 = vpack.c.bf16 %v1561, %v1560
          %v1581 = vpack.c.bf16 %v1563, %v1562
          %v1582 = vpack.c.bf16 %v1565, %v1564
          %v1583 = vpack.c.bf16 %v1567, %v1566
          %v1600 = vunpack.c.l.b16 %v1568
          %v1601 = vunpack.c.h.b16 %v1568
          %v1602 = vunpack.c.l.b16 %v1569
          %v1603 = vunpack.c.h.b16 %v1569
          %v1604 = vunpack.c.l.b16 %v1570
          %v1605 = vunpack.c.h.b16 %v1570
          %v1606 = vunpack.c.l.b16 %v1571
          %v1607 = vunpack.c.h.b16 %v1571
          %v1608 = vunpack.c.l.b16 %v1572
          %v1609 = vunpack.c.h.b16 %v1572
          %v1610 = vunpack.c.l.b16 %v1573
          %v1611 = vunpack.c.h.b16 %v1573
          %v1612 = vunpack.c.l.b16 %v1574
          %v1613 = vunpack.c.h.b16 %v1574
          %v1614 = vunpack.c.l.b16 %v1575
          %v1615 = vunpack.c.h.b16 %v1575
          %v1616 = vunpack.c.l.b16 %v1576
          %v1617 = vunpack.c.h.b16 %v1576
          %v1618 = vunpack.c.l.b16 %v1577
          %v1619 = vunpack.c.h.b16 %v1577
          %v1620 = vunpack.c.l.b16 %v1578
          %v1621 = vunpack.c.h.b16 %v1578
          %v1622 = vunpack.c.l.b16 %v1579
          %v1623 = vunpack.c.h.b16 %v1579
          %v1624 = vunpack.c.l.b16 %v1580
          %v1625 = vunpack.c.h.b16 %v1580
          %v1626 = vunpack.c.l.b16 %v1581
          %v1627 = vunpack.c.h.b16 %v1581
          %v1628 = vunpack.c.l.b16 %v1582
          %v1629 = vunpack.c.h.b16 %v1582
          %v1630 = vunpack.c.l.b16 %v1583
          %v1631 = vunpack.c.h.b16 %v1583
          %v1632 = vpack.c.b16 %v1600, %v1600
          %v1633 = vpack.c.b16 %v1601, %v1601
          %v1634 = vpack.c.b16 %v1602, %v1602
          %v1635 = vpack.c.b16 %v1603, %v1603
          %v1636 = vpack.c.b16 %v1604, %v1604
          %v1637 = vpack.c.b16 %v1605, %v1605
          %v1638 = vpack.c.b16 %v1606, %v1606
          %v1639 = vpack.c.b16 %v1607, %v1607
          %v1640 = vpack.c.b16 %v1608, %v1608
          %v1641 = vpack.c.b16 %v1609, %v1609
          %v1642 = vpack.c.b16 %v1610, %v1610
          %v1643 = vpack.c.b16 %v1611, %v1611
          %v1644 = vpack.c.b16 %v1612, %v1612
          %v1645 = vpack.c.b16 %v1613, %v1613
          %v1646 = vpack.c.b16 %v1614, %v1614
          %v1647 = vpack.c.b16 %v1615, %v1615
          %v1648 = vpack.c.b16 %v1616, %v1616
          %v1649 = vpack.c.b16 %v1617, %v1617
          %v1650 = vpack.c.b16 %v1618, %v1618
          %v1651 = vpack.c.b16 %v1619, %v1619
          %v1652 = vpack.c.b16 %v1620, %v1620
          %v1653 = vpack.c.b16 %v1621, %v1621
          %v1654 = vpack.c.b16 %v1622, %v1622
          %v1655 = vpack.c.b16 %v1623, %v1623
          %v1656 = vpack.c.b16 %v1624, %v1624
          %v1657 = vpack.c.b16 %v1625, %v1625
          %v1658 = vpack.c.b16 %v1626, %v1626
          %v1659 = vpack.c.b16 %v1627, %v1627
          %v1660 = vpack.c.b16 %v1628, %v1628
          %v1661 = vpack.c.b16 %v1629, %v1629
          %v1662 = vpack.c.b16 %v1630, %v1630
          %v1663 = vpack.c.b16 %v1631, %v1631
          %1696 = vst [vmem:[%s416] sm:$0xf] %v1632
          %1697 = vst [vmem:[%s416 + $0x4] sm:$0xf] %v1633
          %1698 = vst [vmem:[%s416 + $0x8] sm:$0xf] %v1634
          %1699 = vst [vmem:[%s416 + $0xc] sm:$0xf] %v1635
          %1700 = vst [vmem:[%s416 + $0x10] sm:$0xf] %v1636
          %1701 = vst [vmem:[%s416 + $0x14] sm:$0xf] %v1637
          %1702 = vst [vmem:[%s416 + $0x18] sm:$0xf] %v1638
          %1703 = vst [vmem:[%s416 + $0x1c] sm:$0xf] %v1639
          %1704 = vst [vmem:[%s416 + $0x20] sm:$0xf] %v1640
          %1705 = vst [vmem:[%s416 + $0x24] sm:$0xf] %v1641
          %1706 = vst [vmem:[%s416 + $0x28] sm:$0xf] %v1642
          %1707 = vst [vmem:[%s416 + $0x2c] sm:$0xf] %v1643
          %1708 = vst [vmem:[%s416 + $0x30] sm:$0xf] %v1644
          %1709 = vst [vmem:[%s416 + $0x34] sm:$0xf] %v1645
          %1710 = vst [vmem:[%s416 + $0x38] sm:$0xf] %v1646
          %1711 = vst [vmem:[%s416 + $0x3c] sm:$0xf] %v1647
          %1712 = vst [vmem:[%s416 + $0x40] sm:$0xf] %v1648
          %1713 = vst [vmem:[%s416 + $0x44] sm:$0xf] %v1649
          %1714 = vst [vmem:[%s416 + $0x48] sm:$0xf] %v1650
          %1715 = vst [vmem:[%s416 + $0x4c] sm:$0xf] %v1651
          %1716 = vst [vmem:[%s416 + $0x50] sm:$0xf] %v1652
          %1717 = vst [vmem:[%s416 + $0x54] sm:$0xf] %v1653
          %1718 = vst [vmem:[%s416 + $0x58] sm:$0xf] %v1654
          %1719 = vst [vmem:[%s416 + $0x5c] sm:$0xf] %v1655
          %1720 = vst [vmem:[%s416 + $0x60] sm:$0xf] %v1656
          %1721 = vst [vmem:[%s416 + $0x64] sm:$0xf] %v1657
          %1722 = vst [vmem:[%s416 + $0x68] sm:$0xf] %v1658
          %1723 = vst [vmem:[%s416 + $0x6c] sm:$0xf] %v1659
          %1724 = vst [vmem:[%s416 + $0x70] sm:$0xf] %v1660
          %1725 = vst [vmem:[%s416 + $0x74] sm:$0xf] %v1661
          %1726 = vst [vmem:[%s416 + $0x78] sm:$0xf] %v1662
          %1727 = vst [vmem:[%s416 + $0x7c] sm:$0xf] %v1663
          %v1728 = vld [vmem:[%s410] sm:$0xff]
          %v1729 = vld [vmem:[%s410 + $0x8] sm:$0xff]
          %v1730 = vld [vmem:[%s410 + $0x10] sm:$0xff]
          %v1731 = vld [vmem:[%s410 + $0x18] sm:$0xff]
          %v1732 = vld [vmem:[%s410 + $0x20] sm:$0xff]
          %v1733 = vld [vmem:[%s410 + $0x28] sm:$0xff]
          %v1734 = vld [vmem:[%s410 + $0x30] sm:$0xff]
          %v1735 = vld [vmem:[%s410 + $0x38] sm:$0xff]
          %v1736 = vld [vmem:[%s410 + $0x40] sm:$0xff]
          %v1737 = vld [vmem:[%s410 + $0x48] sm:$0xff]
          %v1738 = vld [vmem:[%s410 + $0x50] sm:$0xff]
          %v1739 = vld [vmem:[%s410 + $0x58] sm:$0xff]
          %v1740 = vld [vmem:[%s410 + $0x60] sm:$0xff]
          %v1741 = vld [vmem:[%s410 + $0x68] sm:$0xff]
          %v1742 = vld [vmem:[%s410 + $0x70] sm:$0xff]
          %v1743 = vld [vmem:[%s410 + $0x78] sm:$0xff]
          %v1744 = vld [vmem:[%s410 + $0x80] sm:$0xff]
          %v1745 = vld [vmem:[%s410 + $0x88] sm:$0xff]
          %v1746 = vld [vmem:[%s410 + $0x90] sm:$0xff]
          %v1747 = vld [vmem:[%s410 + $0x98] sm:$0xff]
          %v1748 = vld [vmem:[%s410 + $0xa0] sm:$0xff]
          %v1749 = vld [vmem:[%s410 + $0xa8] sm:$0xff]
          %v1750 = vld [vmem:[%s410 + $0xb0] sm:$0xff]
          %v1751 = vld [vmem:[%s410 + $0xb8] sm:$0xff]
          %v1752 = vld [vmem:[%s410 + $0xc0] sm:$0xff]
          %v1753 = vld [vmem:[%s410 + $0xc8] sm:$0xff]
          %v1754 = vld [vmem:[%s410 + $0xd0] sm:$0xff]
          %v1755 = vld [vmem:[%s410 + $0xd8] sm:$0xff]
          %v1756 = vld [vmem:[%s410 + $0xe0] sm:$0xff]
          %v1757 = vld [vmem:[%s410 + $0xe8] sm:$0xff]
          %v1758 = vld [vmem:[%s410 + $0xf0] sm:$0xff]
          %v1759 = vld [vmem:[%s410 + $0xf8] sm:$0xff]
          %v1760 = vadd.f32 %v1728, %v1536
          %v1761 = vadd.f32 %v1729, %v1537
          %v1762 = vadd.f32 %v1730, %v1538
          %v1763 = vadd.f32 %v1731, %v1539
          %v1764 = vadd.f32 %v1732, %v1540
          %v1765 = vadd.f32 %v1733, %v1541
          %v1766 = vadd.f32 %v1734, %v1542
          %v1767 = vadd.f32 %v1735, %v1543
          %v1768 = vadd.f32 %v1736, %v1544
          %v1769 = vadd.f32 %v1737, %v1545
          %v1770 = vadd.f32 %v1738, %v1546
          %v1771 = vadd.f32 %v1739, %v1547
          %v1772 = vadd.f32 %v1740, %v1548
          %v1773 = vadd.f32 %v1741, %v1549
          %v1774 = vadd.f32 %v1742, %v1550
          %v1775 = vadd.f32 %v1743, %v1551
          %v1776 = vadd.f32 %v1744, %v1552
          %v1777 = vadd.f32 %v1745, %v1553
          %v1778 = vadd.f32 %v1746, %v1554
          %v1779 = vadd.f32 %v1747, %v1555
          %v1780 = vadd.f32 %v1748, %v1556
          %v1781 = vadd.f32 %v1749, %v1557
          %v1782 = vadd.f32 %v1750, %v1558
          %v1783 = vadd.f32 %v1751, %v1559
          %v1784 = vadd.f32 %v1752, %v1560
          %v1785 = vadd.f32 %v1753, %v1561
          %v1786 = vadd.f32 %v1754, %v1562
          %v1787 = vadd.f32 %v1755, %v1563
          %v1788 = vadd.f32 %v1756, %v1564
          %v1789 = vadd.f32 %v1757, %v1565
          %v1790 = vadd.f32 %v1758, %v1566
          %v1791 = vadd.f32 %v1759, %v1567
          %1792 = vst [vmem:[%s422] sm:$0xff] %v1760
          %1793 = vst [vmem:[%s422 + $0x8] sm:$0xff] %v1761
          %1794 = vst [vmem:[%s422 + $0x10] sm:$0xff] %v1762
          %1795 = vst [vmem:[%s422 + $0x18] sm:$0xff] %v1763
          %1796 = vst [vmem:[%s422 + $0x20] sm:$0xff] %v1764
          %1797 = vst [vmem:[%s422 + $0x28] sm:$0xff] %v1765
          %1798 = vst [vmem:[%s422 + $0x30] sm:$0xff] %v1766
          %1799 = vst [vmem:[%s422 + $0x38] sm:$0xff] %v1767
          %1800 = vst [vmem:[%s422 + $0x40] sm:$0xff] %v1768
          %1801 = vst [vmem:[%s422 + $0x48] sm:$0xff] %v1769
          %1802 = vst [vmem:[%s422 + $0x50] sm:$0xff] %v1770
          %1803 = vst [vmem:[%s422 + $0x58] sm:$0xff] %v1771
          %1804 = vst [vmem:[%s422 + $0x60] sm:$0xff] %v1772
          %1805 = vst [vmem:[%s422 + $0x68] sm:$0xff] %v1773
          %1806 = vst [vmem:[%s422 + $0x70] sm:$0xff] %v1774
          %1807 = vst [vmem:[%s422 + $0x78] sm:$0xff] %v1775
          %1808 = vst [vmem:[%s422 + $0x80] sm:$0xff] %v1776
          %1809 = vst [vmem:[%s422 + $0x88] sm:$0xff] %v1777
          %1810 = vst [vmem:[%s422 + $0x90] sm:$0xff] %v1778
          %1811 = vst [vmem:[%s422 + $0x98] sm:$0xff] %v1779
          %1812 = vst [vmem:[%s422 + $0xa0] sm:$0xff] %v1780
          %1813 = vst [vmem:[%s422 + $0xa8] sm:$0xff] %v1781
          %1814 = vst [vmem:[%s422 + $0xb0] sm:$0xff] %v1782
          %1815 = vst [vmem:[%s422 + $0xb8] sm:$0xff] %v1783
          %1816 = vst [vmem:[%s422 + $0xc0] sm:$0xff] %v1784
          %1817 = vst [vmem:[%s422 + $0xc8] sm:$0xff] %v1785
          %1818 = vst [vmem:[%s422 + $0xd0] sm:$0xff] %v1786
          %1819 = vst [vmem:[%s422 + $0xd8] sm:$0xff] %v1787
          %1820 = vst [vmem:[%s422 + $0xe0] sm:$0xff] %v1788
          %1821 = vst [vmem:[%s422 + $0xe8] sm:$0xff] %v1789
          %1822 = vst [vmem:[%s422 + $0xf0] sm:$0xff] %v1790
          %1823 = vst [vmem:[%s422 + $0xf8] sm:$0xff] %v1791
        $region67: #{lightgcn_forward.4} parent=50 // pred_fallthru
          _
        %s1824 = smul.u32 32, %s32
        %p1825 = scmp.lt.s32.totalorder %s1824, 127
        %s1826 = scalar_select %p1825, %s1824, 127
        %s1827 = smul.addr %s1826, 4
        %s1828 = scalar_lea.vmem %s5, %s1827
        %s1829 = smul.u32 32, %s32
        %p1830 = scmp.lt.s32.totalorder %s1829, 127
        %s1831 = scalar_select %p1830, %s1829, 127
        %s1832 = smul.addr %s1831, 8
        %s1833 = scalar_lea.vmem %s6, %s1832
        // Predicated region
        $region68: #{lightgcn_forward.4} parent=50 // pred_check
          %p1834 = pneg %p139
        $region69: #{lightgcn_forward.4} parent=50 // pred_check_branch
          %1836 = sbr.rel (%p1834) target = $region71
        $region70: #{lightgcn_forward.4} parent=50 // pred_region
          %s1837 = smul.u32 32, %s32
        $region71: #{lightgcn_forward.4} parent=50 // pred_fallthru
          _
        // Predicated region
        $region72: #{lightgcn_forward.4} parent=50 // pred_check
          %p1838 = pneg %p165
        $region73: #{lightgcn_forward.4} parent=50 // pred_check_branch
          %1840 = sbr.rel (%p1838) target = $region75
        $region74: #{lightgcn_forward.4} parent=50 // pred_region
          %s1841 = smul.u32 32, %s32
        $region75: #{lightgcn_forward.4} parent=50 // pred_fallthru
          _
      $region51: #{lightgcn_forward.4} parent=5 // pred_fallthru
        _
      %p1842 = scmp.le.s32.totalorder 2, %s23
      // Predicated region
      $region76: #{lightgcn_forward.4} parent=5 // pred_check
        %p1843 = pneg %p1842
      $region77: #{lightgcn_forward.4} parent=5 // pred_check_branch
        %1845 = sbr.rel (%p1843) target = $region79
      $region78: #{lightgcn_forward.4} parent=5 // pred_region
        %s1846 = ssub.s32 %s23, 2
        // Predicated region
        $region80: #{lightgcn_forward.4} parent=78 // pred_check
          %p1847 = pneg %p145
        $region81: #{lightgcn_forward.4} parent=78 // pred_check_branch
          %1849 = sbr.rel (%p1847) target = $region83
        $region82: #{lightgcn_forward.4} parent=78 // pred_region
          %s1850 = smul.u32 32, %s34
          %p1851 = scmp.lt.s32.totalorder %s1850, 127
          %s1852 = scalar_select %p1851, %s1850, 127
          %s1853 = smul.addr %s1852, 4
          %s1854 = scalar_lea.vmem %s5, %s1853
        $region83: #{lightgcn_forward.4} parent=78 // pred_fallthru
          _
        // Predicated region
        $region84: #{lightgcn_forward.4} parent=78 // pred_check
          %p1855 = pneg %p171
        $region85: #{lightgcn_forward.4} parent=78 // pred_check_branch
          %1857 = sbr.rel (%p1855) target = $region87
        $region86: #{lightgcn_forward.4} parent=78 // pred_region
          %s1858 = smul.u32 32, %s34
          %p1859 = scmp.lt.s32.totalorder %s1858, 127
          %s1860 = scalar_select %p1859, %s1858, 127
          %s1861 = smul.addr %s1860, 8
          %s1862 = scalar_lea.vmem %s6, %s1861
        $region87: #{lightgcn_forward.4} parent=78 // pred_fallthru
          _
      $region79: #{lightgcn_forward.4} parent=5 // pred_fallthru
        _
    $region6: #{lightgcn_forward.4} parent=1 // loop_footer
      %s27 = sadd.s32 1, %s23
    $region7: #{lightgcn_forward.4} parent=1 // loop_footer_branch
      %22 = sbr.rel target = $region3
    $region8: #{lightgcn_forward.4} parent=1 // loop_exit
      _

// kernel: lightgcn_forward.6
$region0: #{lightgcn_forward.6}
  #allocation0 [shape = 'u32[]', space=smem, size = 0x4, offset = 0x4, fixed_abs, tag = 'smem constant byte address 0x4 - core index']
  #allocation1 [shape = 'u32[144,128]{1,0:T(1,128)}', space=vmem, size = 0x12000, scoped, tag = 'internal scratch']
  #allocation2 [shape = 'f32[256,128]{1,0:T(8,128)}', space=vmem, size = 0x20000, scoped, tag = 'scratch operand']
  #allocation3 [shape = 's32[1]{0}', space=sflag, size = 0x4, scoped, tag = 'scoped memory for lightgcn_forward.6']
  #allocation4 [shape = 'u8[512]{0}', space=smem, size = 0x200, scoped, tag = 'prefetched SMEM operand 0']
  #allocation5 [shape = 'u8[512]{0}', space=smem, size = 0x200, scoped, tag = 'prefetched SMEM operand 1']
  %s0 = inlined_call_operand.vmem [shape: s32[8], index: 0, kind: input, shape index: {}]
  %s1 = inlined_call_operand.vmem [shape: s32[4], index: 1, kind: input, shape index: {}]
  %s2 = inlined_call_operand.vmem [shape: bf16[1024,1024], index: 2, kind: input, shape index: {}]
  %s3 = inlined_call_operand.vmem [shape: bf16[1024,128], index: 3, kind: input, shape index: {}]
  %s4 = inlined_call_operand.vmem [shape: f32[1024,128], index: 4, kind: input, shape index: {}, may-alias: {4,6}]
  %s5 = inlined_call_operand.hbm [shape: bf16[1024,128], index: 5, kind: output, shape index: {0}]
  %s6 = inlined_call_operand.vmem [shape: f32[1024,128], index: 6, kind: output, shape index: {1}, may-alias: {4,6}]
  %7 = xla_tuple %s5, %s6
  %s8 = sld [smem:[#allocation0]]
  $region88: #{lightgcn_forward.6} parent=0
    _
  %s10 = ssub.s32 1, %s8
  %s11 = scalar_select 0, %s10, %s8
  %s12 = sshll.u32 %s0, 4
  %s13 = int_to_ptr.vmem [resolvable:$true] %s12
  %15 = dma.vmem_to_smem %s13, 16, [#allocation4], [#allocation3]
  %s16 = sshll.u32 %s1, 4
  %s17 = int_to_ptr.vmem [resolvable:$true] %s16
  %19 = dma.vmem_to_smem %s17, 16, [#allocation5], [#allocation3]
  %20 = dma.done [#allocation3], 32
  %21 = sfence
  $region1: #{lightgcn_forward.6} parent=0
    #allocation6 [shape = 'u8[524288]{0}', space=vmem, size = 0x80000, scoped, tag = 'input window, operand 2']
    #allocation7 [shape = 'u8[131072]{0}', space=vmem, size = 0x20000, scoped, tag = 'output window, operand 0']
    #allocation8 [shape = 's32[2]{0}', space=sflag, size = 0x8, scoped, tag = 'scoped memory for lightgcn_forward.6']
    %22 = vsyncpa [#allocation8], 0
    %s23 = scalar_lea.sflag [#allocation8], 1
    %24 = vsyncpa %s23, 0
    loop: start=0, step=1, limit=10
    $region2: #{lightgcn_forward.6} parent=1 // loop_pre_header
      _
    $region3: #{lightgcn_forward.6} parent=1 // loop_header
      %s26 = sphi 0, %s30
      %p27 = scmp.ge.s32.totalorder %s26, 10
      %s33 = sphi 0, %s45
      %s34 = sphi 0, %s41
      %s35 = sphi 0, %s33
      %s36 = sphi 0, %s34
      %s37 = sphi 0, %s35
      %s38 = sphi 0, %s36
      %s56 = sphi 0, %s58
      %s59 = sphi 0, %s56
      %s60 = sphi 0, %s59
      %s76 = sphi 0, %s60
      %s80 = sphi 0, %s80
      %s82 = sphi 0, %s80
      %s83 = sphi 0, %s82
      %s97 = sphi 0, %s83
      %s103 = sphi 0, %s105
      %s106 = sphi 0, %s103
      %s107 = sphi 0, %s106
      %s123 = sphi 0, %s107
      %s129 = sphi 0, %s131
      %s132 = sphi 0, %s129
      %s133 = sphi 0, %s132
      %s149 = sphi 0, %s133
      %s155 = sphi 0, %s157
      %s158 = sphi 0, %s155
      %s159 = sphi 0, %s158
      %s175 = sphi 0, %s159
    $region4: #{lightgcn_forward.6} parent=1 // loop_header_branch
      %29 = sbr.rel (%p27) target = $region8
    $region5: #{lightgcn_forward.6} parent=1 // loop_body
      %s31 = ssub.s32 %s26, 1
      %s32 = ssub.s32 %s26, 2
      %s39 = sadd.s32 1, %s34
      %p40 = scmp.ge.s32.totalorder %s39, 2
      %s41 = scalar_select %p40, 0, %s39
      %s42 = sadd.s32 1, %s33
      %s43 = scalar_select %p40, %s42, %s33
      %p44 = scmp.ge.s32.totalorder %s43, 4
      %s45 = scalar_select %p44, 0, %s43
      %s46 = smul.u32 %s33, 2
      %s47 = sadd.s32 %s46, %s34
      %s48 = sld [smem:[#allocation4 + %s47]]
      %s49 = smul.u32 %s45, 2
      %s50 = sadd.s32 %s49, %s41
      %s51 = sld [smem:[#allocation4 + %s50]]
      %s52 = ssub.s32 %s33, %s45
      %s53 = ssub.s32 %s48, %s51
      %s54 = sor.u32 %s52, %s53
      %p55 = scmp.eq.s32.totalorder %s54, 0
      %s57 = sadd.s32 %s56, 1
      %s58 = scalar_select %p55, %s56, %s57
      %p61 = pneg %p55
      %p62 = scmp.eq.s32.totalorder %s26, 7
      %p63 = por %p61, %p62
      %p64 = scmp.ne.s32.totalorder %s56, %s59
      %p65 = scmp.eq.s32.totalorder %s26, 0
      %p66 = por %p64, %p65
      %p67 = scmp.ne.s32.totalorder %s56, %s59
      %p68 = scmp.eq.s32.totalorder %s31, 7
      %p69 = por %p67, %p68
      %p70 = scmp.ne.s32.totalorder %s59, %s60
      %p71 = scmp.eq.s32.totalorder %s31, 0
      %p72 = por %p70, %p71
      %p73 = scmp.ne.s32.totalorder %s59, %s60
      %p74 = scmp.eq.s32.totalorder %s32, 7
      %p75 = por %p73, %p74
      %p77 = scmp.ne.s32.totalorder %s60, %s76
      %p78 = scmp.eq.s32.totalorder %s32, 0
      %p79 = por %p77, %p78
      %s81 = sadd.s32 %s80, 1
      %p84 = scmp.eq.s32.totalorder %s26, 7
      %p85 = scmp.ne.s32.totalorder %s80, %s82
      %p86 = scmp.eq.s32.totalorder %s26, 0
      %p87 = por %p85, %p86
      %p88 = scmp.ne.s32.totalorder %s80, %s82
      %p89 = scmp.eq.s32.totalorder %s31, 7
      %p90 = por %p88, %p89
      %p91 = scmp.ne.s32.totalorder %s82, %s83
      %p92 = scmp.eq.s32.totalorder %s31, 0
      %p93 = por %p91, %p92
      %p94 = scmp.ne.s32.totalorder %s82, %s83
      %p95 = scmp.eq.s32.totalorder %s32, 7
      %p96 = por %p94, %p95
      %p98 = scmp.ne.s32.totalorder %s83, %s97
      %p99 = scmp.eq.s32.totalorder %s32, 0
      %p100 = por %p98, %p99
      %s101 = ssub.s32 %s33, %s45
      %p102 = scmp.eq.s32.totalorder %s101, 0
      %s104 = sadd.s32 %s103, 1
      %s105 = scalar_select %p102, %s103, %s104
      %p108 = pneg %p102
      %p109 = scmp.eq.s32.totalorder %s26, 7
      %p110 = por %p108, %p109
      %p111 = scmp.ne.s32.totalorder %s103, %s106
      %p112 = scmp.eq.s32.totalorder %s26, 0
      %p113 = por %p111, %p112
      %p114 = scmp.ne.s32.totalorder %s103, %s106
      %p115 = scmp.eq.s32.totalorder %s31, 7
      %p116 = por %p114, %p115
      %p117 = scmp.ne.s32.totalorder %s106, %s107
      %p118 = scmp.eq.s32.totalorder %s31, 0
      %p119 = por %p117, %p118
      %p120 = scmp.ne.s32.totalorder %s106, %s107
      %p121 = scmp.eq.s32.totalorder %s32, 7
      %p122 = por %p120, %p121
      %p124 = scmp.ne.s32.totalorder %s107, %s123
      %p125 = scmp.eq.s32.totalorder %s32, 0
      %p126 = por %p124, %p125
      %s127 = ssub.s32 %s33, %s45
      %p128 = scmp.eq.s32.totalorder %s127, 0
      %s130 = sadd.s32 %s129, 1
      %s131 = scalar_select %p128, %s129, %s130
      %p134 = pneg %p128
      %p135 = scmp.eq.s32.totalorder %s26, 7
      %p136 = por %p134, %p135
      %p137 = scmp.ne.s32.totalorder %s129, %s132
      %p138 = scmp.eq.s32.totalorder %s26, 0
      %p139 = por %p137, %p138
      %p140 = scmp.ne.s32.totalorder %s129, %s132
      %p141 = scmp.eq.s32.totalorder %s31, 7
      %p142 = por %p140, %p141
      %p143 = scmp.ne.s32.totalorder %s132, %s133
      %p144 = scmp.eq.s32.totalorder %s31, 0
      %p145 = por %p143, %p144
      %p146 = scmp.ne.s32.totalorder %s132, %s133
      %p147 = scmp.eq.s32.totalorder %s32, 7
      %p148 = por %p146, %p147
      %p150 = scmp.ne.s32.totalorder %s133, %s149
      %p151 = scmp.eq.s32.totalorder %s32, 0
      %p152 = por %p150, %p151
      %s153 = ssub.s32 %s33, %s45
      %p154 = scmp.eq.s32.totalorder %s153, 0
      %s156 = sadd.s32 %s155, 1
      %s157 = scalar_select %p154, %s155, %s156
      %p160 = pneg %p154
      %p161 = scmp.eq.s32.totalorder %s26, 7
      %p162 = por %p160, %p161
      %p163 = scmp.ne.s32.totalorder %s155, %s158
      %p164 = scmp.eq.s32.totalorder %s26, 0
      %p165 = por %p163, %p164
      %p166 = scmp.ne.s32.totalorder %s155, %s158
      %p167 = scmp.eq.s32.totalorder %s31, 7
      %p168 = por %p166, %p167
      %p169 = scmp.ne.s32.totalorder %s158, %s159
      %p170 = scmp.eq.s32.totalorder %s31, 0
      %p171 = por %p169, %p170
      %p172 = scmp.ne.s32.totalorder %s158, %s159
      %p173 = scmp.eq.s32.totalorder %s32, 7
      %p174 = por %p172, %p173
      %p176 = scmp.ne.s32.totalorder %s159, %s175
      %p177 = scmp.eq.s32.totalorder %s32, 0
      %p178 = por %p176, %p177
      %p179 = scmp.le.s32.totalorder 1, %s26
      %p180 = scmp.lt.s32.totalorder %s26, 9
      %p181 = pnand %p179, %p180
      %p182 = pneg %p181
      // Predicated region
      $region9: #{lightgcn_forward.6} parent=5 // pred_check
        _
      $region10: #{lightgcn_forward.6} parent=5 // pred_check_branch
        %184 = sbr.rel (%p181) target = $region12
      $region11: #{lightgcn_forward.6} parent=5 // pred_region
        %s185 = ssub.s32 %s26, 1
        // Predicated region
        $region13: #{lightgcn_forward.6} parent=11 // pred_check
          %p186 = pneg %p93
        $region14: #{lightgcn_forward.6} parent=11 // pred_check_branch
          %188 = sbr.rel (%p186) target = $region16
        $region15: #{lightgcn_forward.6} parent=11 // pred_region
          _
        $region16: #{lightgcn_forward.6} parent=11 // pred_fallthru
          _
      $region12: #{lightgcn_forward.6} parent=5 // pred_fallthru
        _
      %p189 = scmp.lt.s32.totalorder %s26, 8
      // Predicated region
      $region17: #{lightgcn_forward.6} parent=5 // pred_check
        %p190 = pneg %p189
      $region18: #{lightgcn_forward.6} parent=5 // pred_check_branch
        %192 = sbr.rel (%p190) target = $region20
      $region19: #{lightgcn_forward.6} parent=5 // pred_region
        // Predicated region
        $region21: #{lightgcn_forward.6} parent=19 // pred_check
          %p193 = pneg %p66
        $region22: #{lightgcn_forward.6} parent=19 // pred_check_branch
          %195 = sbr.rel (%p193) target = $region24
        $region23: #{lightgcn_forward.6} parent=19 // pred_region
          %s196 = sand.u32 %s56, 1
          %s197 = sand.u32 %s56, 1
          %s198 = smul.addr %s197, 512
          %s199 = scalar_lea.vmem [#allocation6], %s198
          %s200 = smul.u32 %s33, 2
          %s201 = sadd.s32 %s200, %s34
          %s202 = sld [smem:[#allocation4 + %s201]]
          %s203 = smul.u32 32, %s33
          %s204 = smul.u32 4, %s202
          %s205 = smul.addr %s203, 8
          %s206 = sadd.s32 %s204, %s205
          %s207 = smul.addr %s206, 4
          %s208 = scalar_lea.vmem %s2, %s207
          // Predicated region
          $region25: #{lightgcn_forward.6} parent=23 // pred_check
            _
          $region26: #{lightgcn_forward.6} parent=23 // pred_check_branch
            %210 = sbr.rel (0) target = $region28
          $region27: #{lightgcn_forward.6} parent=23 // pred_region
            // Predicated region
            $region29: #{lightgcn_forward.6} parent=27 // pred_check
              _
            $region30: #{lightgcn_forward.6} parent=27 // pred_check_branch
              %212 = sbr.rel (0) target = $region32
            $region31: #{lightgcn_forward.6} parent=27 // pred_region
              loop: start=0, step=1, limit=1
              $region33: #{lightgcn_forward.6} parent=31 // loop_pre_header
                _
              $region34: #{lightgcn_forward.6} parent=31 // loop_header
                %s214 = sphi 0, %s218
                %p215 = scmp.ge.s32.totalorder %s214, 1
                %s219 = sphi %s208, %s208
                %s220 = sphi %s199, %s199
              $region35: #{lightgcn_forward.6} parent=31 // loop_header_branch
                %217 = sbr.rel (%p215) target = $region39
              $region36: #{lightgcn_forward.6} parent=31 // loop_body
                %v221 = vld [vmem:[%s219] sm:$0xff]
                %222 = vst [vmem:[%s220] sm:$0xff] %v221
                %v223 = vld [vmem:[%s219 + $0x8] sm:$0xff]
                %224 = vst [vmem:[%s220 + $0x8] sm:$0xff] %v223
                %v225 = vld [vmem:[%s219 + $0x20] sm:$0xff]
                %226 = vst [vmem:[%s220 + $0x10] sm:$0xff] %v225
                %v227 = vld [vmem:[%s219 + $0x28] sm:$0xff]
                %228 = vst [vmem:[%s220 + $0x18] sm:$0xff] %v227
                %v229 = vld [vmem:[%s219 + $0x40] sm:$0xff]
                %230 = vst [vmem:[%s220 + $0x20] sm:$0xff] %v229
                %v231 = vld [vmem:[%s219 + $0x48] sm:$0xff]
                %232 = vst [vmem:[%s220 + $0x28] sm:$0xff] %v231
                %v233 = vld [vmem:[%s219 + $0x60] sm:$0xff]
                %234 = vst [vmem:[%s220 + $0x30] sm:$0xff] %v233
                %v235 = vld [vmem:[%s219 + $0x68] sm:$0xff]
                %236 = vst [vmem:[%s220 + $0x38] sm:$0xff] %v235
                %v237 = vld [vmem:[%s219 + $0x80] sm:$0xff]
                %238 = vst [vmem:[%s220 + $0x40] sm:$0xff] %v237
                %v239 = vld [vmem:[%s219 + $0x88] sm:$0xff]
                %240 = vst [vmem:[%s220 + $0x48] sm:$0xff] %v239
                %v241 = vld [vmem:[%s219 + $0xa0] sm:$0xff]
                %242 = vst [vmem:[%s220 + $0x50] sm:$0xff] %v241
                %v243 = vld [vmem:[%s219 + $0xa8] sm:$0xff]
                %244 = vst [vmem:[%s220 + $0x58] sm:$0xff] %v243
                %v245 = vld [vmem:[%s219 + $0xc0] sm:$0xff]
                %246 = vst [vmem:[%s220 + $0x60] sm:$0xff] %v245
                %v247 = vld [vmem:[%s219 + $0xc8] sm:$0xff]
                %248 = vst [vmem:[%s220 + $0x68] sm:$0xff] %v247
                %v249 = vld [vmem:[%s219 + $0xe0] sm:$0xff]
                %250 = vst [vmem:[%s220 + $0x70] sm:$0xff] %v249
                %v251 = vld [vmem:[%s219 + $0xe8] sm:$0xff]
                %252 = vst [vmem:[%s220 + $0x78] sm:$0xff] %v251
                %v253 = vld [vmem:[%s219 + $0x100] sm:$0xff]
                %254 = vst [vmem:[%s220 + $0x80] sm:$0xff] %v253
                %v255 = vld [vmem:[%s219 + $0x108] sm:$0xff]
                %256 = vst [vmem:[%s220 + $0x88] sm:$0xff] %v255
                %v257 = vld [vmem:[%s219 + $0x120] sm:$0xff]
                %258 = vst [vmem:[%s220 + $0x90] sm:$0xff] %v257
                %v259 = vld [vmem:[%s219 + $0x128] sm:$0xff]
                %260 = vst [vmem:[%s220 + $0x98] sm:$0xff] %v259
                %v261 = vld [vmem:[%s219 + $0x140] sm:$0xff]
                %262 = vst [vmem:[%s220 + $0xa0] sm:$0xff] %v261
                %v263 = vld [vmem:[%s219 + $0x148] sm:$0xff]
                %264 = vst [vmem:[%s220 + $0xa8] sm:$0xff] %v263
                %v265 = vld [vmem:[%s219 + $0x160] sm:$0xff]
                %266 = vst [vmem:[%s220 + $0xb0] sm:$0xff] %v265
                %v267 = vld [vmem:[%s219 + $0x168] sm:$0xff]
                %268 = vst [vmem:[%s220 + $0xb8] sm:$0xff] %v267
                %v269 = vld [vmem:[%s219 + $0x180] sm:$0xff]
                %270 = vst [vmem:[%s220 + $0xc0] sm:$0xff] %v269
                %v271 = vld [vmem:[%s219 + $0x188] sm:$0xff]
                %272 = vst [vmem:[%s220 + $0xc8] sm:$0xff] %v271
                %v273 = vld [vmem:[%s219 + $0x1a0] sm:$0xff]
                %274 = vst [vmem:[%s220 + $0xd0] sm:$0xff] %v273
                %v275 = vld [vmem:[%s219 + $0x1a8] sm:$0xff]
                %276 = vst [vmem:[%s220 + $0xd8] sm:$0xff] %v275
                %v277 = vld [vmem:[%s219 + $0x1c0] sm:$0xff]
                %278 = vst [vmem:[%s220 + $0xe0] sm:$0xff] %v277
                %v279 = vld [vmem:[%s219 + $0x1c8] sm:$0xff]
                %280 = vst [vmem:[%s220 + $0xe8] sm:$0xff] %v279
                %v281 = vld [vmem:[%s219 + $0x1e0] sm:$0xff]
                %282 = vst [vmem:[%s220 + $0xf0] sm:$0xff] %v281
                %v283 = vld [vmem:[%s219 + $0x1e8] sm:$0xff]
                %284 = vst [vmem:[%s220 + $0xf8] sm:$0xff] %v283
                %v285 = vld [vmem:[%s219 + $0x200] sm:$0xff]
                %286 = vst [vmem:[%s220 + $0x100] sm:$0xff] %v285
                %v287 = vld [vmem:[%s219 + $0x208] sm:$0xff]
                %288 = vst [vmem:[%s220 + $0x108] sm:$0xff] %v287
                %v289 = vld [vmem:[%s219 + $0x220] sm:$0xff]
                %290 = vst [vmem:[%s220 + $0x110] sm:$0xff] %v289
                %v291 = vld [vmem:[%s219 + $0x228] sm:$0xff]
                %292 = vst [vmem:[%s220 + $0x118] sm:$0xff] %v291
                %v293 = vld [vmem:[%s219 + $0x240] sm:$0xff]
                %294 = vst [vmem:[%s220 + $0x120] sm:$0xff] %v293
                %v295 = vld [vmem:[%s219 + $0x248] sm:$0xff]
                %296 = vst [vmem:[%s220 + $0x128] sm:$0xff] %v295
                %v297 = vld [vmem:[%s219 + $0x260] sm:$0xff]
                %298 = vst [vmem:[%s220 + $0x130] sm:$0xff] %v297
                %v299 = vld [vmem:[%s219 + $0x268] sm:$0xff]
                %300 = vst [vmem:[%s220 + $0x138] sm:$0xff] %v299
                %v301 = vld [vmem:[%s219 + $0x280] sm:$0xff]
                %302 = vst [vmem:[%s220 + $0x140] sm:$0xff] %v301
                %v303 = vld [vmem:[%s219 + $0x288] sm:$0xff]
                %304 = vst [vmem:[%s220 + $0x148] sm:$0xff] %v303
                %v305 = vld [vmem:[%s219 + $0x2a0] sm:$0xff]
                %306 = vst [vmem:[%s220 + $0x150] sm:$0xff] %v305
                %v307 = vld [vmem:[%s219 + $0x2a8] sm:$0xff]
                %308 = vst [vmem:[%s220 + $0x158] sm:$0xff] %v307
                %v309 = vld [vmem:[%s219 + $0x2c0] sm:$0xff]
                %310 = vst [vmem:[%s220 + $0x160] sm:$0xff] %v309
                %v311 = vld [vmem:[%s219 + $0x2c8] sm:$0xff]
                %312 = vst [vmem:[%s220 + $0x168] sm:$0xff] %v311
                %v313 = vld [vmem:[%s219 + $0x2e0] sm:$0xff]
                %314 = vst [vmem:[%s220 + $0x170] sm:$0xff] %v313
                %v315 = vld [vmem:[%s219 + $0x2e8] sm:$0xff]
                %316 = vst [vmem:[%s220 + $0x178] sm:$0xff] %v315
                %v317 = vld [vmem:[%s219 + $0x300] sm:$0xff]
                %318 = vst [vmem:[%s220 + $0x180] sm:$0xff] %v317
                %v319 = vld [vmem:[%s219 + $0x308] sm:$0xff]
                %320 = vst [vmem:[%s220 + $0x188] sm:$0xff] %v319
                %v321 = vld [vmem:[%s219 + $0x320] sm:$0xff]
                %322 = vst [vmem:[%s220 + $0x190] sm:$0xff] %v321
                %v323 = vld [vmem:[%s219 + $0x328] sm:$0xff]
                %324 = vst [vmem:[%s220 + $0x198] sm:$0xff] %v323
                %v325 = vld [vmem:[%s219 + $0x340] sm:$0xff]
                %326 = vst [vmem:[%s220 + $0x1a0] sm:$0xff] %v325
                %v327 = vld [vmem:[%s219 + $0x348] sm:$0xff]
                %328 = vst [vmem:[%s220 + $0x1a8] sm:$0xff] %v327
                %v329 = vld [vmem:[%s219 + $0x360] sm:$0xff]
                %330 = vst [vmem:[%s220 + $0x1b0] sm:$0xff] %v329
                %v331 = vld [vmem:[%s219 + $0x368] sm:$0xff]
                %332 = vst [vmem:[%s220 + $0x1b8] sm:$0xff] %v331
                %v333 = vld [vmem:[%s219 + $0x380] sm:$0xff]
                %334 = vst [vmem:[%s220 + $0x1c0] sm:$0xff] %v333
                %v335 = vld [vmem:[%s219 + $0x388] sm:$0xff]
                %336 = vst [vmem:[%s220 + $0x1c8] sm:$0xff] %v335
                %v337 = vld [vmem:[%s219 + $0x3a0] sm:$0xff]
                %338 = vst [vmem:[%s220 + $0x1d0] sm:$0xff] %v337
                %v339 = vld [vmem:[%s219 + $0x3a8] sm:$0xff]
                %340 = vst [vmem:[%s220 + $0x1d8] sm:$0xff] %v339
                %v341 = vld [vmem:[%s219 + $0x3c0] sm:$0xff]
                %342 = vst [vmem:[%s220 + $0x1e0] sm:$0xff] %v341
                %v343 = vld [vmem:[%s219 + $0x3c8] sm:$0xff]
                %344 = vst [vmem:[%s220 + $0x1e8] sm:$0xff] %v343
                %v345 = vld [vmem:[%s219 + $0x3e0] sm:$0xff]
                %346 = vst [vmem:[%s220 + $0x1f0] sm:$0xff] %v345
                %v347 = vld [vmem:[%s219 + $0x3e8] sm:$0xff]
                %348 = vst [vmem:[%s220 + $0x1f8] sm:$0xff] %v347
              $region37: #{lightgcn_forward.6} parent=31 // loop_footer
                %s218 = sadd.s32 1, %s214
              $region38: #{lightgcn_forward.6} parent=31 // loop_footer_branch
                %213 = sbr.rel target = $region34
              $region39: #{lightgcn_forward.6} parent=31 // loop_exit
                _
            $region32: #{lightgcn_forward.6} parent=27 // pred_fallthru
              _
            // Predicated region
            $region40: #{lightgcn_forward.6} parent=27 // pred_check
              _
            $region41: #{lightgcn_forward.6} parent=27 // pred_check_branch
              %350 = sbr.rel target = $region43
            $region42: #{lightgcn_forward.6} parent=27 // pred_region
              _
            $region43: #{lightgcn_forward.6} parent=27 // pred_fallthru
              _
          $region28: #{lightgcn_forward.6} parent=23 // pred_fallthru
            _
          %351 = vnop
        $region24: #{lightgcn_forward.6} parent=19 // pred_fallthru
          _
        // Predicated region
        $region44: #{lightgcn_forward.6} parent=19 // pred_check
          %p352 = pneg %p113
        $region45: #{lightgcn_forward.6} parent=19 // pred_check_branch
          %354 = sbr.rel (%p352) target = $region47
        $region46: #{lightgcn_forward.6} parent=19 // pred_region
          %s355 = smul.u32 32, %s33
          %p356 = scmp.lt.s32.totalorder %s355, 127
          %s357 = scalar_select %p356, %s355, 127
          %s358 = smul.addr %s357, 8
          %s359 = scalar_lea.vmem %s4, %s358
          %s360 = smul.u32 32, %s33
        $region47: #{lightgcn_forward.6} parent=19 // pred_fallthru
          _
      $region20: #{lightgcn_forward.6} parent=5 // pred_fallthru
        _
      %p361 = scmp.le.s32.totalorder 1, %s26
      %p362 = scmp.lt.s32.totalorder %s26, 9
      %p363 = pnand %p361, %p362
      %p364 = pneg %p363
      // Predicated region
      $region48: #{lightgcn_forward.6} parent=5 // pred_check
        _
      $region49: #{lightgcn_forward.6} parent=5 // pred_check_branch
        %366 = sbr.rel (%p363) target = $region51
      $region50: #{lightgcn_forward.6} parent=5 // pred_region
        %s367 = ssub.s32 %s26, 1
        %s368 = sand.u32 %s59, 1
        %s369 = sand.u32 %s59, 1
        %s370 = smul.addr %s369, 512
        %s371 = scalar_lea.vmem [#allocation6], %s370
        // Predicated region
        $region52: #{lightgcn_forward.6} parent=50 // pred_check
          %p372 = pneg %p72
        $region53: #{lightgcn_forward.6} parent=50 // pred_check_branch
          %374 = sbr.rel (%p372) target = $region55
        $region54: #{lightgcn_forward.6} parent=50 // pred_region
          _
        $region55: #{lightgcn_forward.6} parent=50 // pred_fallthru
          _
        %s375 = sand.u32 %s59, 1
        %s376 = sand.u32 %s59, 1
        %s377 = smul.addr %s376, 512
        %s378 = scalar_lea.vmem [#allocation6], %s377
        %p379 = pneg %p72
        %p380 = pneg %p69
        %p381 = pneg %p93
        %p382 = pneg %p90
        %s383 = smul.u32 32, %s35
        %p384 = scmp.lt.s32.totalorder %s383, 127
        %s385 = scalar_select %p384, %s383, 127
        %s386 = smul.addr %s385, 8
        %s387 = scalar_lea.vmem %s4, %s386
        %p388 = pneg %p119
        %p389 = pneg %p116
        %p390 = pneg %p145
        %p391 = pneg %p142
        %s392 = sand.u32 %s132, 1
        %s393 = scalar_lea.sflag [#allocation8], %s392
        %s394 = sand.u32 %s132, 1
        %s395 = smul.addr %s394, 128
        %s396 = scalar_lea.vmem [#allocation7], %s395
        %p397 = pneg %p171
        %p398 = pneg %p168
        %s399 = smul.u32 32, %s35
        %p400 = scmp.lt.s32.totalorder %s399, 127
        %s401 = scalar_select %p400, %s399, 127
        %s402 = smul.addr %s401, 8
        %s403 = scalar_lea.vmem %s6, %s402
        %s404 = smul.u32 %s35, 2
        %s405 = sadd.s32 %s404, %s36
        %s406 = sld [smem:[#allocation4 + %s405]]
        %s407 = smul.u32 32, %s35
        %s408 = smul.u32 4, %s406
        %s409 = smul.u32 32, %s35
        %p410 = scmp.lt.s32.totalorder %s409, 127
        %s411 = scalar_select %p410, %s409, 127
        %s412 = smul.addr %s411, 8
        %s413 = scalar_lea.vmem %s4, %s412
        %s414 = smul.u32 32, %s35
        %s415 = smul.u32 32, %s35
        %s416 = smul.u32 32, %s35
        %p417 = scmp.lt.s32.totalorder %s416, 127
        %s418 = scalar_select %p417, %s416, 127
        %s419 = smul.addr %s418, 8
        %s420 = scalar_lea.vmem %s6, %s419
        %s421 = smul.u32 32, %s35
        %p423 = scmp.eq.s32.totalorder %s36, 0
        // Predicated region
        $region56: #{lightgcn_forward.6} parent=50 // pred_check
          %p424 = pneg %p423
        $region57: #{lightgcn_forward.6} parent=50 // pred_check_branch
          %426 = sbr.rel (%p424) target = $region59
        $region58: #{lightgcn_forward.6} parent=50 // pred_region
          %427 = vst [vmem:[#allocation2] sm:$0xff] 0.0
          %428 = vst [vmem:[#allocation2 + $0x8] sm:$0xff] 0.0
          %429 = vst [vmem:[#allocation2 + $0x10] sm:$0xff] 0.0
          %430 = vst [vmem:[#allocation2 + $0x18] sm:$0xff] 0.0
          %431 = vst [vmem:[#allocation2 + $0x20] sm:$0xff] 0.0
          %432 = vst [vmem:[#allocation2 + $0x28] sm:$0xff] 0.0
          %433 = vst [vmem:[#allocation2 + $0x30] sm:$0xff] 0.0
          %434 = vst [vmem:[#allocation2 + $0x38] sm:$0xff] 0.0
          %435 = vst [vmem:[#allocation2 + $0x40] sm:$0xff] 0.0
          %436 = vst [vmem:[#allocation2 + $0x48] sm:$0xff] 0.0
          %437 = vst [vmem:[#allocation2 + $0x50] sm:$0xff] 0.0
          %438 = vst [vmem:[#allocation2 + $0x58] sm:$0xff] 0.0
          %439 = vst [vmem:[#allocation2 + $0x60] sm:$0xff] 0.0
          %440 = vst [vmem:[#allocation2 + $0x68] sm:$0xff] 0.0
          %441 = vst [vmem:[#allocation2 + $0x70] sm:$0xff] 0.0
          %442 = vst [vmem:[#allocation2 + $0x78] sm:$0xff] 0.0
          %443 = vst [vmem:[#allocation2 + $0x80] sm:$0xff] 0.0
          %444 = vst [vmem:[#allocation2 + $0x88] sm:$0xff] 0.0
          %445 = vst [vmem:[#allocation2 + $0x90] sm:$0xff] 0.0
          %446 = vst [vmem:[#allocation2 + $0x98] sm:$0xff] 0.0
          %447 = vst [vmem:[#allocation2 + $0xa0] sm:$0xff] 0.0
          %448 = vst [vmem:[#allocation2 + $0xa8] sm:$0xff] 0.0
          %449 = vst [vmem:[#allocation2 + $0xb0] sm:$0xff] 0.0
          %450 = vst [vmem:[#allocation2 + $0xb8] sm:$0xff] 0.0
          %451 = vst [vmem:[#allocation2 + $0xc0] sm:$0xff] 0.0
          %452 = vst [vmem:[#allocation2 + $0xc8] sm:$0xff] 0.0
          %453 = vst [vmem:[#allocation2 + $0xd0] sm:$0xff] 0.0
          %454 = vst [vmem:[#allocation2 + $0xd8] sm:$0xff] 0.0
          %455 = vst [vmem:[#allocation2 + $0xe0] sm:$0xff] 0.0
          %456 = vst [vmem:[#allocation2 + $0xe8] sm:$0xff] 0.0
          %457 = vst [vmem:[#allocation2 + $0xf0] sm:$0xff] 0.0
          %458 = vst [vmem:[#allocation2 + $0xf8] sm:$0xff] 0.0
        $region59: #{lightgcn_forward.6} parent=50 // pred_fallthru
          _
        %s459 = sld [smem:[#allocation5 + %s35]]
        %p460 = scmp.lt.s32.totalorder %s36, %s459
        // Predicated region
        $region60: #{lightgcn_forward.6} parent=50 // pred_check
          %p461 = pneg %p460
        $region61: #{lightgcn_forward.6} parent=50 // pred_check_branch
          %463 = sbr.rel (%p461) target = $region63
        $region62: #{lightgcn_forward.6} parent=50 // pred_region
          %s464 = smul.u32 %s35, 2
          %s465 = sadd.s32 %s464, %s36
          %s466 = sld [smem:[#allocation4 + %s465]]
          %s467 = smul.u32 %s466, 512
          %s468 = sshra.s32 %s467, 3
          %s469 = sand.u32 %s467, 7
          %s470 = smul.addr %s468, 4
          %s471 = scalar_lea.vmem %s3, %s470
          %v472 = vld [vmem:[%s471] sm:$0xf]
          %v473 = vld [vmem:[%s471 + $0x4] sm:$0xf]
          %v474 = vld [vmem:[%s471 + $0x8] sm:$0xf]
          %v475 = vld [vmem:[%s471 + $0xc] sm:$0xf]
          %v476 = vld [vmem:[%s471 + $0x10] sm:$0xf]
          %v477 = vld [vmem:[%s471 + $0x14] sm:$0xf]
          %v478 = vld [vmem:[%s471 + $0x18] sm:$0xf]
          %v479 = vld [vmem:[%s471 + $0x1c] sm:$0xf]
          %v480 = vld [vmem:[%s471 + $0x20] sm:$0xf]
          %v481 = vld [vmem:[%s471 + $0x24] sm:$0xf]
          %v482 = vld [vmem:[%s471 + $0x28] sm:$0xf]
          %v483 = vld [vmem:[%s471 + $0x2c] sm:$0xf]
          %v484 = vld [vmem:[%s471 + $0x30] sm:$0xf]
          %v485 = vld [vmem:[%s471 + $0x34] sm:$0xf]
          %v486 = vld [vmem:[%s471 + $0x38] sm:$0xf]
          %v487 = vld [vmem:[%s471 + $0x3c] sm:$0xf]
          %v488 = vld [vmem:[%s471 + $0x40] sm:$0xf]
          %v489 = vld [vmem:[%s471 + $0x44] sm:$0xf]
          %v490 = vld [vmem:[%s471 + $0x48] sm:$0xf]
          %v491 = vld [vmem:[%s471 + $0x4c] sm:$0xf]
          %v492 = vld [vmem:[%s471 + $0x50] sm:$0xf]
          %v493 = vld [vmem:[%s471 + $0x54] sm:$0xf]
          %v494 = vld [vmem:[%s471 + $0x58] sm:$0xf]
          %v495 = vld [vmem:[%s471 + $0x5c] sm:$0xf]
          %v496 = vld [vmem:[%s471 + $0x60] sm:$0xf]
          %v497 = vld [vmem:[%s471 + $0x64] sm:$0xf]
          %v498 = vld [vmem:[%s471 + $0x68] sm:$0xf]
          %v499 = vld [vmem:[%s471 + $0x6c] sm:$0xf]
          %v500 = vld [vmem:[%s471 + $0x70] sm:$0xf]
          %v501 = vld [vmem:[%s471 + $0x74] sm:$0xf]
          %v502 = vld [vmem:[%s471 + $0x78] sm:$0xf]
          %v503 = vld [vmem:[%s471 + $0x7c] sm:$0xf]
          %v504 = vld [vmem:[%s471 + $0x80] sm:$0xf]
          %v505 = vld [vmem:[%s471 + $0x84] sm:$0xf]
          %v506 = vld [vmem:[%s471 + $0x88] sm:$0xf]
          %v507 = vld [vmem:[%s471 + $0x8c] sm:$0xf]
          %v508 = vld [vmem:[%s471 + $0x90] sm:$0xf]
          %v509 = vld [vmem:[%s471 + $0x94] sm:$0xf]
          %v510 = vld [vmem:[%s471 + $0x98] sm:$0xf]
          %v511 = vld [vmem:[%s471 + $0x9c] sm:$0xf]
          %v512 = vld [vmem:[%s471 + $0xa0] sm:$0xf]
          %v513 = vld [vmem:[%s471 + $0xa4] sm:$0xf]
          %v514 = vld [vmem:[%s471 + $0xa8] sm:$0xf]
          %v515 = vld [vmem:[%s471 + $0xac] sm:$0xf]
          %v516 = vld [vmem:[%s471 + $0xb0] sm:$0xf]
          %v517 = vld [vmem:[%s471 + $0xb4] sm:$0xf]
          %v518 = vld [vmem:[%s471 + $0xb8] sm:$0xf]
          %v519 = vld [vmem:[%s471 + $0xbc] sm:$0xf]
          %v520 = vld [vmem:[%s471 + $0xc0] sm:$0xf]
          %v521 = vld [vmem:[%s471 + $0xc4] sm:$0xf]
          %v522 = vld [vmem:[%s471 + $0xc8] sm:$0xf]
          %v523 = vld [vmem:[%s471 + $0xcc] sm:$0xf]
          %v524 = vld [vmem:[%s471 + $0xd0] sm:$0xf]
          %v525 = vld [vmem:[%s471 + $0xd4] sm:$0xf]
          %v526 = vld [vmem:[%s471 + $0xd8] sm:$0xf]
          %v527 = vld [vmem:[%s471 + $0xdc] sm:$0xf]
          %v528 = vld [vmem:[%s471 + $0xe0] sm:$0xf]
          %v529 = vld [vmem:[%s471 + $0xe4] sm:$0xf]
          %v530 = vld [vmem:[%s471 + $0xe8] sm:$0xf]
          %v531 = vld [vmem:[%s471 + $0xec] sm:$0xf]
          %v532 = vld [vmem:[%s471 + $0xf0] sm:$0xf]
          %v533 = vld [vmem:[%s471 + $0xf4] sm:$0xf]
          %v534 = vld [vmem:[%s471 + $0xf8] sm:$0xf]
          %v535 = vld [vmem:[%s471 + $0xfc] sm:$0xf]
          %v536 = vld [vmem:[#allocation2] sm:$0xff]
          %v537 = vld [vmem:[#allocation2 + $0x8] sm:$0xff]
          %v538 = vld [vmem:[#allocation2 + $0x10] sm:$0xff]
          %v539 = vld [vmem:[#allocation2 + $0x18] sm:$0xff]
          %v540 = vld [vmem:[#allocation2 + $0x20] sm:$0xff]
          %v541 = vld [vmem:[#allocation2 + $0x28] sm:$0xff]
          %v542 = vld [vmem:[#allocation2 + $0x30] sm:$0xff]
          %v543 = vld [vmem:[#allocation2 + $0x38] sm:$0xff]
          %v544 = vld [vmem:[#allocation2 + $0x40] sm:$0xff]
          %v545 = vld [vmem:[#allocation2 + $0x48] sm:$0xff]
          %v546 = vld [vmem:[#allocation2 + $0x50] sm:$0xff]
          %v547 = vld [vmem:[#allocation2 + $0x58] sm:$0xff]
          %v548 = vld [vmem:[#allocation2 + $0x60] sm:$0xff]
          %v549 = vld [vmem:[#allocation2 + $0x68] sm:$0xff]
          %v550 = vld [vmem:[#allocation2 + $0x70] sm:$0xff]
          %v551 = vld [vmem:[#allocation2 + $0x78] sm:$0xff]
          %v552 = vld [vmem:[#allocation2 + $0x80] sm:$0xff]
          %v553 = vld [vmem:[#allocation2 + $0x88] sm:$0xff]
          %v554 = vld [vmem:[#allocation2 + $0x90] sm:$0xff]
          %v555 = vld [vmem:[#allocation2 + $0x98] sm:$0xff]
          %v556 = vld [vmem:[#allocation2 + $0xa0] sm:$0xff]
          %v557 = vld [vmem:[#allocation2 + $0xa8] sm:$0xff]
          %v558 = vld [vmem:[#allocation2 + $0xb0] sm:$0xff]
          %v559 = vld [vmem:[#allocation2 + $0xb8] sm:$0xff]
          %v560 = vld [vmem:[#allocation2 + $0xc0] sm:$0xff]
          %v561 = vld [vmem:[#allocation2 + $0xc8] sm:$0xff]
          %v562 = vld [vmem:[#allocation2 + $0xd0] sm:$0xff]
          %v563 = vld [vmem:[#allocation2 + $0xd8] sm:$0xff]
          %v564 = vld [vmem:[#allocation2 + $0xe0] sm:$0xff]
          %v565 = vld [vmem:[#allocation2 + $0xe8] sm:$0xff]
          %v566 = vld [vmem:[#allocation2 + $0xf0] sm:$0xff]
          %v567 = vld [vmem:[#allocation2 + $0xf8] sm:$0xff]
          %v568 = vld [vmem:[%s371] sm:$0xff]
          %v569 = vld [vmem:[%s371 + $0x8] sm:$0xff]
          %v570 = vld [vmem:[%s371 + $0x10] sm:$0xff]
          %v571 = vld [vmem:[%s371 + $0x18] sm:$0xff]
          %v572 = vld [vmem:[%s371 + $0x20] sm:$0xff]
          %v573 = vld [vmem:[%s371 + $0x28] sm:$0xff]
          %v574 = vld [vmem:[%s371 + $0x30] sm:$0xff]
          %v575 = vld [vmem:[%s371 + $0x38] sm:$0xff]
          %v576 = vld [vmem:[%s371 + $0x40] sm:$0xff]
          %v577 = vld [vmem:[%s371 + $0x48] sm:$0xff]
          %v578 = vld [vmem:[%s371 + $0x50] sm:$0xff]
          %v579 = vld [vmem:[%s371 + $0x58] sm:$0xff]
          %v580 = vld [vmem:[%s371 + $0x60] sm:$0xff]
          %v581 = vld [vmem:[%s371 + $0x68] sm:$0xff]
          %v582 = vld [vmem:[%s371 + $0x70] sm:$0xff]
          %v583 = vld [vmem:[%s371 + $0x78] sm:$0xff]
          %v584 = vld [vmem:[%s371 + $0x80] sm:$0xff]
          %v585 = vld [vmem:[%s371 + $0x88] sm:$0xff]
          %v586 = vld [vmem:[%s371 + $0x90] sm:$0xff]
          %v587 = vld [vmem:[%s371 + $0x98] sm:$0xff]
          %v588 = vld [vmem:[%s371 + $0xa0] sm:$0xff]
          %v589 = vld [vmem:[%s371 + $0xa8] sm:$0xff]
          %v590 = vld [vmem:[%s371 + $0xb0] sm:$0xff]
          %v591 = vld [vmem:[%s371 + $0xb8] sm:$0xff]
          %v592 = vld [vmem:[%s371 + $0xc0] sm:$0xff]
          %v593 = vld [vmem:[%s371 + $0xc8] sm:$0xff]
          %v594 = vld [vmem:[%s371 + $0xd0] sm:$0xff]
          %v595 = vld [vmem:[%s371 + $0xd8] sm:$0xff]
          %v596 = vld [vmem:[%s371 + $0xe0] sm:$0xff]
          %v597 = vld [vmem:[%s371 + $0xe8] sm:$0xff]
          %v598 = vld [vmem:[%s371 + $0xf0] sm:$0xff]
          %v599 = vld [vmem:[%s371 + $0xf8] sm:$0xff]
          %v600 = vld [vmem:[%s371 + $0x100] sm:$0xff]
          %v601 = vld [vmem:[%s371 + $0x108] sm:$0xff]
          %v602 = vld [vmem:[%s371 + $0x110] sm:$0xff]
          %v603 = vld [vmem:[%s371 + $0x118] sm:$0xff]
          %v604 = vld [vmem:[%s371 + $0x120] sm:$0xff]
          %v605 = vld [vmem:[%s371 + $0x128] sm:$0xff]
          %v606 = vld [vmem:[%s371 + $0x130] sm:$0xff]
          %v607 = vld [vmem:[%s371 + $0x138] sm:$0xff]
          %v608 = vld [vmem:[%s371 + $0x140] sm:$0xff]
          %v609 = vld [vmem:[%s371 + $0x148] sm:$0xff]
          %v610 = vld [vmem:[%s371 + $0x150] sm:$0xff]
          %v611 = vld [vmem:[%s371 + $0x158] sm:$0xff]
          %v612 = vld [vmem:[%s371 + $0x160] sm:$0xff]
          %v613 = vld [vmem:[%s371 + $0x168] sm:$0xff]
          %v614 = vld [vmem:[%s371 + $0x170] sm:$0xff]
          %v615 = vld [vmem:[%s371 + $0x178] sm:$0xff]
          %v616 = vld [vmem:[%s371 + $0x180] sm:$0xff]
          %v617 = vld [vmem:[%s371 + $0x188] sm:$0xff]
          %v618 = vld [vmem:[%s371 + $0x190] sm:$0xff]
          %v619 = vld [vmem:[%s371 + $0x198] sm:$0xff]
          %v620 = vld [vmem:[%s371 + $0x1a0] sm:$0xff]
          %v621 = vld [vmem:[%s371 + $0x1a8] sm:$0xff]
          %v622 = vld [vmem:[%s371 + $0x1b0] sm:$0xff]
          %v623 = vld [vmem:[%s371 + $0x1b8] sm:$0xff]
          %v624 = vld [vmem:[%s371 + $0x1c0] sm:$0xff]
          %v625 = vld [vmem:[%s371 + $0x1c8] sm:$0xff]
          %v626 = vld [vmem:[%s371 + $0x1d0] sm:$0xff]
          %v627 = vld [vmem:[%s371 + $0x1d8] sm:$0xff]
          %v628 = vld [vmem:[%s371 + $0x1e0] sm:$0xff]
          %v629 = vld [vmem:[%s371 + $0x1e8] sm:$0xff]
          %v630 = vld [vmem:[%s371 + $0x1f0] sm:$0xff]
          %v631 = vld [vmem:[%s371 + $0x1f8] sm:$0xff]
          %v696 = vunpack.c.l.b16 %v568
          %v697 = vunpack.c.h.b16 %v568
          %v698 = vunpack.c.l.b16 %v569
          %v699 = vunpack.c.h.b16 %v569
          %v700 = vunpack.c.l.b16 %v570
          %v701 = vunpack.c.h.b16 %v570
          %v702 = vunpack.c.l.b16 %v571
          %v703 = vunpack.c.h.b16 %v571
          %v704 = vunpack.c.l.b16 %v572
          %v705 = vunpack.c.h.b16 %v572
          %v706 = vunpack.c.l.b16 %v573
          %v707 = vunpack.c.h.b16 %v573
          %v708 = vunpack.c.l.b16 %v574
          %v709 = vunpack.c.h.b16 %v574
          %v710 = vunpack.c.l.b16 %v575
          %v711 = vunpack.c.h.b16 %v575
          %v712 = vunpack.c.l.b16 %v576
          %v713 = vunpack.c.h.b16 %v576
          %v714 = vunpack.c.l.b16 %v577
          %v715 = vunpack.c.h.b16 %v577
          %v716 = vunpack.c.l.b16 %v578
          %v717 = vunpack.c.h.b16 %v578
          %v718 = vunpack.c.l.b16 %v579
          %v719 = vunpack.c.h.b16 %v579
          %v720 = vunpack.c.l.b16 %v580
          %v721 = vunpack.c.h.b16 %v580
          %v722 = vunpack.c.l.b16 %v581
          %v723 = vunpack.c.h.b16 %v581
          %v724 = vunpack.c.l.b16 %v582
          %v725 = vunpack.c.h.b16 %v582
          %v726 = vunpack.c.l.b16 %v583
          %v727 = vunpack.c.h.b16 %v583
          %v728 = vunpack.c.l.b16 %v584
          %v729 = vunpack.c.h.b16 %v584
          %v730 = vunpack.c.l.b16 %v585
          %v731 = vunpack.c.h.b16 %v585
          %v732 = vunpack.c.l.b16 %v586
          %v733 = vunpack.c.h.b16 %v586
          %v734 = vunpack.c.l.b16 %v587
          %v735 = vunpack.c.h.b16 %v587
          %v736 = vunpack.c.l.b16 %v588
          %v737 = vunpack.c.h.b16 %v588
          %v738 = vunpack.c.l.b16 %v589
          %v739 = vunpack.c.h.b16 %v589
          %v740 = vunpack.c.l.b16 %v590
          %v741 = vunpack.c.h.b16 %v590
          %v742 = vunpack.c.l.b16 %v591
          %v743 = vunpack.c.h.b16 %v591
          %v744 = vunpack.c.l.b16 %v592
          %v745 = vunpack.c.h.b16 %v592
          %v746 = vunpack.c.l.b16 %v593
          %v747 = vunpack.c.h.b16 %v593
          %v748 = vunpack.c.l.b16 %v594
          %v749 = vunpack.c.h.b16 %v594
          %v750 = vunpack.c.l.b16 %v595
          %v751 = vunpack.c.h.b16 %v595
          %v752 = vunpack.c.l.b16 %v596
          %v753 = vunpack.c.h.b16 %v596
          %v754 = vunpack.c.l.b16 %v597
          %v755 = vunpack.c.h.b16 %v597
          %v756 = vunpack.c.l.b16 %v598
          %v757 = vunpack.c.h.b16 %v598
          %v758 = vunpack.c.l.b16 %v599
          %v759 = vunpack.c.h.b16 %v599
          %v760 = vunpack.c.l.b16 %v600
          %v761 = vunpack.c.h.b16 %v600
          %v762 = vunpack.c.l.b16 %v601
          %v763 = vunpack.c.h.b16 %v601
          %v764 = vunpack.c.l.b16 %v602
          %v765 = vunpack.c.h.b16 %v602
          %v766 = vunpack.c.l.b16 %v603
          %v767 = vunpack.c.h.b16 %v603
          %v768 = vunpack.c.l.b16 %v604
          %v769 = vunpack.c.h.b16 %v604
          %v770 = vunpack.c.l.b16 %v605
          %v771 = vunpack.c.h.b16 %v605
          %v772 = vunpack.c.l.b16 %v606
          %v773 = vunpack.c.h.b16 %v606
          %v774 = vunpack.c.l.b16 %v607
          %v775 = vunpack.c.h.b16 %v607
          %v776 = vunpack.c.l.b16 %v608
          %v777 = vunpack.c.h.b16 %v608
          %v778 = vunpack.c.l.b16 %v609
          %v779 = vunpack.c.h.b16 %v609
          %v780 = vunpack.c.l.b16 %v610
          %v781 = vunpack.c.h.b16 %v610
          %v782 = vunpack.c.l.b16 %v611
          %v783 = vunpack.c.h.b16 %v611
          %v784 = vunpack.c.l.b16 %v612
          %v785 = vunpack.c.h.b16 %v612
          %v786 = vunpack.c.l.b16 %v613
          %v787 = vunpack.c.h.b16 %v613
          %v788 = vunpack.c.l.b16 %v614
          %v789 = vunpack.c.h.b16 %v614
          %v790 = vunpack.c.l.b16 %v615
          %v791 = vunpack.c.h.b16 %v615
          %v792 = vunpack.c.l.b16 %v616
          %v793 = vunpack.c.h.b16 %v616
          %v794 = vunpack.c.l.b16 %v617
          %v795 = vunpack.c.h.b16 %v617
          %v796 = vunpack.c.l.b16 %v618
          %v797 = vunpack.c.h.b16 %v618
          %v798 = vunpack.c.l.b16 %v619
          %v799 = vunpack.c.h.b16 %v619
          %v800 = vunpack.c.l.b16 %v620
          %v801 = vunpack.c.h.b16 %v620
          %v802 = vunpack.c.l.b16 %v621
          %v803 = vunpack.c.h.b16 %v621
          %v804 = vunpack.c.l.b16 %v622
          %v805 = vunpack.c.h.b16 %v622
          %v806 = vunpack.c.l.b16 %v623
          %v807 = vunpack.c.h.b16 %v623
          %v808 = vunpack.c.l.b16 %v624
          %v809 = vunpack.c.h.b16 %v624
          %v810 = vunpack.c.l.b16 %v625
          %v811 = vunpack.c.h.b16 %v625
          %v812 = vunpack.c.l.b16 %v626
          %v813 = vunpack.c.h.b16 %v626
          %v814 = vunpack.c.l.b16 %v627
          %v815 = vunpack.c.h.b16 %v627
          %v816 = vunpack.c.l.b16 %v628
          %v817 = vunpack.c.h.b16 %v628
          %v818 = vunpack.c.l.b16 %v629
          %v819 = vunpack.c.h.b16 %v629
          %v820 = vunpack.c.l.b16 %v630
          %v821 = vunpack.c.h.b16 %v630
          %v822 = vunpack.c.l.b16 %v631
          %v823 = vunpack.c.h.b16 %v631
          %v824 = vpack.c.b16 %v700, %v696
          %v825 = vpack.c.b16 %v701, %v697
          %v826 = vpack.c.b16 %v702, %v698
          %v827 = vpack.c.b16 %v703, %v699
          %v828 = vpack.c.b16 %v708, %v704
          %v829 = vpack.c.b16 %v709, %v705
          %v830 = vpack.c.b16 %v710, %v706
          %v831 = vpack.c.b16 %v711, %v707
          %v832 = vpack.c.b16 %v716, %v712
          %v833 = vpack.c.b16 %v717, %v713
          %v834 = vpack.c.b16 %v718, %v714
          %v835 = vpack.c.b16 %v719, %v715
          %v836 = vpack.c.b16 %v724, %v720
          %v837 = vpack.c.b16 %v725, %v721
          %v838 = vpack.c.b16 %v726, %v722
          %v839 = vpack.c.b16 %v727, %v723
          %v840 = vpack.c.b16 %v732, %v728
          %v841 = vpack.c.b16 %v733, %v729
          %v842 = vpack.c.b16 %v734, %v730
          %v843 = vpack.c.b16 %v735, %v731
          %v844 = vpack.c.b16 %v740, %v736
          %v845 = vpack.c.b16 %v741, %v737
          %v846 = vpack.c.b16 %v742, %v738
          %v847 = vpack.c.b16 %v743, %v739
          %v848 = vpack.c.b16 %v748, %v744
          %v849 = vpack.c.b16 %v749, %v745
          %v850 = vpack.c.b16 %v750, %v746
          %v851 = vpack.c.b16 %v751, %v747
          %v852 = vpack.c.b16 %v756, %v752
          %v853 = vpack.c.b16 %v757, %v753
          %v854 = vpack.c.b16 %v758, %v754
          %v855 = vpack.c.b16 %v759, %v755
          %v856 = vpack.c.b16 %v764, %v760
          %v857 = vpack.c.b16 %v765, %v761
          %v858 = vpack.c.b16 %v766, %v762
          %v859 = vpack.c.b16 %v767, %v763
          %v860 = vpack.c.b16 %v772, %v768
          %v861 = vpack.c.b16 %v773, %v769
          %v862 = vpack.c.b16 %v774, %v770
          %v863 = vpack.c.b16 %v775, %v771
          %v864 = vpack.c.b16 %v780, %v776
          %v865 = vpack.c.b16 %v781, %v777
          %v866 = vpack.c.b16 %v782, %v778
          %v867 = vpack.c.b16 %v783, %v779
          %v868 = vpack.c.b16 %v788, %v784
          %v869 = vpack.c.b16 %v789, %v785
          %v870 = vpack.c.b16 %v790, %v786
          %v871 = vpack.c.b16 %v791, %v787
          %v872 = vpack.c.b16 %v796, %v792
          %v873 = vpack.c.b16 %v797, %v793
          %v874 = vpack.c.b16 %v798, %v794
          %v875 = vpack.c.b16 %v799, %v795
          %v876 = vpack.c.b16 %v804, %v800
          %v877 = vpack.c.b16 %v805, %v801
          %v878 = vpack.c.b16 %v806, %v802
          %v879 = vpack.c.b16 %v807, %v803
          %v880 = vpack.c.b16 %v812, %v808
          %v881 = vpack.c.b16 %v813, %v809
          %v882 = vpack.c.b16 %v814, %v810
          %v883 = vpack.c.b16 %v815, %v811
          %v884 = vpack.c.b16 %v820, %v816
          %v885 = vpack.c.b16 %v821, %v817
          %v886 = vpack.c.b16 %v822, %v818
          %v887 = vpack.c.b16 %v823, %v819
          %v1016 = vunpack.c.l.b16 %v472
          %v1017 = vunpack.c.l.b16 %v473
          %v1018 = vunpack.c.l.b16 %v474
          %v1019 = vunpack.c.l.b16 %v475
          %v1020 = vunpack.c.l.b16 %v476
          %v1021 = vunpack.c.l.b16 %v477
          %v1022 = vunpack.c.l.b16 %v478
          %v1023 = vunpack.c.l.b16 %v479
          %v1024 = vunpack.c.l.b16 %v480
          %v1025 = vunpack.c.l.b16 %v481
          %v1026 = vunpack.c.l.b16 %v482
          %v1027 = vunpack.c.l.b16 %v483
          %v1028 = vunpack.c.l.b16 %v484
          %v1029 = vunpack.c.l.b16 %v485
          %v1030 = vunpack.c.l.b16 %v486
          %v1031 = vunpack.c.l.b16 %v487
          %v1032 = vunpack.c.l.b16 %v488
          %v1033 = vunpack.c.l.b16 %v489
          %v1034 = vunpack.c.l.b16 %v490
          %v1035 = vunpack.c.l.b16 %v491
          %v1036 = vunpack.c.l.b16 %v492
          %v1037 = vunpack.c.l.b16 %v493
          %v1038 = vunpack.c.l.b16 %v494
          %v1039 = vunpack.c.l.b16 %v495
          %v1040 = vunpack.c.l.b16 %v496
          %v1041 = vunpack.c.l.b16 %v497
          %v1042 = vunpack.c.l.b16 %v498
          %v1043 = vunpack.c.l.b16 %v499
          %v1044 = vunpack.c.l.b16 %v500
          %v1045 = vunpack.c.l.b16 %v501
          %v1046 = vunpack.c.l.b16 %v502
          %v1047 = vunpack.c.l.b16 %v503
          %v1048 = vunpack.c.l.b16 %v504
          %v1049 = vunpack.c.l.b16 %v505
          %v1050 = vunpack.c.l.b16 %v506
          %v1051 = vunpack.c.l.b16 %v507
          %v1052 = vunpack.c.l.b16 %v508
          %v1053 = vunpack.c.l.b16 %v509
          %v1054 = vunpack.c.l.b16 %v510
          %v1055 = vunpack.c.l.b16 %v511
          %v1056 = vunpack.c.l.b16 %v512
          %v1057 = vunpack.c.l.b16 %v513
          %v1058 = vunpack.c.l.b16 %v514
          %v1059 = vunpack.c.l.b16 %v515
          %v1060 = vunpack.c.l.b16 %v516
          %v1061 = vunpack.c.l.b16 %v517
          %v1062 = vunpack.c.l.b16 %v518
          %v1063 = vunpack.c.l.b16 %v519
          %v1064 = vunpack.c.l.b16 %v520
          %v1065 = vunpack.c.l.b16 %v521
          %v1066 = vunpack.c.l.b16 %v522
          %v1067 = vunpack.c.l.b16 %v523
          %v1068 = vunpack.c.l.b16 %v524
          %v1069 = vunpack.c.l.b16 %v525
          %v1070 = vunpack.c.l.b16 %v526
          %v1071 = vunpack.c.l.b16 %v527
          %v1072 = vunpack.c.l.b16 %v528
          %v1073 = vunpack.c.l.b16 %v529
          %v1074 = vunpack.c.l.b16 %v530
          %v1075 = vunpack.c.l.b16 %v531
          %v1076 = vunpack.c.l.b16 %v532
          %v1077 = vunpack.c.l.b16 %v533
          %v1078 = vunpack.c.l.b16 %v534
          %v1079 = vunpack.c.l.b16 %v535
          %v1080 = vpack.c.b16 %v1017, %v1016
          %v1081 = vpack.c.b16 %v1019, %v1018
          %v1082 = vpack.c.b16 %v1021, %v1020
          %v1083 = vpack.c.b16 %v1023, %v1022
          %v1084 = vpack.c.b16 %v1025, %v1024
          %v1085 = vpack.c.b16 %v1027, %v1026
          %v1086 = vpack.c.b16 %v1029, %v1028
          %v1087 = vpack.c.b16 %v1031, %v1030
          %v1088 = vpack.c.b16 %v1033, %v1032
          %v1089 = vpack.c.b16 %v1035, %v1034
          %v1090 = vpack.c.b16 %v1037, %v1036
          %v1091 = vpack.c.b16 %v1039, %v1038
          %v1092 = vpack.c.b16 %v1041, %v1040
          %v1093 = vpack.c.b16 %v1043, %v1042
          %v1094 = vpack.c.b16 %v1045, %v1044
          %v1095 = vpack.c.b16 %v1047, %v1046
          %v1096 = vpack.c.b16 %v1049, %v1048
          %v1097 = vpack.c.b16 %v1051, %v1050
          %v1098 = vpack.c.b16 %v1053, %v1052
          %v1099 = vpack.c.b16 %v1055, %v1054
          %v1100 = vpack.c.b16 %v1057, %v1056
          %v1101 = vpack.c.b16 %v1059, %v1058
          %v1102 = vpack.c.b16 %v1061, %v1060
          %v1103 = vpack.c.b16 %v1063, %v1062
          %v1104 = vpack.c.b16 %v1065, %v1064
          %v1105 = vpack.c.b16 %v1067, %v1066
          %v1106 = vpack.c.b16 %v1069, %v1068
          %v1107 = vpack.c.b16 %v1071, %v1070
          %v1108 = vpack.c.b16 %v1073, %v1072
          %v1109 = vpack.c.b16 %v1075, %v1074
          %v1110 = vpack.c.b16 %v1077, %v1076
          %v1111 = vpack.c.b16 %v1079, %v1078
          %1144 = vmatprep.subr.bf16.mxu0 0
          %1145 = vmatpush1.bf16.msra.mxu0 %v1080
          %1146 = vmatprep.subr.bf16.mxu0 0
          %1147 = vmatpush1.bf16.msra.mxu0 %v1081
          %1148 = vmatprep.subr.bf16.mxu0 0
          %1149 = vmatpush1.bf16.msra.mxu0 %v1082
          %1150 = vmatprep.subr.bf16.mxu0 0
          %1151 = vmatpush1.bf16.msra.mxu0 %v1083
          %1152 = vmatprep.subr.bf16.mxu0 0
          %1153 = vmatpush1.bf16.msra.mxu0 %v1084
          %1154 = vmatprep.subr.bf16.mxu0 0
          %1155 = vmatpush1.bf16.msra.mxu0 %v1085
          %1156 = vmatprep.subr.bf16.mxu0 0
          %1157 = vmatpush1.bf16.msra.mxu0 %v1086
          %1158 = vmatprep.subr.bf16.mxu0 0
          %1159 = vmatpush1.bf16.msra.mxu0 %v1087
          %1160 = vmatprep.subr.bf16.mxu0 0
          %1161 = vmatpush1.bf16.msra.mxu0 %v1088
          %1162 = vmatprep.subr.bf16.mxu0 0
          %1163 = vmatpush1.bf16.msra.mxu0 %v1089
          %1164 = vmatprep.subr.bf16.mxu0 0
          %1165 = vmatpush1.bf16.msra.mxu0 %v1090
          %1166 = vmatprep.subr.bf16.mxu0 0
          %1167 = vmatpush1.bf16.msra.mxu0 %v1091
          %1168 = vmatprep.subr.bf16.mxu0 0
          %1169 = vmatpush1.bf16.msra.mxu0 %v1092
          %1170 = vmatprep.subr.bf16.mxu0 0
          %1171 = vmatpush1.bf16.msra.mxu0 %v1093
          %1172 = vmatprep.subr.bf16.mxu0 0
          %1173 = vmatpush1.bf16.msra.mxu0 %v1094
          %1174 = vmatprep.subr.bf16.mxu0 0
          %1175 = vmatpush1.bf16.msra.mxu0 %v1095
          %1176 = vmatprep.mubr.bf16.mxu0 %v825
          %1177 = vmatmul.mubr.bf16.gmra.mrb[0].mxu0 %v824
          %v1178 = vpop.f32.mrb[0].mxu0
          %v1179 = vadd.f32 0.0, %v1178
          %v1180 = vpop.f32.mrb[0].mxu0
          %v1181 = vpop.f32.mrb[0].mxu0
          %v1182 = vadd.f32 0.0, %v1181
          %v1183 = vpop.f32.mrb[0].mxu0
          %1184 = vmatprep.mubr.bf16.mxu0 %v829
          %1185 = vmatmul.mubr.bf16.gmra.mrb[0].mxu0 %v828
          %v1186 = vpop.f32.mrb[0].mxu0
          %v1187 = vadd.f32 0.0, %v1186
          %v1188 = vpop.f32.mrb[0].mxu0
          %v1189 = vpop.f32.mrb[0].mxu0
          %v1190 = vadd.f32 0.0, %v1189
          %v1191 = vpop.f32.mrb[0].mxu0
          %1192 = vmatprep.mubr.bf16.mxu0 %v833
          %1193 = vmatmul.mubr.bf16.gmra.mrb[0].mxu0 %v832
          %v1194 = vpop.f32.mrb[0].mxu0
          %v1195 = vadd.f32 0.0, %v1194
          %v1196 = vpop.f32.mrb[0].mxu0
          %v1197 = vpop.f32.mrb[0].mxu0
          %v1198 = vadd.f32 0.0, %v1197
          %v1199 = vpop.f32.mrb[0].mxu0
          %1200 = vmatprep.mubr.bf16.mxu0 %v837
          %1201 = vmatmul.mubr.bf16.gmra.mrb[0].mxu0 %v836
          %v1202 = vpop.f32.mrb[0].mxu0
          %v1203 = vadd.f32 0.0, %v1202
          %v1204 = vpop.f32.mrb[0].mxu0
          %v1205 = vpop.f32.mrb[0].mxu0
          %v1206 = vadd.f32 0.0, %v1205
          %v1207 = vpop.f32.mrb[0].mxu0
          %1208 = vmatprep.mubr.bf16.mxu0 %v841
          %1209 = vmatmul.mubr.bf16.gmra.mrb[0].mxu0 %v840
          %v1210 = vpop.f32.mrb[0].mxu0
          %v1211 = vadd.f32 0.0, %v1210
          %v1212 = vpop.f32.mrb[0].mxu0
          %v1213 = vpop.f32.mrb[0].mxu0
          %v1214 = vadd.f32 0.0, %v1213
          %v1215 = vpop.f32.mrb[0].mxu0
          %1216 = vmatprep.mubr.bf16.mxu0 %v845
          %1217 = vmatmul.mubr.bf16.gmra.mrb[0].mxu0 %v844
          %v1218 = vpop.f32.mrb[0].mxu0
          %v1219 = vadd.f32 0.0, %v1218
          %v1220 = vpop.f32.mrb[0].mxu0
          %v1221 = vpop.f32.mrb[0].mxu0
          %v1222 = vadd.f32 0.0, %v1221
          %v1223 = vpop.f32.mrb[0].mxu0
          %1224 = vmatprep.mubr.bf16.mxu0 %v849
          %1225 = vmatmul.mubr.bf16.gmra.mrb[0].mxu0 %v848
          %v1226 = vpop.f32.mrb[0].mxu0
          %v1227 = vadd.f32 0.0, %v1226
          %v1228 = vpop.f32.mrb[0].mxu0
          %v1229 = vpop.f32.mrb[0].mxu0
          %v1230 = vadd.f32 0.0, %v1229
          %v1231 = vpop.f32.mrb[0].mxu0
          %1232 = vmatprep.mubr.bf16.mxu0 %v853
          %1233 = vmatmul.mubr.bf16.gmra.mrb[0].mxu0 %v852
          %v1234 = vpop.f32.mrb[0].mxu0
          %v1235 = vadd.f32 0.0, %v1234
          %v1236 = vpop.f32.mrb[0].mxu0
          %v1237 = vpop.f32.mrb[0].mxu0
          %v1238 = vadd.f32 0.0, %v1237
          %v1239 = vpop.f32.mrb[0].mxu0
          %1240 = vmatprep.mubr.bf16.mxu0 %v857
          %1241 = vmatmul.mubr.bf16.gmra.mrb[0].mxu0 %v856
          %v1242 = vpop.f32.mrb[0].mxu0
          %v1243 = vadd.f32 0.0, %v1242
          %v1244 = vpop.f32.mrb[0].mxu0
          %v1245 = vpop.f32.mrb[0].mxu0
          %v1246 = vadd.f32 0.0, %v1245
          %v1247 = vpop.f32.mrb[0].mxu0
          %1248 = vmatprep.mubr.bf16.mxu0 %v861
          %1249 = vmatmul.mubr.bf16.gmra.mrb[0].mxu0 %v860
          %v1250 = vpop.f32.mrb[0].mxu0
          %v1251 = vadd.f32 0.0, %v1250
          %v1252 = vpop.f32.mrb[0].mxu0
          %v1253 = vpop.f32.mrb[0].mxu0
          %v1254 = vadd.f32 0.0, %v1253
          %v1255 = vpop.f32.mrb[0].mxu0
          %1256 = vmatprep.mubr.bf16.mxu0 %v865
          %1257 = vmatmul.mubr.bf16.gmra.mrb[0].mxu0 %v864
          %v1258 = vpop.f32.mrb[0].mxu0
          %v1259 = vadd.f32 0.0, %v1258
          %v1260 = vpop.f32.mrb[0].mxu0
          %v1261 = vpop.f32.mrb[0].mxu0
          %v1262 = vadd.f32 0.0, %v1261
          %v1263 = vpop.f32.mrb[0].mxu0
          %1264 = vmatprep.mubr.bf16.mxu0 %v869
          %1265 = vmatmul.mubr.bf16.gmra.mrb[0].mxu0 %v868
          %v1266 = vpop.f32.mrb[0].mxu0
          %v1267 = vadd.f32 0.0, %v1266
          %v1268 = vpop.f32.mrb[0].mxu0
          %v1269 = vpop.f32.mrb[0].mxu0
          %v1270 = vadd.f32 0.0, %v1269
          %v1271 = vpop.f32.mrb[0].mxu0
          %1272 = vmatprep.mubr.bf16.mxu0 %v873
          %1273 = vmatmul.mubr.bf16.gmra.mrb[0].mxu0 %v872
          %v1274 = vpop.f32.mrb[0].mxu0
          %v1275 = vadd.f32 0.0, %v1274
          %v1276 = vpop.f32.mrb[0].mxu0
          %v1277 = vpop.f32.mrb[0].mxu0
          %v1278 = vadd.f32 0.0, %v1277
          %v1279 = vpop.f32.mrb[0].mxu0
          %1280 = vmatprep.mubr.bf16.mxu0 %v877
          %1281 = vmatmul.mubr.bf16.gmra.mrb[0].mxu0 %v876
          %v1282 = vpop.f32.mrb[0].mxu0
          %v1283 = vadd.f32 0.0, %v1282
          %v1284 = vpop.f32.mrb[0].mxu0
          %v1285 = vpop.f32.mrb[0].mxu0
          %v1286 = vadd.f32 0.0, %v1285
          %v1287 = vpop.f32.mrb[0].mxu0
          %1288 = vmatprep.mubr.bf16.mxu0 %v881
          %1289 = vmatmul.mubr.bf16.gmra.mrb[0].mxu0 %v880
          %v1290 = vpop.f32.mrb[0].mxu0
          %v1291 = vadd.f32 0.0, %v1290
          %v1292 = vpop.f32.mrb[0].mxu0
          %v1293 = vpop.f32.mrb[0].mxu0
          %v1294 = vadd.f32 0.0, %v1293
          %v1295 = vpop.f32.mrb[0].mxu0
          %1296 = vmatprep.mubr.bf16.mxu0 %v885
          %1297 = vmatmul.mubr.bf16.gmra.mrb[0].mxu0 %v884
          %v1298 = vpop.f32.mrb[0].mxu0
          %v1299 = vadd.f32 0.0, %v1298
          %v1300 = vpop.f32.mrb[0].mxu0
          %v1301 = vpop.f32.mrb[0].mxu0
          %v1302 = vadd.f32 0.0, %v1301
          %v1303 = vpop.f32.mrb[0].mxu0
          %1304 = vdwg.mxu0
          %1305 = vmatprep.subr.bf16.mxu0 0
          %1306 = vmatpush1.bf16.msra.mxu0 %v1096
          %1307 = vmatprep.subr.bf16.mxu0 0
          %1308 = vmatpush1.bf16.msra.mxu0 %v1097
          %1309 = vmatprep.subr.bf16.mxu0 0
          %1310 = vmatpush1.bf16.msra.mxu0 %v1098
          %1311 = vmatprep.subr.bf16.mxu0 0
          %1312 = vmatpush1.bf16.msra.mxu0 %v1099
          %1313 = vmatprep.subr.bf16.mxu0 0
          %1314 = vmatpush1.bf16.msra.mxu0 %v1100
          %1315 = vmatprep.subr.bf16.mxu0 0
          %1316 = vmatpush1.bf16.msra.mxu0 %v1101
          %1317 = vmatprep.subr.bf16.mxu0 0
          %1318 = vmatpush1.bf16.msra.mxu0 %v1102
          %1319 = vmatprep.subr.bf16.mxu0 0
          %1320 = vmatpush1.bf16.msra.mxu0 %v1103
          %1321 = vmatprep.subr.bf16.mxu0 0
          %1322 = vmatpush1.bf16.msra.mxu0 %v1104
          %1323 = vmatprep.subr.bf16.mxu0 0
          %1324 = vmatpush1.bf16.msra.mxu0 %v1105
          %1325 = vmatprep.subr.bf16.mxu0 0
          %1326 = vmatpush1.bf16.msra.mxu0 %v1106
          %1327 = vmatprep.subr.bf16.mxu0 0
          %1328 = vmatpush1.bf16.msra.mxu0 %v1107
          %1329 = vmatprep.subr.bf16.mxu0 0
          %1330 = vmatpush1.bf16.msra.mxu0 %v1108
          %1331 = vmatprep.subr.bf16.mxu0 0
          %1332 = vmatpush1.bf16.msra.mxu0 %v1109
          %1333 = vmatprep.subr.bf16.mxu0 0
          %1334 = vmatpush1.bf16.msra.mxu0 %v1110
          %1335 = vmatprep.subr.bf16.mxu0 0
          %1336 = vmatpush1.bf16.msra.mxu0 %v1111
          %1337 = vmatprep.mubr.bf16.mxu0 %v827
          %1338 = vmatmul.mubr.bf16.gmra.mrb[0].mxu0 %v826
          %v1339 = vpop.f32.mrb[0].mxu0
          %v1340 = vadd.f32 %v1179, %v1339
          %v1341 = vpop.f32.mrb[0].mxu0
          %v1342 = vpop.f32.mrb[0].mxu0
          %v1343 = vadd.f32 %v1182, %v1342
          %v1344 = vpop.f32.mrb[0].mxu0
          %1345 = vmatprep.mubr.bf16.mxu0 %v831
          %1346 = vmatmul.mubr.bf16.gmra.mrb[0].mxu0 %v830
          %v1347 = vpop.f32.mrb[0].mxu0
          %v1348 = vadd.f32 %v1187, %v1347
          %v1349 = vpop.f32.mrb[0].mxu0
          %v1350 = vpop.f32.mrb[0].mxu0
          %v1351 = vadd.f32 %v1190, %v1350
          %v1352 = vpop.f32.mrb[0].mxu0
          %1353 = vmatprep.mubr.bf16.mxu0 %v835
          %1354 = vmatmul.mubr.bf16.gmra.mrb[0].mxu0 %v834
          %v1355 = vpop.f32.mrb[0].mxu0
          %v1356 = vadd.f32 %v1195, %v1355
          %v1357 = vpop.f32.mrb[0].mxu0
          %v1358 = vpop.f32.mrb[0].mxu0
          %v1359 = vadd.f32 %v1198, %v1358
          %v1360 = vpop.f32.mrb[0].mxu0
          %1361 = vmatprep.mubr.bf16.mxu0 %v839
          %1362 = vmatmul.mubr.bf16.gmra.mrb[0].mxu0 %v838
          %v1363 = vpop.f32.mrb[0].mxu0
          %v1364 = vadd.f32 %v1203, %v1363
          %v1365 = vpop.f32.mrb[0].mxu0
          %v1366 = vpop.f32.mrb[0].mxu0
          %v1367 = vadd.f32 %v1206, %v1366
          %v1368 = vpop.f32.mrb[0].mxu0
          %1369 = vmatprep.mubr.bf16.mxu0 %v843
          %1370 = vmatmul.mubr.bf16.gmra.mrb[0].mxu0 %v842
          %v1371 = vpop.f32.mrb[0].mxu0
          %v1372 = vadd.f32 %v1211, %v1371
          %v1373 = vpop.f32.mrb[0].mxu0
          %v1374 = vpop.f32.mrb[0].mxu0
          %v1375 = vadd.f32 %v1214, %v1374
          %v1376 = vpop.f32.mrb[0].mxu0
          %1377 = vmatprep.mubr.bf16.mxu0 %v847
          %1378 = vmatmul.mubr.bf16.gmra.mrb[0].mxu0 %v846
          %v1379 = vpop.f32.mrb[0].mxu0
          %v1380 = vadd.f32 %v1219, %v1379
          %v1381 = vpop.f32.mrb[0].mxu0
          %v1382 = vpop.f32.mrb[0].mxu0
          %v1383 = vadd.f32 %v1222, %v1382
          %v1384 = vpop.f32.mrb[0].mxu0
          %1385 = vmatprep.mubr.bf16.mxu0 %v851
          %1386 = vmatmul.mubr.bf16.gmra.mrb[0].mxu0 %v850
          %v1387 = vpop.f32.mrb[0].mxu0
          %v1388 = vadd.f32 %v1227, %v1387
          %v1389 = vpop.f32.mrb[0].mxu0
          %v1390 = vpop.f32.mrb[0].mxu0
          %v1391 = vadd.f32 %v1230, %v1390
          %v1392 = vpop.f32.mrb[0].mxu0
          %1393 = vmatprep.mubr.bf16.mxu0 %v855
          %1394 = vmatmul.mubr.bf16.gmra.mrb[0].mxu0 %v854
          %v1395 = vpop.f32.mrb[0].mxu0
          %v1396 = vadd.f32 %v1235, %v1395
          %v1397 = vpop.f32.mrb[0].mxu0
          %v1398 = vpop.f32.mrb[0].mxu0
          %v1399 = vadd.f32 %v1238, %v1398
          %v1400 = vpop.f32.mrb[0].mxu0
          %1401 = vmatprep.mubr.bf16.mxu0 %v859
          %1402 = vmatmul.mubr.bf16.gmra.mrb[0].mxu0 %v858
          %v1403 = vpop.f32.mrb[0].mxu0
          %v1404 = vadd.f32 %v1243, %v1403
          %v1405 = vpop.f32.mrb[0].mxu0
          %v1406 = vpop.f32.mrb[0].mxu0
          %v1407 = vadd.f32 %v1246, %v1406
          %v1408 = vpop.f32.mrb[0].mxu0
          %1409 = vmatprep.mubr.bf16.mxu0 %v863
          %1410 = vmatmul.mubr.bf16.gmra.mrb[0].mxu0 %v862
          %v1411 = vpop.f32.mrb[0].mxu0
          %v1412 = vadd.f32 %v1251, %v1411
          %v1413 = vpop.f32.mrb[0].mxu0
          %v1414 = vpop.f32.mrb[0].mxu0
          %v1415 = vadd.f32 %v1254, %v1414
          %v1416 = vpop.f32.mrb[0].mxu0
          %1417 = vmatprep.mubr.bf16.mxu0 %v867
          %1418 = vmatmul.mubr.bf16.gmra.mrb[0].mxu0 %v866
          %v1419 = vpop.f32.mrb[0].mxu0
          %v1420 = vadd.f32 %v1259, %v1419
          %v1421 = vpop.f32.mrb[0].mxu0
          %v1422 = vpop.f32.mrb[0].mxu0
          %v1423 = vadd.f32 %v1262, %v1422
          %v1424 = vpop.f32.mrb[0].mxu0
          %1425 = vmatprep.mubr.bf16.mxu0 %v871
          %1426 = vmatmul.mubr.bf16.gmra.mrb[0].mxu0 %v870
          %v1427 = vpop.f32.mrb[0].mxu0
          %v1428 = vadd.f32 %v1267, %v1427
          %v1429 = vpop.f32.mrb[0].mxu0
          %v1430 = vpop.f32.mrb[0].mxu0
          %v1431 = vadd.f32 %v1270, %v1430
          %v1432 = vpop.f32.mrb[0].mxu0
          %1433 = vmatprep.mubr.bf16.mxu0 %v875
          %1434 = vmatmul.mubr.bf16.gmra.mrb[0].mxu0 %v874
          %v1435 = vpop.f32.mrb[0].mxu0
          %v1436 = vadd.f32 %v1275, %v1435
          %v1437 = vpop.f32.mrb[0].mxu0
          %v1438 = vpop.f32.mrb[0].mxu0
          %v1439 = vadd.f32 %v1278, %v1438
          %v1440 = vpop.f32.mrb[0].mxu0
          %1441 = vmatprep.mubr.bf16.mxu0 %v879
          %1442 = vmatmul.mubr.bf16.gmra.mrb[0].mxu0 %v878
          %v1443 = vpop.f32.mrb[0].mxu0
          %v1444 = vadd.f32 %v1283, %v1443
          %v1445 = vpop.f32.mrb[0].mxu0
          %v1446 = vpop.f32.mrb[0].mxu0
          %v1447 = vadd.f32 %v1286, %v1446
          %v1448 = vpop.f32.mrb[0].mxu0
          %1449 = vmatprep.mubr.bf16.mxu0 %v883
          %1450 = vmatmul.mubr.bf16.gmra.mrb[0].mxu0 %v882
          %v1451 = vpop.f32.mrb[0].mxu0
          %v1452 = vadd.f32 %v1291, %v1451
          %v1453 = vpop.f32.mrb[0].mxu0
          %v1454 = vpop.f32.mrb[0].mxu0
          %v1455 = vadd.f32 %v1294, %v1454
          %v1456 = vpop.f32.mrb[0].mxu0
          %1457 = vmatprep.mubr.bf16.mxu0 %v887
          %1458 = vmatmul.mubr.bf16.gmra.mrb[0].mxu0 %v886
          %v1459 = vpop.f32.mrb[0].mxu0
          %v1460 = vadd.f32 %v1299, %v1459
          %v1461 = vpop.f32.mrb[0].mxu0
          %v1462 = vpop.f32.mrb[0].mxu0
          %v1463 = vadd.f32 %v1302, %v1462
          %v1464 = vpop.f32.mrb[0].mxu0
          %1465 = vdwg.mxu0
          %v1466 = vadd.f32 %v536, %v1340
          %v1467 = vadd.f32 %v537, %v1343
          %v1468 = vadd.f32 %v538, %v1348
          %v1469 = vadd.f32 %v539, %v1351
          %v1470 = vadd.f32 %v540, %v1356
          %v1471 = vadd.f32 %v541, %v1359
          %v1472 = vadd.f32 %v542, %v1364
          %v1473 = vadd.f32 %v543, %v1367
          %v1474 = vadd.f32 %v544, %v1372
          %v1475 = vadd.f32 %v545, %v1375
          %v1476 = vadd.f32 %v546, %v1380
          %v1477 = vadd.f32 %v547, %v1383
          %v1478 = vadd.f32 %v548, %v1388
          %v1479 = vadd.f32 %v549, %v1391
          %v1480 = vadd.f32 %v550, %v1396
          %v1481 = vadd.f32 %v551, %v1399
          %v1482 = vadd.f32 %v552, %v1404
          %v1483 = vadd.f32 %v553, %v1407
          %v1484 = vadd.f32 %v554, %v1412
          %v1485 = vadd.f32 %v555, %v1415
          %v1486 = vadd.f32 %v556, %v1420
          %v1487 = vadd.f32 %v557, %v1423
          %v1488 = vadd.f32 %v558, %v1428
          %v1489 = vadd.f32 %v559, %v1431
          %v1490 = vadd.f32 %v560, %v1436
          %v1491 = vadd.f32 %v561, %v1439
          %v1492 = vadd.f32 %v562, %v1444
          %v1493 = vadd.f32 %v563, %v1447
          %v1494 = vadd.f32 %v564, %v1452
          %v1495 = vadd.f32 %v565, %v1455
          %v1496 = vadd.f32 %v566, %v1460
          %v1497 = vadd.f32 %v567, %v1463
          %1498 = vst [vmem:[#allocation2] sm:$0xff] %v1466
          %1499 = vst [vmem:[#allocation2 + $0x8] sm:$0xff] %v1467
          %1500 = vst [vmem:[#allocation2 + $0x10] sm:$0xff] %v1468
          %1501 = vst [vmem:[#allocation2 + $0x18] sm:$0xff] %v1469
          %1502 = vst [vmem:[#allocation2 + $0x20] sm:$0xff] %v1470
          %1503 = vst [vmem:[#allocation2 + $0x28] sm:$0xff] %v1471
          %1504 = vst [vmem:[#allocation2 + $0x30] sm:$0xff] %v1472
          %1505 = vst [vmem:[#allocation2 + $0x38] sm:$0xff] %v1473
          %1506 = vst [vmem:[#allocation2 + $0x40] sm:$0xff] %v1474
          %1507 = vst [vmem:[#allocation2 + $0x48] sm:$0xff] %v1475
          %1508 = vst [vmem:[#allocation2 + $0x50] sm:$0xff] %v1476
          %1509 = vst [vmem:[#allocation2 + $0x58] sm:$0xff] %v1477
          %1510 = vst [vmem:[#allocation2 + $0x60] sm:$0xff] %v1478
          %1511 = vst [vmem:[#allocation2 + $0x68] sm:$0xff] %v1479
          %1512 = vst [vmem:[#allocation2 + $0x70] sm:$0xff] %v1480
          %1513 = vst [vmem:[#allocation2 + $0x78] sm:$0xff] %v1481
          %1514 = vst [vmem:[#allocation2 + $0x80] sm:$0xff] %v1482
          %1515 = vst [vmem:[#allocation2 + $0x88] sm:$0xff] %v1483
          %1516 = vst [vmem:[#allocation2 + $0x90] sm:$0xff] %v1484
          %1517 = vst [vmem:[#allocation2 + $0x98] sm:$0xff] %v1485
          %1518 = vst [vmem:[#allocation2 + $0xa0] sm:$0xff] %v1486
          %1519 = vst [vmem:[#allocation2 + $0xa8] sm:$0xff] %v1487
          %1520 = vst [vmem:[#allocation2 + $0xb0] sm:$0xff] %v1488
          %1521 = vst [vmem:[#allocation2 + $0xb8] sm:$0xff] %v1489
          %1522 = vst [vmem:[#allocation2 + $0xc0] sm:$0xff] %v1490
          %1523 = vst [vmem:[#allocation2 + $0xc8] sm:$0xff] %v1491
          %1524 = vst [vmem:[#allocation2 + $0xd0] sm:$0xff] %v1492
          %1525 = vst [vmem:[#allocation2 + $0xd8] sm:$0xff] %v1493
          %1526 = vst [vmem:[#allocation2 + $0xe0] sm:$0xff] %v1494
          %1527 = vst [vmem:[#allocation2 + $0xe8] sm:$0xff] %v1495
          %1528 = vst [vmem:[#allocation2 + $0xf0] sm:$0xff] %v1496
          %1529 = vst [vmem:[#allocation2 + $0xf8] sm:$0xff] %v1497
        $region63: #{lightgcn_forward.6} parent=50 // pred_fallthru
          _
        %p1530 = scmp.eq.s32.totalorder %s36, 1
        // Predicated region
        $region64: #{lightgcn_forward.6} parent=50 // pred_check
          %p1531 = pneg %p1530
        $region65: #{lightgcn_forward.6} parent=50 // pred_check_branch
          %1533 = sbr.rel (%p1531) target = $region67
        $region66: #{lightgcn_forward.6} parent=50 // pred_region
          %v1534 = vld [vmem:[#allocation2] sm:$0xff]
          %v1535 = vld [vmem:[#allocation2 + $0x8] sm:$0xff]
          %v1536 = vld [vmem:[#allocation2 + $0x10] sm:$0xff]
          %v1537 = vld [vmem:[#allocation2 + $0x18] sm:$0xff]
          %v1538 = vld [vmem:[#allocation2 + $0x20] sm:$0xff]
          %v1539 = vld [vmem:[#allocation2 + $0x28] sm:$0xff]
          %v1540 = vld [vmem:[#allocation2 + $0x30] sm:$0xff]
          %v1541 = vld [vmem:[#allocation2 + $0x38] sm:$0xff]
          %v1542 = vld [vmem:[#allocation2 + $0x40] sm:$0xff]
          %v1543 = vld [vmem:[#allocation2 + $0x48] sm:$0xff]
          %v1544 = vld [vmem:[#allocation2 + $0x50] sm:$0xff]
          %v1545 = vld [vmem:[#allocation2 + $0x58] sm:$0xff]
          %v1546 = vld [vmem:[#allocation2 + $0x60] sm:$0xff]
          %v1547 = vld [vmem:[#allocation2 + $0x68] sm:$0xff]
          %v1548 = vld [vmem:[#allocation2 + $0x70] sm:$0xff]
          %v1549 = vld [vmem:[#allocation2 + $0x78] sm:$0xff]
          %v1550 = vld [vmem:[#allocation2 + $0x80] sm:$0xff]
          %v1551 = vld [vmem:[#allocation2 + $0x88] sm:$0xff]
          %v1552 = vld [vmem:[#allocation2 + $0x90] sm:$0xff]
          %v1553 = vld [vmem:[#allocation2 + $0x98] sm:$0xff]
          %v1554 = vld [vmem:[#allocation2 + $0xa0] sm:$0xff]
          %v1555 = vld [vmem:[#allocation2 + $0xa8] sm:$0xff]
          %v1556 = vld [vmem:[#allocation2 + $0xb0] sm:$0xff]
          %v1557 = vld [vmem:[#allocation2 + $0xb8] sm:$0xff]
          %v1558 = vld [vmem:[#allocation2 + $0xc0] sm:$0xff]
          %v1559 = vld [vmem:[#allocation2 + $0xc8] sm:$0xff]
          %v1560 = vld [vmem:[#allocation2 + $0xd0] sm:$0xff]
          %v1561 = vld [vmem:[#allocation2 + $0xd8] sm:$0xff]
          %v1562 = vld [vmem:[#allocation2 + $0xe0] sm:$0xff]
          %v1563 = vld [vmem:[#allocation2 + $0xe8] sm:$0xff]
          %v1564 = vld [vmem:[#allocation2 + $0xf0] sm:$0xff]
          %v1565 = vld [vmem:[#allocation2 + $0xf8] sm:$0xff]
          %v1566 = vpack.c.bf16 %v1535, %v1534
          %v1567 = vpack.c.bf16 %v1537, %v1536
          %v1568 = vpack.c.bf16 %v1539, %v1538
          %v1569 = vpack.c.bf16 %v1541, %v1540
          %v1570 = vpack.c.bf16 %v1543, %v1542
          %v1571 = vpack.c.bf16 %v1545, %v1544
          %v1572 = vpack.c.bf16 %v1547, %v1546
          %v1573 = vpack.c.bf16 %v1549, %v1548
          %v1574 = vpack.c.bf16 %v1551, %v1550
          %v1575 = vpack.c.bf16 %v1553, %v1552
          %v1576 = vpack.c.bf16 %v1555, %v1554
          %v1577 = vpack.c.bf16 %v1557, %v1556
          %v1578 = vpack.c.bf16 %v1559, %v1558
          %v1579 = vpack.c.bf16 %v1561, %v1560
          %v1580 = vpack.c.bf16 %v1563, %v1562
          %v1581 = vpack.c.bf16 %v1565, %v1564
          %v1598 = vunpack.c.l.b16 %v1566
          %v1599 = vunpack.c.h.b16 %v1566
          %v1600 = vunpack.c.l.b16 %v1567
          %v1601 = vunpack.c.h.b16 %v1567
          %v1602 = vunpack.c.l.b16 %v1568
          %v1603 = vunpack.c.h.b16 %v1568
          %v1604 = vunpack.c.l.b16 %v1569
          %v1605 = vunpack.c.h.b16 %v1569
          %v1606 = vunpack.c.l.b16 %v1570
          %v1607 = vunpack.c.h.b16 %v1570
          %v1608 = vunpack.c.l.b16 %v1571
          %v1609 = vunpack.c.h.b16 %v1571
          %v1610 = vunpack.c.l.b16 %v1572
          %v1611 = vunpack.c.h.b16 %v1572
          %v1612 = vunpack.c.l.b16 %v1573
          %v1613 = vunpack.c.h.b16 %v1573
          %v1614 = vunpack.c.l.b16 %v1574
          %v1615 = vunpack.c.h.b16 %v1574
          %v1616 = vunpack.c.l.b16 %v1575
          %v1617 = vunpack.c.h.b16 %v1575
          %v1618 = vunpack.c.l.b16 %v1576
          %v1619 = vunpack.c.h.b16 %v1576
          %v1620 = vunpack.c.l.b16 %v1577
          %v1621 = vunpack.c.h.b16 %v1577
          %v1622 = vunpack.c.l.b16 %v1578
          %v1623 = vunpack.c.h.b16 %v1578
          %v1624 = vunpack.c.l.b16 %v1579
          %v1625 = vunpack.c.h.b16 %v1579
          %v1626 = vunpack.c.l.b16 %v1580
          %v1627 = vunpack.c.h.b16 %v1580
          %v1628 = vunpack.c.l.b16 %v1581
          %v1629 = vunpack.c.h.b16 %v1581
          %v1630 = vpack.c.b16 %v1598, %v1598
          %v1631 = vpack.c.b16 %v1599, %v1599
          %v1632 = vpack.c.b16 %v1600, %v1600
          %v1633 = vpack.c.b16 %v1601, %v1601
          %v1634 = vpack.c.b16 %v1602, %v1602
          %v1635 = vpack.c.b16 %v1603, %v1603
          %v1636 = vpack.c.b16 %v1604, %v1604
          %v1637 = vpack.c.b16 %v1605, %v1605
          %v1638 = vpack.c.b16 %v1606, %v1606
          %v1639 = vpack.c.b16 %v1607, %v1607
          %v1640 = vpack.c.b16 %v1608, %v1608
          %v1641 = vpack.c.b16 %v1609, %v1609
          %v1642 = vpack.c.b16 %v1610, %v1610
          %v1643 = vpack.c.b16 %v1611, %v1611
          %v1644 = vpack.c.b16 %v1612, %v1612
          %v1645 = vpack.c.b16 %v1613, %v1613
          %v1646 = vpack.c.b16 %v1614, %v1614
          %v1647 = vpack.c.b16 %v1615, %v1615
          %v1648 = vpack.c.b16 %v1616, %v1616
          %v1649 = vpack.c.b16 %v1617, %v1617
          %v1650 = vpack.c.b16 %v1618, %v1618
          %v1651 = vpack.c.b16 %v1619, %v1619
          %v1652 = vpack.c.b16 %v1620, %v1620
          %v1653 = vpack.c.b16 %v1621, %v1621
          %v1654 = vpack.c.b16 %v1622, %v1622
          %v1655 = vpack.c.b16 %v1623, %v1623
          %v1656 = vpack.c.b16 %v1624, %v1624
          %v1657 = vpack.c.b16 %v1625, %v1625
          %v1658 = vpack.c.b16 %v1626, %v1626
          %v1659 = vpack.c.b16 %v1627, %v1627
          %v1660 = vpack.c.b16 %v1628, %v1628
          %v1661 = vpack.c.b16 %v1629, %v1629
          %1694 = vst [vmem:[%s396] sm:$0xf] %v1630
          %1695 = vst [vmem:[%s396 + $0x4] sm:$0xf] %v1631
          %1696 = vst [vmem:[%s396 + $0x8] sm:$0xf] %v1632
          %1697 = vst [vmem:[%s396 + $0xc] sm:$0xf] %v1633
          %1698 = vst [vmem:[%s396 + $0x10] sm:$0xf] %v1634
          %1699 = vst [vmem:[%s396 + $0x14] sm:$0xf] %v1635
          %1700 = vst [vmem:[%s396 + $0x18] sm:$0xf] %v1636
          %1701 = vst [vmem:[%s396 + $0x1c] sm:$0xf] %v1637
          %1702 = vst [vmem:[%s396 + $0x20] sm:$0xf] %v1638
          %1703 = vst [vmem:[%s396 + $0x24] sm:$0xf] %v1639
          %1704 = vst [vmem:[%s396 + $0x28] sm:$0xf] %v1640
          %1705 = vst [vmem:[%s396 + $0x2c] sm:$0xf] %v1641
          %1706 = vst [vmem:[%s396 + $0x30] sm:$0xf] %v1642
          %1707 = vst [vmem:[%s396 + $0x34] sm:$0xf] %v1643
          %1708 = vst [vmem:[%s396 + $0x38] sm:$0xf] %v1644
          %1709 = vst [vmem:[%s396 + $0x3c] sm:$0xf] %v1645
          %1710 = vst [vmem:[%s396 + $0x40] sm:$0xf] %v1646
          %1711 = vst [vmem:[%s396 + $0x44] sm:$0xf] %v1647
          %1712 = vst [vmem:[%s396 + $0x48] sm:$0xf] %v1648
          %1713 = vst [vmem:[%s396 + $0x4c] sm:$0xf] %v1649
          %1714 = vst [vmem:[%s396 + $0x50] sm:$0xf] %v1650
          %1715 = vst [vmem:[%s396 + $0x54] sm:$0xf] %v1651
          %1716 = vst [vmem:[%s396 + $0x58] sm:$0xf] %v1652
          %1717 = vst [vmem:[%s396 + $0x5c] sm:$0xf] %v1653
          %1718 = vst [vmem:[%s396 + $0x60] sm:$0xf] %v1654
          %1719 = vst [vmem:[%s396 + $0x64] sm:$0xf] %v1655
          %1720 = vst [vmem:[%s396 + $0x68] sm:$0xf] %v1656
          %1721 = vst [vmem:[%s396 + $0x6c] sm:$0xf] %v1657
          %1722 = vst [vmem:[%s396 + $0x70] sm:$0xf] %v1658
          %1723 = vst [vmem:[%s396 + $0x74] sm:$0xf] %v1659
          %1724 = vst [vmem:[%s396 + $0x78] sm:$0xf] %v1660
          %1725 = vst [vmem:[%s396 + $0x7c] sm:$0xf] %v1661
          %v1726 = vld [vmem:[%s413] sm:$0xff]
          %v1727 = vld [vmem:[%s413 + $0x8] sm:$0xff]
          %v1728 = vld [vmem:[%s413 + $0x10] sm:$0xff]
          %v1729 = vld [vmem:[%s413 + $0x18] sm:$0xff]
          %v1730 = vld [vmem:[%s413 + $0x20] sm:$0xff]
          %v1731 = vld [vmem:[%s413 + $0x28] sm:$0xff]
          %v1732 = vld [vmem:[%s413 + $0x30] sm:$0xff]
          %v1733 = vld [vmem:[%s413 + $0x38] sm:$0xff]
          %v1734 = vld [vmem:[%s413 + $0x40] sm:$0xff]
          %v1735 = vld [vmem:[%s413 + $0x48] sm:$0xff]
          %v1736 = vld [vmem:[%s413 + $0x50] sm:$0xff]
          %v1737 = vld [vmem:[%s413 + $0x58] sm:$0xff]
          %v1738 = vld [vmem:[%s413 + $0x60] sm:$0xff]
          %v1739 = vld [vmem:[%s413 + $0x68] sm:$0xff]
          %v1740 = vld [vmem:[%s413 + $0x70] sm:$0xff]
          %v1741 = vld [vmem:[%s413 + $0x78] sm:$0xff]
          %v1742 = vld [vmem:[%s413 + $0x80] sm:$0xff]
          %v1743 = vld [vmem:[%s413 + $0x88] sm:$0xff]
          %v1744 = vld [vmem:[%s413 + $0x90] sm:$0xff]
          %v1745 = vld [vmem:[%s413 + $0x98] sm:$0xff]
          %v1746 = vld [vmem:[%s413 + $0xa0] sm:$0xff]
          %v1747 = vld [vmem:[%s413 + $0xa8] sm:$0xff]
          %v1748 = vld [vmem:[%s413 + $0xb0] sm:$0xff]
          %v1749 = vld [vmem:[%s413 + $0xb8] sm:$0xff]
          %v1750 = vld [vmem:[%s413 + $0xc0] sm:$0xff]
          %v1751 = vld [vmem:[%s413 + $0xc8] sm:$0xff]
          %v1752 = vld [vmem:[%s413 + $0xd0] sm:$0xff]
          %v1753 = vld [vmem:[%s413 + $0xd8] sm:$0xff]
          %v1754 = vld [vmem:[%s413 + $0xe0] sm:$0xff]
          %v1755 = vld [vmem:[%s413 + $0xe8] sm:$0xff]
          %v1756 = vld [vmem:[%s413 + $0xf0] sm:$0xff]
          %v1757 = vld [vmem:[%s413 + $0xf8] sm:$0xff]
          %v1758 = vadd.f32 %v1726, %v1534
          %v1759 = vadd.f32 %v1727, %v1535
          %v1760 = vadd.f32 %v1728, %v1536
          %v1761 = vadd.f32 %v1729, %v1537
          %v1762 = vadd.f32 %v1730, %v1538
          %v1763 = vadd.f32 %v1731, %v1539
          %v1764 = vadd.f32 %v1732, %v1540
          %v1765 = vadd.f32 %v1733, %v1541
          %v1766 = vadd.f32 %v1734, %v1542
          %v1767 = vadd.f32 %v1735, %v1543
          %v1768 = vadd.f32 %v1736, %v1544
          %v1769 = vadd.f32 %v1737, %v1545
          %v1770 = vadd.f32 %v1738, %v1546
          %v1771 = vadd.f32 %v1739, %v1547
          %v1772 = vadd.f32 %v1740, %v1548
          %v1773 = vadd.f32 %v1741, %v1549
          %v1774 = vadd.f32 %v1742, %v1550
          %v1775 = vadd.f32 %v1743, %v1551
          %v1776 = vadd.f32 %v1744, %v1552
          %v1777 = vadd.f32 %v1745, %v1553
          %v1778 = vadd.f32 %v1746, %v1554
          %v1779 = vadd.f32 %v1747, %v1555
          %v1780 = vadd.f32 %v1748, %v1556
          %v1781 = vadd.f32 %v1749, %v1557
          %v1782 = vadd.f32 %v1750, %v1558
          %v1783 = vadd.f32 %v1751, %v1559
          %v1784 = vadd.f32 %v1752, %v1560
          %v1785 = vadd.f32 %v1753, %v1561
          %v1786 = vadd.f32 %v1754, %v1562
          %v1787 = vadd.f32 %v1755, %v1563
          %v1788 = vadd.f32 %v1756, %v1564
          %v1789 = vadd.f32 %v1757, %v1565
          %v1790 = vmul.f32 %v1758, 0.25
          %v1791 = vmul.f32 %v1759, 0.25
          %v1792 = vmul.f32 %v1760, 0.25
          %v1793 = vmul.f32 %v1761, 0.25
          %v1794 = vmul.f32 %v1762, 0.25
          %v1795 = vmul.f32 %v1763, 0.25
          %v1796 = vmul.f32 %v1764, 0.25
          %v1797 = vmul.f32 %v1765, 0.25
          %v1798 = vmul.f32 %v1766, 0.25
          %v1799 = vmul.f32 %v1767, 0.25
          %v1800 = vmul.f32 %v1768, 0.25
          %v1801 = vmul.f32 %v1769, 0.25
          %v1802 = vmul.f32 %v1770, 0.25
          %v1803 = vmul.f32 %v1771, 0.25
          %v1804 = vmul.f32 %v1772, 0.25
          %v1805 = vmul.f32 %v1773, 0.25
          %v1806 = vmul.f32 %v1774, 0.25
          %v1807 = vmul.f32 %v1775, 0.25
          %v1808 = vmul.f32 %v1776, 0.25
          %v1809 = vmul.f32 %v1777, 0.25
          %v1810 = vmul.f32 %v1778, 0.25
          %v1811 = vmul.f32 %v1779, 0.25
          %v1812 = vmul.f32 %v1780, 0.25
          %v1813 = vmul.f32 %v1781, 0.25
          %v1814 = vmul.f32 %v1782, 0.25
          %v1815 = vmul.f32 %v1783, 0.25
          %v1816 = vmul.f32 %v1784, 0.25
          %v1817 = vmul.f32 %v1785, 0.25
          %v1818 = vmul.f32 %v1786, 0.25
          %v1819 = vmul.f32 %v1787, 0.25
          %v1820 = vmul.f32 %v1788, 0.25
          %v1821 = vmul.f32 %v1789, 0.25
          %1822 = vst [vmem:[%s420] sm:$0xff] %v1790
          %1823 = vst [vmem:[%s420 + $0x8] sm:$0xff] %v1791
          %1824 = vst [vmem:[%s420 + $0x10] sm:$0xff] %v1792
          %1825 = vst [vmem:[%s420 + $0x18] sm:$0xff] %v1793
          %1826 = vst [vmem:[%s420 + $0x20] sm:$0xff] %v1794
          %1827 = vst [vmem:[%s420 + $0x28] sm:$0xff] %v1795
          %1828 = vst [vmem:[%s420 + $0x30] sm:$0xff] %v1796
          %1829 = vst [vmem:[%s420 + $0x38] sm:$0xff] %v1797
          %1830 = vst [vmem:[%s420 + $0x40] sm:$0xff] %v1798
          %1831 = vst [vmem:[%s420 + $0x48] sm:$0xff] %v1799
          %1832 = vst [vmem:[%s420 + $0x50] sm:$0xff] %v1800
          %1833 = vst [vmem:[%s420 + $0x58] sm:$0xff] %v1801
          %1834 = vst [vmem:[%s420 + $0x60] sm:$0xff] %v1802
          %1835 = vst [vmem:[%s420 + $0x68] sm:$0xff] %v1803
          %1836 = vst [vmem:[%s420 + $0x70] sm:$0xff] %v1804
          %1837 = vst [vmem:[%s420 + $0x78] sm:$0xff] %v1805
          %1838 = vst [vmem:[%s420 + $0x80] sm:$0xff] %v1806
          %1839 = vst [vmem:[%s420 + $0x88] sm:$0xff] %v1807
          %1840 = vst [vmem:[%s420 + $0x90] sm:$0xff] %v1808
          %1841 = vst [vmem:[%s420 + $0x98] sm:$0xff] %v1809
          %1842 = vst [vmem:[%s420 + $0xa0] sm:$0xff] %v1810
          %1843 = vst [vmem:[%s420 + $0xa8] sm:$0xff] %v1811
          %1844 = vst [vmem:[%s420 + $0xb0] sm:$0xff] %v1812
          %1845 = vst [vmem:[%s420 + $0xb8] sm:$0xff] %v1813
          %1846 = vst [vmem:[%s420 + $0xc0] sm:$0xff] %v1814
          %1847 = vst [vmem:[%s420 + $0xc8] sm:$0xff] %v1815
          %1848 = vst [vmem:[%s420 + $0xd0] sm:$0xff] %v1816
          %1849 = vst [vmem:[%s420 + $0xd8] sm:$0xff] %v1817
          %1850 = vst [vmem:[%s420 + $0xe0] sm:$0xff] %v1818
          %1851 = vst [vmem:[%s420 + $0xe8] sm:$0xff] %v1819
          %1852 = vst [vmem:[%s420 + $0xf0] sm:$0xff] %v1820
          %1853 = vst [vmem:[%s420 + $0xf8] sm:$0xff] %v1821
        $region67: #{lightgcn_forward.6} parent=50 // pred_fallthru
          _
        %s1854 = sand.u32 %s132, 1
        %s1855 = scalar_lea.sflag [#allocation8], %s1854
        %s1856 = sand.u32 %s132, 1
        %s1857 = smul.addr %s1856, 128
        %s1858 = scalar_lea.vmem [#allocation7], %s1857
        %s1859 = smul.u32 32, %s35
        %p1860 = scmp.lt.s32.totalorder %s1859, 127
        %s1861 = scalar_select %p1860, %s1859, 127
        %s1862 = smul.addr %s1861, 8
        %s1863 = scalar_lea.vmem %s6, %s1862
        // Predicated region
        $region68: #{lightgcn_forward.6} parent=50 // pred_check
          %p1864 = pneg %p142
        $region69: #{lightgcn_forward.6} parent=50 // pred_check_branch
          %1866 = sbr.rel (%p1864) target = $region71
        $region70: #{lightgcn_forward.6} parent=50 // pred_region
          %s1867 = smul.u32 32, %s35
          %s1869 = ssub.s32 2048, 2048
          %1870 = vsyncadd %s1855, %s1869
          %s1871 = smul.addr %s1867, 64
          %s1872 = scalar_lea.hbm %s5, %s1871
          %s1873 = sshll.u32 %s1858, 4
          %s1874 = int_to_ptr.vmem [resolvable:$true] %s1873
          %1879 = dma.vmem_to_hbm [thread:$0]  %s1874, 2048, %s1872, %s1855, 64, 64, 4
        $region71: #{lightgcn_forward.6} parent=50 // pred_fallthru
          _
        // Predicated region
        $region72: #{lightgcn_forward.6} parent=50 // pred_check
          %p1880 = pneg %p168
        $region73: #{lightgcn_forward.6} parent=50 // pred_check_branch
          %1882 = sbr.rel (%p1880) target = $region75
        $region74: #{lightgcn_forward.6} parent=50 // pred_region
          %s1883 = smul.u32 32, %s35
        $region75: #{lightgcn_forward.6} parent=50 // pred_fallthru
          _
      $region51: #{lightgcn_forward.6} parent=5 // pred_fallthru
        _
      %p1884 = scmp.le.s32.totalorder 2, %s26
      // Predicated region
      $region76: #{lightgcn_forward.6} parent=5 // pred_check
        %p1885 = pneg %p1884
      $region77: #{lightgcn_forward.6} parent=5 // pred_check_branch
        %1887 = sbr.rel (%p1885) target = $region79
      $region78: #{lightgcn_forward.6} parent=5 // pred_region
        %s1888 = ssub.s32 %s26, 2
        // Predicated region
        $region80: #{lightgcn_forward.6} parent=78 // pred_check
          %p1889 = pneg %p148
        $region81: #{lightgcn_forward.6} parent=78 // pred_check_branch
          %1891 = sbr.rel (%p1889) target = $region83
        $region82: #{lightgcn_forward.6} parent=78 // pred_region
          %s1892 = sand.u32 %s133, 1
          %s1893 = scalar_lea.sflag [#allocation8], %s1892
          %s1894 = sand.u32 %s133, 1
          %s1895 = smul.addr %s1894, 128
          %s1896 = scalar_lea.vmem [#allocation7], %s1895
          %1897 = dma.done %s1893, 2048
        $region83: #{lightgcn_forward.6} parent=78 // pred_fallthru
          _
        // Predicated region
        $region84: #{lightgcn_forward.6} parent=78 // pred_check
          %p1898 = pneg %p174
        $region85: #{lightgcn_forward.6} parent=78 // pred_check_branch
          %1900 = sbr.rel (%p1898) target = $region87
        $region86: #{lightgcn_forward.6} parent=78 // pred_region
          %s1901 = smul.u32 32, %s37
          %p1902 = scmp.lt.s32.totalorder %s1901, 127
          %s1903 = scalar_select %p1902, %s1901, 127
          %s1904 = smul.addr %s1903, 8
          %s1905 = scalar_lea.vmem %s6, %s1904
        $region87: #{lightgcn_forward.6} parent=78 // pred_fallthru
          _
      $region79: #{lightgcn_forward.6} parent=5 // pred_fallthru
        _
    $region6: #{lightgcn_forward.6} parent=1 // loop_footer
      %s30 = sadd.s32 1, %s26
    $region7: #{lightgcn_forward.6} parent=1 // loop_footer_branch
      %25 = sbr.rel target = $region3
    $region8: #{lightgcn_forward.6} parent=1 // loop_exit
      _
    %1906 = vsyncpa [#allocation8], 1
    %s1907 = scalar_lea.sflag [#allocation8], 1
    %1908 = vsyncpa %s1907, 1

</llo_original>
